<compile_context>
chip_gen: v7x
topology: tpu7x:2x2x1
jax: 0.10.0
libtpu: 0.0.40
codegen_flags: <defaults>
</compile_context>

<pallas_src>
import functools

import jax
import jax.numpy as jnp
from jax.experimental import pallas as pl
from jax.experimental.pallas import tpu as pltpu

SQRT_HALF = 0.7071067811865476


def _round_up(x, m):
    return (x + m - 1) // m * m


def _gelu(v):
    # exact erf-form GELU, matching the module's v*0.5*(erf(v/sqrt2)+1)
    return (v * 0.5) * (jax.lax.erf(v * SQRT_HALF) + 1.0)


def fused_convnet_kernel(x_ref,
                         w1_ref, b1_ref, w2_ref, b2_ref,
                         w3_ref, b3_ref, w4_ref, b4_ref,
                         w5_ref, b5_ref, w6_ref, b6_ref,
                         o_ref,
                         a2, a3, a4, a5,
                         *, W0, ML, MB):
    f32 = jnp.float32
    halo = MB - ML

    # --- minimal defensive zeroing --------------------------------------
    # Sublane-padding rows are contracted against zero weight columns, so they
    # must not hold NaN/Inf garbage.  The lane halo [ML, MB) is read by the
    # shifted slices below (feeding garbage-only output lanes); zero it so
    # those lanes stay deterministic.  Nothing else is pre-initialized.
    a3[pl.ds(2, 6), :] = jnp.zeros((6, MB), f32)      # a3 has 2 real channels
    a4[pl.ds(15, 1), :] = jnp.zeros((1, MB), f32)     # a4 has 15 real channels
    a5[pl.ds(15, 1), :] = jnp.zeros((1, MB), f32)     # a5 has 15 real channels
    for buf, rows in ((a2, 8), (a3, 8), (a4, 16), (a5, 16)):
        buf[:, pl.ds(ML, halo)] = jnp.zeros((rows, halo), f32)

    # --- conv1: 1x1, 1 -> 28.  Pure VPU broadcast (K=1), lane-dense. -----
    v1 = _gelu(w1_ref[...] * x_ref[...] + b1_ref[...])               # (28, ML)

    # --- conv2: 1x1, 28 -> 8.  Single MXU matmul, N = ML lane-dense. -----
    v2 = _gelu(jnp.dot(w2_ref[...], v1, preferred_element_type=f32)
               + b2_ref[...])                                         # (8, ML)
    a2[:, pl.ds(0, ML)] = v2

    # --- 2x2 valid conv = ONE matmul over 4 lane-shifted, packed taps ----
    shifts = (0, 1, W0, W0 + 1)                 # tap t = ky*2+kx -> ky*W0 + kx

    def conv2x2(src_ref, w_ref, b_ref):
        cat = jnp.concatenate(
            [src_ref[:, pl.ds(s, ML)] for s in shifts], axis=0)   # (4*Cpad, ML)
        return jnp.dot(w_ref[...], cat, preferred_element_type=f32) + b_ref[...]

    a3[pl.ds(0, 2), pl.ds(0, ML)] = _gelu(conv2x2(a2, w3_ref, b3_ref))    # 8 -> 2
    a4[pl.ds(0, 15), pl.ds(0, ML)] = _gelu(conv2x2(a3, w4_ref, b4_ref))   # 2 -> 15
    a5[pl.ds(0, 15), pl.ds(0, ML)] = _gelu(conv2x2(a4, w5_ref, b5_ref))   # 15 -> 15
    o_ref[...] = conv2x2(a5, w6_ref, b6_ref).astype(o_ref.dtype)          # 15 -> 2 (no GELU)


def prep_weights(params):
    """Reshape/pack PyTorch-layout conv weights once, at setup time."""
    def w1x1(w):                       # (Cout, Cin, 1, 1) -> (Cout, Cin)
        return w.reshape(w.shape[0], w.shape[1])

    def w2x2(w, cin_pad):              # (Cout, Cin, 2, 2) -> (Cout, 4*cin_pad)
        cout, cin = w.shape[0], w.shape[1]
        wt = jnp.transpose(w, (2, 3, 0, 1)).reshape(4, cout, cin)   # tap t = ky*2+kx
        wt = jnp.pad(wt, ((0, 0), (0, 0), (0, cin_pad - cin)))      # zero pad columns
        return jnp.transpose(wt, (1, 0, 2)).reshape(cout, 4 * cin_pad)

    def bcol(b):
        return b.reshape(-1, 1)

    (w1, b1), (w2, b2) = params["conv"], params["conv2"]
    (w3, b3), (w4, b4) = params["conv3"], params["conv4"]
    (w5, b5), (w6, b6) = params["conv5"], params["conv6"]
    return (w1x1(w1), bcol(b1), w1x1(w2), bcol(b2),
            w2x2(w3, 8), bcol(b3), w2x2(w4, 8), bcol(b4),
            w2x2(w5, 16), bcol(b5), w2x2(w6, 16), bcol(b6))


@jax.jit
def model_forward(x_nchw, flat_params):
    _, _, H, W = x_nchw.shape
    M0 = H * W
    ML = _round_up(M0, 128)                    # lane-aligned compute width
    MB = ML + _round_up(W + 1, 128)            # + halo for the max shift (W + 1)

    x_row = jnp.pad(x_nchw.reshape(1, M0).astype(jnp.float32),
                    ((0, 0), (0, ML - M0)))    # lane-dense (1, ML) input

    # Real (padded) VMEM footprint + margin for in-kernel temporaries.
    scratch_bytes = 4 * MB * (8 + 8 + 16 + 16)
    io_bytes = 4 * 8 * ML * 2
    vmem_limit = int(scratch_bytes + io_bytes + 16 * 1024 * 1024)

    vmem = pltpu.MemorySpace.VMEM
    out2d = pl.pallas_call(
        functools.partial(fused_convnet_kernel, W0=W, ML=ML, MB=MB),
        out_shape=jax.ShapeDtypeStruct((2, ML), jnp.float32),
        in_specs=[pl.BlockSpec(memory_space=vmem) for _ in range(13)],
        out_specs=pl.BlockSpec(memory_space=vmem),
        scratch_shapes=[
            pltpu.VMEM((8, MB), jnp.float32),    # act2 (8 ch)
            pltpu.VMEM((8, MB), jnp.float32),    # act3 (2 ch + pad)
            pltpu.VMEM((16, MB), jnp.float32),   # act4 (15 ch + pad)
            pltpu.VMEM((16, MB), jnp.float32),   # act5 (15 ch + pad)
        ],
        compiler_params=pltpu.CompilerParams(vmem_limit_bytes=vmem_limit),
    )(x_row, *flat_params)

    # Keep only the valid (H-4, W-4) region; channels are already leading.
    out = out2d[:, :M0].reshape(2, H, W)[:, :H - 4, :W - 4]
    return out[None]                             # (1, 2, H-4, W-4) NCHW


def init_conv_params(key, cout, cin, k):
    """Deterministic init mimicking PyTorch's uniform(-bound, bound)."""
    kw_, kb_ = jax.random.split(key)
    fan_in = cin * k * k
    bound = 1.0 / jnp.sqrt(fan_in)
    w = jax.random.uniform(kw_, (cout, cin, k, k), jnp.float32, -bound, bound)
    b = jax.random.uniform(kb_, (cout,), jnp.float32, -bound, bound)
    return w, b


def reference_forward(x_nchw, params):
    """Pure-JAX reference using lax.conv for validation."""
    def conv(x, w, b):
        y = jax.lax.conv_general_dilated(
            x, w, window_strides=(1, 1), padding="VALID",
            dimension_numbers=("NCHW", "OIHW", "NCHW"))
        return y + b[None, :, None, None]

    x = x_nchw
    names = ["conv", "conv2", "conv3", "conv4", "conv5", "conv6"]
    for i, n in enumerate(names):
        w, b = params[n]
        x = conv(x, w, b)
        if i < 5:
            x = _gelu(x)
    return x


if __name__ == "__main__":
    key = jax.random.PRNGKey(0)
    k_in, k1, k2, k3, k4, k5, k6 = jax.random.split(key, 7)

    # Small spatial size consistent with the module (original was 155x155).
    H = W = 32
    x1 = jax.random.normal(k_in, (1, 1, H, W), jnp.float32)

    params = {
        "conv":  init_conv_params(k1, 28, 1, 1),
        "conv2": init_conv_params(k2, 8, 28, 1),
        "conv3": init_conv_params(k3, 2, 8, 2),
        "conv4": init_conv_params(k4, 15, 2, 2),
        "conv5": init_conv_params(k5, 15, 15, 2),
        "conv6": init_conv_params(k6, 2, 15, 2),
    }
    flat = prep_weights(params)

    out = jax.block_until_ready(model_forward(x1, flat))
    ref = jax.block_until_ready(reference_forward(x1, params))

    assert out.shape == (1, 2, H - 4, W - 4), out.shape
    assert jnp.allclose(out, ref, rtol=1e-4, atol=1e-4), float(
        jnp.max(jnp.abs(out - ref)))
    print("KERNEL_OK")
</pallas_src>

<mosaic_0001>
module attributes {stable_mosaic.version = 11 : i64} {
  func.func @fused_convnet_kernel(%arg0: memref<1x1024xf32, #tpu.memory_space<vmem>>, %arg1: memref<28x1xf32, #tpu.memory_space<vmem>>, %arg2: memref<28x1xf32, #tpu.memory_space<vmem>>, %arg3: memref<8x28xf32, #tpu.memory_space<vmem>>, %arg4: memref<8x1xf32, #tpu.memory_space<vmem>>, %arg5: memref<2x32xf32, #tpu.memory_space<vmem>>, %arg6: memref<2x1xf32, #tpu.memory_space<vmem>>, %arg7: memref<15x32xf32, #tpu.memory_space<vmem>>, %arg8: memref<15x1xf32, #tpu.memory_space<vmem>>, %arg9: memref<15x64xf32, #tpu.memory_space<vmem>>, %arg10: memref<15x1xf32, #tpu.memory_space<vmem>>, %arg11: memref<2x64xf32, #tpu.memory_space<vmem>>, %arg12: memref<2x1xf32, #tpu.memory_space<vmem>>, %arg13: memref<2x1024xf32, #tpu.memory_space<vmem>>, %arg14: memref<8x1152xf32, #tpu.memory_space<vmem>>, %arg15: memref<8x1152xf32, #tpu.memory_space<vmem>>, %arg16: memref<16x1152xf32, #tpu.memory_space<vmem>>, %arg17: memref<16x1152xf32, #tpu.memory_space<vmem>>) attributes {dimension_semantics = [], scalar_prefetch = 0 : i64, scratch_operands = 4 : i64, tpu.core_type = #tpu.core_type<tc>} {
    %cst = arith.constant 0.000000e+00 : f32
    %0 = vector.broadcast %cst : f32 to vector<6x1152xf32>
    %c2 = arith.constant 2 : index
    %c0 = arith.constant 0 : index
    %1 = vector.load %arg15[%c2, %c0] : memref<8x1152xf32, #tpu.memory_space<vmem>>, vector<6x1152xf32>
    tpu.vector_store %arg15[%c2, %c0], %0 {strides = array<i32>} : memref<8x1152xf32, #tpu.memory_space<vmem>>, vector<6x1152xf32>,
    %cst_0 = arith.constant 0.000000e+00 : f32
    %2 = vector.broadcast %cst_0 : f32 to vector<1x1152xf32>
    %c15 = arith.constant 15 : index
    %c0_1 = arith.constant 0 : index
    %3 = vector.load %arg16[%c15, %c0_1] : memref<16x1152xf32, #tpu.memory_space<vmem>>, vector<1x1152xf32>
    tpu.vector_store %arg16[%c15, %c0_1], %2 {strides = array<i32>} : memref<16x1152xf32, #tpu.memory_space<vmem>>, vector<1x1152xf32>,
    %cst_2 = arith.constant 0.000000e+00 : f32
    %4 = vector.broadcast %cst_2 : f32 to vector<1x1152xf32>
    %c15_3 = arith.constant 15 : index
    %c0_4 = arith.constant 0 : index
    %5 = vector.load %arg17[%c15_3, %c0_4] : memref<16x1152xf32, #tpu.memory_space<vmem>>, vector<1x1152xf32>
    tpu.vector_store %arg17[%c15_3, %c0_4], %4 {strides = array<i32>} : memref<16x1152xf32, #tpu.memory_space<vmem>>, vector<1x1152xf32>,
    %cst_5 = arith.constant 0.000000e+00 : f32
    %6 = vector.broadcast %cst_5 : f32 to vector<8x128xf32>
    %c0_6 = arith.constant 0 : index
    %c1024 = arith.constant 1024 : index
    %7 = vector.load %arg14[%c0_6, %c1024] : memref<8x1152xf32, #tpu.memory_space<vmem>>, vector<8x128xf32>
    tpu.vector_store %arg14[%c0_6, %c1024], %6 {strides = array<i32>} : memref<8x1152xf32, #tpu.memory_space<vmem>>, vector<8x128xf32>,
    %cst_7 = arith.constant 0.000000e+00 : f32
    %8 = vector.broadcast %cst_7 : f32 to vector<8x128xf32>
    %c0_8 = arith.constant 0 : index
    %c1024_9 = arith.constant 1024 : index
    %9 = vector.load %arg15[%c0_8, %c1024_9] : memref<8x1152xf32, #tpu.memory_space<vmem>>, vector<8x128xf32>
    tpu.vector_store %arg15[%c0_8, %c1024_9], %8 {strides = array<i32>} : memref<8x1152xf32, #tpu.memory_space<vmem>>, vector<8x128xf32>,
    %cst_10 = arith.constant 0.000000e+00 : f32
    %10 = vector.broadcast %cst_10 : f32 to vector<16x128xf32>
    %c0_11 = arith.constant 0 : index
    %c1024_12 = arith.constant 1024 : index
    %11 = vector.load %arg16[%c0_11, %c1024_12] : memref<16x1152xf32, #tpu.memory_space<vmem>>, vector<16x128xf32>
    tpu.vector_store %arg16[%c0_11, %c1024_12], %10 {strides = array<i32>} : memref<16x1152xf32, #tpu.memory_space<vmem>>, vector<16x128xf32>,
    %cst_13 = arith.constant 0.000000e+00 : f32
    %12 = vector.broadcast %cst_13 : f32 to vector<16x128xf32>
    %c0_14 = arith.constant 0 : index
    %c1024_15 = arith.constant 1024 : index
    %13 = vector.load %arg17[%c0_14, %c1024_15] : memref<16x1152xf32, #tpu.memory_space<vmem>>, vector<16x128xf32>
    tpu.vector_store %arg17[%c0_14, %c1024_15], %12 {strides = array<i32>} : memref<16x1152xf32, #tpu.memory_space<vmem>>, vector<16x128xf32>,
    %c0_16 = arith.constant 0 : index
    %c0_17 = arith.constant 0 : index
    %14 = vector.load %arg1[%c0_16, %c0_17] : memref<28x1xf32, #tpu.memory_space<vmem>>, vector<28x1xf32>
    %c0_18 = arith.constant 0 : index
    %c0_19 = arith.constant 0 : index
    %15 = vector.load %arg0[%c0_18, %c0_19] : memref<1x1024xf32, #tpu.memory_space<vmem>>, vector<1x1024xf32>
    %16 = vector.broadcast %14 : vector<28x1xf32> to vector<28x1024xf32>
    %17 = vector.broadcast %15 : vector<1x1024xf32> to vector<28x1024xf32>
    %18 = arith.mulf %16, %17 : vector<28x1024xf32>
    %c0_20 = arith.constant 0 : index
    %c0_21 = arith.constant 0 : index
    %19 = vector.load %arg2[%c0_20, %c0_21] : memref<28x1xf32, #tpu.memory_space<vmem>>, vector<28x1xf32>
    %20 = vector.broadcast %19 : vector<28x1xf32> to vector<28x1024xf32>
    %21 = arith.addf %18, %20 : vector<28x1024xf32>
    %cst_22 = arith.constant 5.000000e-01 : f32
    %22 = vector.broadcast %cst_22 : f32 to vector<28x1024xf32>
    %23 = arith.mulf %21, %22 : vector<28x1024xf32>
    %cst_23 = arith.constant 0.707106769 : f32
    %24 = vector.broadcast %cst_23 : f32 to vector<28x1024xf32>
    %25 = arith.mulf %21, %24 : vector<28x1024xf32>
    %26 = math.erf %25 : vector<28x1024xf32>
    %cst_24 = arith.constant 1.000000e+00 : f32
    %27 = vector.broadcast %cst_24 : f32 to vector<28x1024xf32>
    %28 = arith.addf %26, %27 : vector<28x1024xf32>
    %29 = arith.mulf %23, %28 : vector<28x1024xf32>
    %c0_25 = arith.constant 0 : index
    %c0_26 = arith.constant 0 : index
    %30 = vector.load %arg3[%c0_25, %c0_26] : memref<8x28xf32, #tpu.memory_space<vmem>>, vector<8x28xf32>
    %cst_27 = arith.constant dense<0.000000e+00> : vector<8x1024xf32>
    %31 = tpu.matmul %30, %29, %cst_27 {dimension_numbers = #tpu.dot_dimension_numbers<[1], [0], [0], [1], [0, 0, 1, 1], [], []>} : vector<8x28xf32>, vector<28x1024xf32>, vector<8x1024xf32> -> vector<8x1024xf32>
    %c0_28 = arith.constant 0 : index
    %c0_29 = arith.constant 0 : index
    %32 = vector.load %arg4[%c0_28, %c0_29] : memref<8x1xf32, #tpu.memory_space<vmem>>, vector<8x1xf32>
    %33 = vector.broadcast %32 : vector<8x1xf32> to vector<8x1024xf32>
    %34 = arith.addf %31, %33 : vector<8x1024xf32>
    %cst_30 = arith.constant 5.000000e-01 : f32
    %35 = vector.broadcast %cst_30 : f32 to vector<8x1024xf32>
    %36 = arith.mulf %34, %35 : vector<8x1024xf32>
    %cst_31 = arith.constant 0.707106769 : f32
    %37 = vector.broadcast %cst_31 : f32 to vector<8x1024xf32>
    %38 = arith.mulf %34, %37 : vector<8x1024xf32>
    %39 = math.erf %38 : vector<8x1024xf32>
    %cst_32 = arith.constant 1.000000e+00 : f32
    %40 = vector.broadcast %cst_32 : f32 to vector<8x1024xf32>
    %41 = arith.addf %39, %40 : vector<8x1024xf32>
    %42 = arith.mulf %36, %41 : vector<8x1024xf32>
    %c0_33 = arith.constant 0 : index
    %c0_34 = arith.constant 0 : index
    %43 = vector.load %arg14[%c0_33, %c0_34] : memref<8x1152xf32, #tpu.memory_space<vmem>>, vector<8x1024xf32>
    tpu.vector_store %arg14[%c0_33, %c0_34], %42 {strides = array<i32>} : memref<8x1152xf32, #tpu.memory_space<vmem>>, vector<8x1024xf32>,
    %c0_35 = arith.constant 0 : index
    %c0_36 = arith.constant 0 : index
    %44 = vector.load %arg14[%c0_35, %c0_36] : memref<8x1152xf32, #tpu.memory_space<vmem>>, vector<8x1024xf32>
    %c0_37 = arith.constant 0 : index
    %c1 = arith.constant 1 : index
    %45 = vector.load %arg14[%c0_37, %c1] : memref<8x1152xf32, #tpu.memory_space<vmem>>, vector<8x1024xf32>
    %c0_38 = arith.constant 0 : index
    %c32 = arith.constant 32 : index
    %46 = vector.load %arg14[%c0_38, %c32] : memref<8x1152xf32, #tpu.memory_space<vmem>>, vector<8x1024xf32>
    %c0_39 = arith.constant 0 : index
    %c33 = arith.constant 33 : index
    %47 = vector.load %arg14[%c0_39, %c33] : memref<8x1152xf32, #tpu.memory_space<vmem>>, vector<8x1024xf32>
    %48 = tpu.concatenate %44, %45, %46, %47 in 0 : vector<8x1024xf32>, vector<8x1024xf32>, vector<8x1024xf32>, vector<8x1024xf32> -> vector<32x1024xf32>
    %c0_40 = arith.constant 0 : index
    %c0_41 = arith.constant 0 : index
    %49 = vector.load %arg5[%c0_40, %c0_41] : memref<2x32xf32, #tpu.memory_space<vmem>>, vector<2x32xf32>
    %cst_42 = arith.constant dense<0.000000e+00> : vector<2x1024xf32>
    %50 = tpu.matmul %49, %48, %cst_42 {dimension_numbers = #tpu.dot_dimension_numbers<[1], [0], [0], [1], [0, 0, 1, 1], [], []>} : vector<2x32xf32>, vector<32x1024xf32>, vector<2x1024xf32> -> vector<2x1024xf32>
    %c0_43 = arith.constant 0 : index
    %c0_44 = arith.constant 0 : index
    %51 = vector.load %arg6[%c0_43, %c0_44] : memref<2x1xf32, #tpu.memory_space<vmem>>, vector<2x1xf32>
    %52 = vector.broadcast %51 : vector<2x1xf32> to vector<2x1024xf32>
    %53 = arith.addf %50, %52 : vector<2x1024xf32>
    %cst_45 = arith.constant 5.000000e-01 : f32
    %54 = vector.broadcast %cst_45 : f32 to vector<2x1024xf32>
    %55 = arith.mulf %53, %54 : vector<2x1024xf32>
    %cst_46 = arith.constant 0.707106769 : f32
    %56 = vector.broadcast %cst_46 : f32 to vector<2x1024xf32>
    %57 = arith.mulf %53, %56 : vector<2x1024xf32>
    %58 = math.erf %57 : vector<2x1024xf32>
    %cst_47 = arith.constant 1.000000e+00 : f32
    %59 = vector.broadcast %cst_47 : f32 to vector<2x1024xf32>
    %60 = arith.addf %58, %59 : vector<2x1024xf32>
    %61 = arith.mulf %55, %60 : vector<2x1024xf32>
    %c0_48 = arith.constant 0 : index
    %c0_49 = arith.constant 0 : index
    %62 = vector.load %arg15[%c0_48, %c0_49] : memref<8x1152xf32, #tpu.memory_space<vmem>>, vector<2x1024xf32>
    tpu.vector_store %arg15[%c0_48, %c0_49], %61 {strides = array<i32>} : memref<8x1152xf32, #tpu.memory_space<vmem>>, vector<2x1024xf32>,
    %c0_50 = arith.constant 0 : index
    %c0_51 = arith.constant 0 : index
    %63 = vector.load %arg15[%c0_50, %c0_51] : memref<8x1152xf32, #tpu.memory_space<vmem>>, vector<8x1024xf32>
    %c0_52 = arith.constant 0 : index
    %c1_53 = arith.constant 1 : index
    %64 = vector.load %arg15[%c0_52, %c1_53] : memref<8x1152xf32, #tpu.memory_space<vmem>>, vector<8x1024xf32>
    %c0_54 = arith.constant 0 : index
    %c32_55 = arith.constant 32 : index
    %65 = vector.load %arg15[%c0_54, %c32_55] : memref<8x1152xf32, #tpu.memory_space<vmem>>, vector<8x1024xf32>
    %c0_56 = arith.constant 0 : index
    %c33_57 = arith.constant 33 : index
    %66 = vector.load %arg15[%c0_56, %c33_57] : memref<8x1152xf32, #tpu.memory_space<vmem>>, vector<8x1024xf32>
    %67 = tpu.concatenate %63, %64, %65, %66 in 0 : vector<8x1024xf32>, vector<8x1024xf32>, vector<8x1024xf32>, vector<8x1024xf32> -> vector<32x1024xf32>
    %c0_58 = arith.constant 0 : index
    %c0_59 = arith.constant 0 : index
    %68 = vector.load %arg7[%c0_58, %c0_59] : memref<15x32xf32, #tpu.memory_space<vmem>>, vector<15x32xf32>
    %cst_60 = arith.constant dense<0.000000e+00> : vector<15x1024xf32>
    %69 = tpu.matmul %68, %67, %cst_60 {dimension_numbers = #tpu.dot_dimension_numbers<[1], [0], [0], [1], [0, 0, 1, 1], [], []>} : vector<15x32xf32>, vector<32x1024xf32>, vector<15x1024xf32> -> vector<15x1024xf32>
    %c0_61 = arith.constant 0 : index
    %c0_62 = arith.constant 0 : index
    %70 = vector.load %arg8[%c0_61, %c0_62] : memref<15x1xf32, #tpu.memory_space<vmem>>, vector<15x1xf32>
    %71 = vector.broadcast %70 : vector<15x1xf32> to vector<15x1024xf32>
    %72 = arith.addf %69, %71 : vector<15x1024xf32>
    %cst_63 = arith.constant 5.000000e-01 : f32
    %73 = vector.broadcast %cst_63 : f32 to vector<15x1024xf32>
    %74 = arith.mulf %72, %73 : vector<15x1024xf32>
    %cst_64 = arith.constant 0.707106769 : f32
    %75 = vector.broadcast %cst_64 : f32 to vector<15x1024xf32>
    %76 = arith.mulf %72, %75 : vector<15x1024xf32>
    %77 = math.erf %76 : vector<15x1024xf32>
    %cst_65 = arith.constant 1.000000e+00 : f32
    %78 = vector.broadcast %cst_65 : f32 to vector<15x1024xf32>
    %79 = arith.addf %77, %78 : vector<15x1024xf32>
    %80 = arith.mulf %74, %79 : vector<15x1024xf32>
    %c0_66 = arith.constant 0 : index
    %c0_67 = arith.constant 0 : index
    %81 = vector.load %arg16[%c0_66, %c0_67] : memref<16x1152xf32, #tpu.memory_space<vmem>>, vector<15x1024xf32>
    tpu.vector_store %arg16[%c0_66, %c0_67], %80 {strides = array<i32>} : memref<16x1152xf32, #tpu.memory_space<vmem>>, vector<15x1024xf32>,
    %c0_68 = arith.constant 0 : index
    %c0_69 = arith.constant 0 : index
    %82 = vector.load %arg16[%c0_68, %c0_69] : memref<16x1152xf32, #tpu.memory_space<vmem>>, vector<16x1024xf32>
    %c0_70 = arith.constant 0 : index
    %c1_71 = arith.constant 1 : index
    %83 = vector.load %arg16[%c0_70, %c1_71] : memref<16x1152xf32, #tpu.memory_space<vmem>>, vector<16x1024xf32>
    %c0_72 = arith.constant 0 : index
    %c32_73 = arith.constant 32 : index
    %84 = vector.load %arg16[%c0_72, %c32_73] : memref<16x1152xf32, #tpu.memory_space<vmem>>, vector<16x1024xf32>
    %c0_74 = arith.constant 0 : index
    %c33_75 = arith.constant 33 : index
    %85 = vector.load %arg16[%c0_74, %c33_75] : memref<16x1152xf32, #tpu.memory_space<vmem>>, vector<16x1024xf32>
    %86 = tpu.concatenate %82, %83, %84, %85 in 0 : vector<16x1024xf32>, vector<16x1024xf32>, vector<16x1024xf32>, vector<16x1024xf32> -> vector<64x1024xf32>
    %c0_76 = arith.constant 0 : index
    %c0_77 = arith.constant 0 : index
    %87 = vector.load %arg9[%c0_76, %c0_77] : memref<15x64xf32, #tpu.memory_space<vmem>>, vector<15x64xf32>
    %cst_78 = arith.constant dense<0.000000e+00> : vector<15x1024xf32>
    %88 = tpu.matmul %87, %86, %cst_78 {dimension_numbers = #tpu.dot_dimension_numbers<[1], [0], [0], [1], [0, 0, 1, 1], [], []>} : vector<15x64xf32>, vector<64x1024xf32>, vector<15x1024xf32> -> vector<15x1024xf32>
    %c0_79 = arith.constant 0 : index
    %c0_80 = arith.constant 0 : index
    %89 = vector.load %arg10[%c0_79, %c0_80] : memref<15x1xf32, #tpu.memory_space<vmem>>, vector<15x1xf32>
    %90 = vector.broadcast %89 : vector<15x1xf32> to vector<15x1024xf32>
    %91 = arith.addf %88, %90 : vector<15x1024xf32>
    %cst_81 = arith.constant 5.000000e-01 : f32
    %92 = vector.broadcast %cst_81 : f32 to vector<15x1024xf32>
    %93 = arith.mulf %91, %92 : vector<15x1024xf32>
    %cst_82 = arith.constant 0.707106769 : f32
    %94 = vector.broadcast %cst_82 : f32 to vector<15x1024xf32>
    %95 = arith.mulf %91, %94 : vector<15x1024xf32>
    %96 = math.erf %95 : vector<15x1024xf32>
    %cst_83 = arith.constant 1.000000e+00 : f32
    %97 = vector.broadcast %cst_83 : f32 to vector<15x1024xf32>
    %98 = arith.addf %96, %97 : vector<15x1024xf32>
    %99 = arith.mulf %93, %98 : vector<15x1024xf32>
    %c0_84 = arith.constant 0 : index
    %c0_85 = arith.constant 0 : index
    %100 = vector.load %arg17[%c0_84, %c0_85] : memref<16x1152xf32, #tpu.memory_space<vmem>>, vector<15x1024xf32>
    tpu.vector_store %arg17[%c0_84, %c0_85], %99 {strides = array<i32>} : memref<16x1152xf32, #tpu.memory_space<vmem>>, vector<15x1024xf32>,
    %c0_86 = arith.constant 0 : index
    %c0_87 = arith.constant 0 : index
    %101 = vector.load %arg17[%c0_86, %c0_87] : memref<16x1152xf32, #tpu.memory_space<vmem>>, vector<16x1024xf32>
    %c0_88 = arith.constant 0 : index
    %c1_89 = arith.constant 1 : index
    %102 = vector.load %arg17[%c0_88, %c1_89] : memref<16x1152xf32, #tpu.memory_space<vmem>>, vector<16x1024xf32>
    %c0_90 = arith.constant 0 : index
    %c32_91 = arith.constant 32 : index
    %103 = vector.load %arg17[%c0_90, %c32_91] : memref<16x1152xf32, #tpu.memory_space<vmem>>, vector<16x1024xf32>
    %c0_92 = arith.constant 0 : index
    %c33_93 = arith.constant 33 : index
    %104 = vector.load %arg17[%c0_92, %c33_93] : memref<16x1152xf32, #tpu.memory_space<vmem>>, vector<16x1024xf32>
    %105 = tpu.concatenate %101, %102, %103, %104 in 0 : vector<16x1024xf32>, vector<16x1024xf32>, vector<16x1024xf32>, vector<16x1024xf32> -> vector<64x1024xf32>
    %c0_94 = arith.constant 0 : index
    %c0_95 = arith.constant 0 : index
    %106 = vector.load %arg11[%c0_94, %c0_95] : memref<2x64xf32, #tpu.memory_space<vmem>>, vector<2x64xf32>
    %cst_96 = arith.constant dense<0.000000e+00> : vector<2x1024xf32>
    %107 = tpu.matmul %106, %105, %cst_96 {dimension_numbers = #tpu.dot_dimension_numbers<[1], [0], [0], [1], [0, 0, 1, 1], [], []>} : vector<2x64xf32>, vector<64x1024xf32>, vector<2x1024xf32> -> vector<2x1024xf32>
    %c0_97 = arith.constant 0 : index
    %c0_98 = arith.constant 0 : index
    %108 = vector.load %arg12[%c0_97, %c0_98] : memref<2x1xf32, #tpu.memory_space<vmem>>, vector<2x1xf32>
    %109 = vector.broadcast %108 : vector<2x1xf32> to vector<2x1024xf32>
    %110 = arith.addf %107, %109 : vector<2x1024xf32>
    %c0_99 = arith.constant 0 : index
    %c0_100 = arith.constant 0 : index
    %111 = vector.load %arg13[%c0_99, %c0_100] : memref<2x1024xf32, #tpu.memory_space<vmem>>, vector<2x1024xf32>
    tpu.vector_store %arg13[%c0_99, %c0_100], %110 {strides = array<i32>} : memref<2x1024xf32, #tpu.memory_space<vmem>>, vector<2x1024xf32>,
    return
  }
}

</mosaic_0001>

<llo_original>
// kernel: model_forward.1
$region0: #{model_forward.1}
  #allocation0 [shape = 'u32[]', space=smem, size = 0x4, offset = 0x4, fixed_abs, tag = 'smem constant byte address 0x4 - core index']
  #allocation1 [shape = 'u32[144,128]{1,0:T(1,128)}', space=vmem, size = 0x12000, scoped, tag = 'internal scratch']
  #allocation2 [shape = 'f32[8,1152]{1,0:T(8,128)}', space=vmem, size = 0x9000, scoped, tag = 'scratch operand']
  #allocation3 [shape = 'f32[8,1152]{1,0:T(8,128)}', space=vmem, size = 0x9000, scoped, tag = 'scratch operand']
  #allocation4 [shape = 'f32[16,1152]{1,0:T(8,128)}', space=vmem, size = 0x12000, scoped, tag = 'scratch operand']
  #allocation5 [shape = 'f32[16,1152]{1,0:T(8,128)}', space=vmem, size = 0x12000, scoped, tag = 'scratch operand']
  %s0 = inlined_call_operand.vmem [shape: f32[1,1024], index: 0, kind: input, shape index: {}]
  %s1 = inlined_call_operand.vmem [shape: f32[28,1], index: 1, kind: input, shape index: {}]
  %s2 = inlined_call_operand.vmem [shape: f32[28,1], index: 2, kind: input, shape index: {}]
  %s3 = inlined_call_operand.vmem [shape: f32[8,28], index: 3, kind: input, shape index: {}]
  %s4 = inlined_call_operand.vmem [shape: f32[8,1], index: 4, kind: input, shape index: {}]
  %s5 = inlined_call_operand.vmem [shape: f32[2,32], index: 5, kind: input, shape index: {}]
  %s6 = inlined_call_operand.vmem [shape: f32[2,1], index: 6, kind: input, shape index: {}]
  %s7 = inlined_call_operand.vmem [shape: f32[15,32], index: 7, kind: input, shape index: {}]
  %s8 = inlined_call_operand.vmem [shape: f32[15,1], index: 8, kind: input, shape index: {}]
  %s9 = inlined_call_operand.vmem [shape: f32[15,64], index: 9, kind: input, shape index: {}]
  %s10 = inlined_call_operand.vmem [shape: f32[15,1], index: 10, kind: input, shape index: {}]
  %s11 = inlined_call_operand.vmem [shape: f32[2,64], index: 11, kind: input, shape index: {}]
  %s12 = inlined_call_operand.vmem [shape: f32[2,1], index: 12, kind: input, shape index: {}]
  %s13 = inlined_call_operand.vmem [shape: f32[2,1024], index: 13, kind: output, shape index: {}]
  %s14 = sld [smem:[#allocation0]]
  $region62: #{model_forward.1} parent=0
    _
  %s16 = ssub.s32 1, %s14
  %s17 = scalar_select 0, %s16, %s14
  // Predicated region
  $region2: #{model_forward.1} parent=0 // pred_check
    _
  $region3: #{model_forward.1} parent=0 // pred_check_branch
    %19 = sbr.rel (0) target = $region5
  $region4: #{model_forward.1} parent=0 // pred_region
    _
  $region5: #{model_forward.1} parent=0 // pred_fallthru
    _
  // Predicated region
  $region6: #{model_forward.1} parent=0 // pred_check
    _
  $region7: #{model_forward.1} parent=0 // pred_check_branch
    %21 = sbr.rel (0) target = $region9
  $region8: #{model_forward.1} parent=0 // pred_region
    _
  $region9: #{model_forward.1} parent=0 // pred_fallthru
    _
  // Predicated region
  $region10: #{model_forward.1} parent=0 // pred_check
    _
  $region11: #{model_forward.1} parent=0 // pred_check_branch
    %23 = sbr.rel (0) target = $region13
  $region12: #{model_forward.1} parent=0 // pred_region
    _
  $region13: #{model_forward.1} parent=0 // pred_fallthru
    _
  // Predicated region
  $region14: #{model_forward.1} parent=0 // pred_check
    _
  $region15: #{model_forward.1} parent=0 // pred_check_branch
    %25 = sbr.rel (0) target = $region17
  $region16: #{model_forward.1} parent=0 // pred_region
    _
  $region17: #{model_forward.1} parent=0 // pred_fallthru
    _
  // Predicated region
  $region18: #{model_forward.1} parent=0 // pred_check
    _
  $region19: #{model_forward.1} parent=0 // pred_check_branch
    %27 = sbr.rel (0) target = $region21
  $region20: #{model_forward.1} parent=0 // pred_region
    _
  $region21: #{model_forward.1} parent=0 // pred_fallthru
    _
  // Predicated region
  $region22: #{model_forward.1} parent=0 // pred_check
    _
  $region23: #{model_forward.1} parent=0 // pred_check_branch
    %29 = sbr.rel (0) target = $region25
  $region24: #{model_forward.1} parent=0 // pred_region
    _
  $region25: #{model_forward.1} parent=0 // pred_fallthru
    _
  // Predicated region
  $region26: #{model_forward.1} parent=0 // pred_check
    _
  $region27: #{model_forward.1} parent=0 // pred_check_branch
    %31 = sbr.rel (0) target = $region29
  $region28: #{model_forward.1} parent=0 // pred_region
    _
  $region29: #{model_forward.1} parent=0 // pred_fallthru
    _
  // Predicated region
  $region30: #{model_forward.1} parent=0 // pred_check
    _
  $region31: #{model_forward.1} parent=0 // pred_check_branch
    %33 = sbr.rel (0) target = $region33
  $region32: #{model_forward.1} parent=0 // pred_region
    _
  $region33: #{model_forward.1} parent=0 // pred_fallthru
    _
  // Predicated region
  $region34: #{model_forward.1} parent=0 // pred_check
    _
  $region35: #{model_forward.1} parent=0 // pred_check_branch
    %35 = sbr.rel (0) target = $region37
  $region36: #{model_forward.1} parent=0 // pred_region
    _
  $region37: #{model_forward.1} parent=0 // pred_fallthru
    _
  // Predicated region
  $region38: #{model_forward.1} parent=0 // pred_check
    _
  $region39: #{model_forward.1} parent=0 // pred_check_branch
    %37 = sbr.rel (0) target = $region41
  $region40: #{model_forward.1} parent=0 // pred_region
    _
  $region41: #{model_forward.1} parent=0 // pred_fallthru
    _
  // Predicated region
  $region42: #{model_forward.1} parent=0 // pred_check
    _
  $region43: #{model_forward.1} parent=0 // pred_check_branch
    %39 = sbr.rel (0) target = $region45
  $region44: #{model_forward.1} parent=0 // pred_region
    _
  $region45: #{model_forward.1} parent=0 // pred_fallthru
    _
  // Predicated region
  $region46: #{model_forward.1} parent=0 // pred_check
    _
  $region47: #{model_forward.1} parent=0 // pred_check_branch
    %41 = sbr.rel (0) target = $region49
  $region48: #{model_forward.1} parent=0 // pred_region
    _
  $region49: #{model_forward.1} parent=0 // pred_fallthru
    _
  // Predicated region
  $region50: #{model_forward.1} parent=0 // pred_check
    _
  $region51: #{model_forward.1} parent=0 // pred_check_branch
    %43 = sbr.rel (0) target = $region53
  $region52: #{model_forward.1} parent=0 // pred_region
    _
  $region53: #{model_forward.1} parent=0 // pred_fallthru
    _
  %44 = vst [vmem:[#allocation3] sm:$0xfc] 0.0
  %45 = vst [vmem:[#allocation3 + $0x8] sm:$0xfc] 0.0
  %46 = vst [vmem:[#allocation3 + $0x10] sm:$0xfc] 0.0
  %47 = vst [vmem:[#allocation3 + $0x18] sm:$0xfc] 0.0
  %48 = vst [vmem:[#allocation3 + $0x20] sm:$0xfc] 0.0
  %49 = vst [vmem:[#allocation3 + $0x28] sm:$0xfc] 0.0
  %50 = vst [vmem:[#allocation3 + $0x30] sm:$0xfc] 0.0
  %51 = vst [vmem:[#allocation3 + $0x38] sm:$0xfc] 0.0
  %52 = vst [vmem:[#allocation3 + $0x40] sm:$0xfc] 0.0
  %s53 = scalar_lea.vmem [#allocation4], 79
  %54 = vst [vmem:[%s53] ss:$8 sm:$0xf] 0.0
  %55 = vst [vmem:[%s53] ss:$8 sm:$0xf0] 0.0
  %v56 = vlaneseq
  %vm57 = vcmp.ge.s32.totalorder %v56, 0
  %vm58 = vcmp.lt.s32.totalorder %v56, 128
  %vm59 = vmand %vm57, %vm58
  %s60 = scalar_lea.vmem [#allocation4], 143
  %61 = vst.msk [vmem:[%s60] ss:$8 sm:$0x1] %vm59, 0.0
  %62 = vst.msk [vmem:[%s60] ss:$8 sm:$0x0] %vm59, 0.0
  %s63 = scalar_lea.vmem [#allocation5], 79
  %64 = vst [vmem:[%s63] ss:$8 sm:$0xf] 0.0
  %65 = vst [vmem:[%s63] ss:$8 sm:$0xf0] 0.0
  %s66 = scalar_lea.vmem [#allocation5], 143
  %67 = vst.msk [vmem:[%s66] ss:$8 sm:$0x1] %vm59, 0.0
  %68 = vst.msk [vmem:[%s66] ss:$8 sm:$0x0] %vm59, 0.0
  %69 = vst [vmem:[#allocation2 + $0x40] sm:$0xff] 0.0
  %70 = vst [vmem:[#allocation3 + $0x40] sm:$0xff] 0.0
  %71 = vst [vmem:[#allocation4 + $0x40] sm:$0xff] 0.0
  %72 = vst [vmem:[#allocation4 + $0x88] sm:$0xff] 0.0
  %73 = vst [vmem:[#allocation5 + $0x40] sm:$0xff] 0.0
  %74 = vst [vmem:[#allocation5 + $0x88] sm:$0xff] 0.0
  %v75 = vld [vmem:[%s1] sm:$0xff]
  %v76 = vld [vmem:[%s1 + $0x8] sm:$0xff]
  %v77 = vld [vmem:[%s1 + $0x10] sm:$0xff]
  %v78 = vld [vmem:[%s1 + $0x18] sm:$0xf]
  %v79 = vld [vmem:[%s0] sm:$0xff]
  %81 = vset.pattern.permute.xlu0 0
  %82 = vperm.xlu0 %81, %v75
  %v83 = vpop.permute.xlu0 %82
  %86 = vset.pattern.permute.xlu0 0
  %87 = vperm.xlu0 %86, %v76
  %v88 = vpop.permute.xlu0 %87
  %91 = vset.pattern.permute.xlu0 0
  %92 = vperm.xlu0 %91, %v77
  %v93 = vpop.permute.xlu0 %92
  %96 = vset.pattern.permute.xlu0 0
  %97 = vperm.xlu0 %96, %v78
  %v98 = vpop.permute.xlu0 %97
  %v101 = vlaneseq
  %v102 = vshrl.u32 %v101, 7
  %v103 = vsub.s32 0, %v102
  %v104 = vrot.slane %v79, %v103
  %v105 = vlaneseq
  %v106 = vshrl.u32 %v105, 7
  %v107 = vsub.s32 1, %v106
  %v108 = vrot.slane %v79, %v107
  %v109 = vlaneseq
  %v110 = vshrl.u32 %v109, 7
  %v111 = vsub.s32 2, %v110
  %v112 = vrot.slane %v79, %v111
  %v113 = vlaneseq
  %v114 = vshrl.u32 %v113, 7
  %v115 = vsub.s32 3, %v114
  %v116 = vrot.slane %v79, %v115
  %v117 = vlaneseq
  %v118 = vshrl.u32 %v117, 7
  %v119 = vsub.s32 4, %v118
  %v120 = vrot.slane %v79, %v119
  %v121 = vlaneseq
  %v122 = vshrl.u32 %v121, 7
  %v123 = vsub.s32 5, %v122
  %v124 = vrot.slane %v79, %v123
  %v125 = vlaneseq
  %v126 = vshrl.u32 %v125, 7
  %v127 = vsub.s32 6, %v126
  %v128 = vrot.slane %v79, %v127
  %v129 = vlaneseq
  %v130 = vshrl.u32 %v129, 7
  %v131 = vsub.s32 7, %v130
  %v132 = vrot.slane %v79, %v131
  %v141 = vmul.f32 %v83, %v104
  %v142 = vmul.f32 %v83, %v108
  %v143 = vmul.f32 %v83, %v112
  %v144 = vmul.f32 %v83, %v116
  %v145 = vmul.f32 %v83, %v120
  %v146 = vmul.f32 %v83, %v124
  %v147 = vmul.f32 %v83, %v128
  %v148 = vmul.f32 %v83, %v132
  %v149 = vmul.f32 %v88, %v104
  %v150 = vmul.f32 %v88, %v108
  %v151 = vmul.f32 %v88, %v112
  %v152 = vmul.f32 %v88, %v116
  %v153 = vmul.f32 %v88, %v120
  %v154 = vmul.f32 %v88, %v124
  %v155 = vmul.f32 %v88, %v128
  %v156 = vmul.f32 %v88, %v132
  %v157 = vmul.f32 %v93, %v104
  %v158 = vmul.f32 %v93, %v108
  %v159 = vmul.f32 %v93, %v112
  %v160 = vmul.f32 %v93, %v116
  %v161 = vmul.f32 %v93, %v120
  %v162 = vmul.f32 %v93, %v124
  %v163 = vmul.f32 %v93, %v128
  %v164 = vmul.f32 %v93, %v132
  %v165 = vmul.f32 %v98, %v104
  %v166 = vmul.f32 %v98, %v108
  %v167 = vmul.f32 %v98, %v112
  %v168 = vmul.f32 %v98, %v116
  %v169 = vmul.f32 %v98, %v120
  %v170 = vmul.f32 %v98, %v124
  %v171 = vmul.f32 %v98, %v128
  %v172 = vmul.f32 %v98, %v132
  %v173 = vld [vmem:[%s2] sm:$0xff]
  %v174 = vld [vmem:[%s2 + $0x8] sm:$0xff]
  %v175 = vld [vmem:[%s2 + $0x10] sm:$0xff]
  %v176 = vld [vmem:[%s2 + $0x18] sm:$0xf]
  %178 = vset.pattern.permute.xlu0 0
  %179 = vperm.xlu0 %178, %v173
  %v180 = vpop.permute.xlu0 %179
  %183 = vset.pattern.permute.xlu0 0
  %184 = vperm.xlu0 %183, %v174
  %v185 = vpop.permute.xlu0 %184
  %188 = vset.pattern.permute.xlu0 0
  %189 = vperm.xlu0 %188, %v175
  %v190 = vpop.permute.xlu0 %189
  %193 = vset.pattern.permute.xlu0 0
  %194 = vperm.xlu0 %193, %v176
  %v195 = vpop.permute.xlu0 %194
  %v197 = vadd.f32 %v141, %v180
  %v198 = vadd.f32 %v142, %v180
  %v199 = vadd.f32 %v143, %v180
  %v200 = vadd.f32 %v144, %v180
  %v201 = vadd.f32 %v145, %v180
  %v202 = vadd.f32 %v146, %v180
  %v203 = vadd.f32 %v147, %v180
  %v204 = vadd.f32 %v148, %v180
  %v205 = vadd.f32 %v149, %v185
  %v206 = vadd.f32 %v150, %v185
  %v207 = vadd.f32 %v151, %v185
  %v208 = vadd.f32 %v152, %v185
  %v209 = vadd.f32 %v153, %v185
  %v210 = vadd.f32 %v154, %v185
  %v211 = vadd.f32 %v155, %v185
  %v212 = vadd.f32 %v156, %v185
  %v213 = vadd.f32 %v157, %v190
  %v214 = vadd.f32 %v158, %v190
  %v215 = vadd.f32 %v159, %v190
  %v216 = vadd.f32 %v160, %v190
  %v217 = vadd.f32 %v161, %v190
  %v218 = vadd.f32 %v162, %v190
  %v219 = vadd.f32 %v163, %v190
  %v220 = vadd.f32 %v164, %v190
  %v221 = vadd.f32 %v165, %v195
  %v222 = vadd.f32 %v166, %v195
  %v223 = vadd.f32 %v167, %v195
  %v224 = vadd.f32 %v168, %v195
  %v225 = vadd.f32 %v169, %v195
  %v226 = vadd.f32 %v170, %v195
  %v227 = vadd.f32 %v171, %v195
  %v228 = vadd.f32 %v172, %v195
  %v229 = vmul.f32 %v197, 0.5
  %v230 = vmul.f32 %v198, 0.5
  %v231 = vmul.f32 %v199, 0.5
  %v232 = vmul.f32 %v200, 0.5
  %v233 = vmul.f32 %v201, 0.5
  %v234 = vmul.f32 %v202, 0.5
  %v235 = vmul.f32 %v203, 0.5
  %v236 = vmul.f32 %v204, 0.5
  %v237 = vmul.f32 %v205, 0.5
  %v238 = vmul.f32 %v206, 0.5
  %v239 = vmul.f32 %v207, 0.5
  %v240 = vmul.f32 %v208, 0.5
  %v241 = vmul.f32 %v209, 0.5
  %v242 = vmul.f32 %v210, 0.5
  %v243 = vmul.f32 %v211, 0.5
  %v244 = vmul.f32 %v212, 0.5
  %v245 = vmul.f32 %v213, 0.5
  %v246 = vmul.f32 %v214, 0.5
  %v247 = vmul.f32 %v215, 0.5
  %v248 = vmul.f32 %v216, 0.5
  %v249 = vmul.f32 %v217, 0.5
  %v250 = vmul.f32 %v218, 0.5
  %v251 = vmul.f32 %v219, 0.5
  %v252 = vmul.f32 %v220, 0.5
  %v253 = vmul.f32 %v221, 0.5
  %v254 = vmul.f32 %v222, 0.5
  %v255 = vmul.f32 %v223, 0.5
  %v256 = vmul.f32 %v224, 0.5
  %v257 = vmul.f32 %v225, 0.5
  %v258 = vmul.f32 %v226, 0.5
  %v259 = vmul.f32 %v227, 0.5
  %v260 = vmul.f32 %v228, 0.5
  %v261 = vmul.f32 %v197, 0.70710677
  %v262 = vmul.f32 %v198, 0.70710677
  %v263 = vmul.f32 %v199, 0.70710677
  %v264 = vmul.f32 %v200, 0.70710677
  %v265 = vmul.f32 %v201, 0.70710677
  %v266 = vmul.f32 %v202, 0.70710677
  %v267 = vmul.f32 %v203, 0.70710677
  %v268 = vmul.f32 %v204, 0.70710677
  %v269 = vmul.f32 %v205, 0.70710677
  %v270 = vmul.f32 %v206, 0.70710677
  %v271 = vmul.f32 %v207, 0.70710677
  %v272 = vmul.f32 %v208, 0.70710677
  %v273 = vmul.f32 %v209, 0.70710677
  %v274 = vmul.f32 %v210, 0.70710677
  %v275 = vmul.f32 %v211, 0.70710677
  %v276 = vmul.f32 %v212, 0.70710677
  %v277 = vmul.f32 %v213, 0.70710677
  %v278 = vmul.f32 %v214, 0.70710677
  %v279 = vmul.f32 %v215, 0.70710677
  %v280 = vmul.f32 %v216, 0.70710677
  %v281 = vmul.f32 %v217, 0.70710677
  %v282 = vmul.f32 %v218, 0.70710677
  %v283 = vmul.f32 %v219, 0.70710677
  %v284 = vmul.f32 %v220, 0.70710677
  %v285 = vmul.f32 %v221, 0.70710677
  %v286 = vmul.f32 %v222, 0.70710677
  %v287 = vmul.f32 %v223, 0.70710677
  %v288 = vmul.f32 %v224, 0.70710677
  %v289 = vmul.f32 %v225, 0.70710677
  %v290 = vmul.f32 %v226, 0.70710677
  %v291 = vmul.f32 %v227, 0.70710677
  %v292 = vmul.f32 %v228, 0.70710677
  %v293 = verf.f32.pop %v261
  %v294 = verf.f32.pop %v262
  %v295 = verf.f32.pop %v263
  %v296 = verf.f32.pop %v264
  %v297 = verf.f32.pop %v265
  %v298 = verf.f32.pop %v266
  %v299 = verf.f32.pop %v267
  %v300 = verf.f32.pop %v268
  %v301 = verf.f32.pop %v269
  %v302 = verf.f32.pop %v270
  %v303 = verf.f32.pop %v271
  %v304 = verf.f32.pop %v272
  %v305 = verf.f32.pop %v273
  %v306 = verf.f32.pop %v274
  %v307 = verf.f32.pop %v275
  %v308 = verf.f32.pop %v276
  %v309 = verf.f32.pop %v277
  %v310 = verf.f32.pop %v278
  %v311 = verf.f32.pop %v279
  %v312 = verf.f32.pop %v280
  %v313 = verf.f32.pop %v281
  %v314 = verf.f32.pop %v282
  %v315 = verf.f32.pop %v283
  %v316 = verf.f32.pop %v284
  %v317 = verf.f32.pop %v285
  %v318 = verf.f32.pop %v286
  %v319 = verf.f32.pop %v287
  %v320 = verf.f32.pop %v288
  %v321 = verf.f32.pop %v289
  %v322 = verf.f32.pop %v290
  %v323 = verf.f32.pop %v291
  %v324 = verf.f32.pop %v292
  %v325 = vadd.f32 %v293, 1.0
  %v326 = vadd.f32 %v294, 1.0
  %v327 = vadd.f32 %v295, 1.0
  %v328 = vadd.f32 %v296, 1.0
  %v329 = vadd.f32 %v297, 1.0
  %v330 = vadd.f32 %v298, 1.0
  %v331 = vadd.f32 %v299, 1.0
  %v332 = vadd.f32 %v300, 1.0
  %v333 = vadd.f32 %v301, 1.0
  %v334 = vadd.f32 %v302, 1.0
  %v335 = vadd.f32 %v303, 1.0
  %v336 = vadd.f32 %v304, 1.0
  %v337 = vadd.f32 %v305, 1.0
  %v338 = vadd.f32 %v306, 1.0
  %v339 = vadd.f32 %v307, 1.0
  %v340 = vadd.f32 %v308, 1.0
  %v341 = vadd.f32 %v309, 1.0
  %v342 = vadd.f32 %v310, 1.0
  %v343 = vadd.f32 %v311, 1.0
  %v344 = vadd.f32 %v312, 1.0
  %v345 = vadd.f32 %v313, 1.0
  %v346 = vadd.f32 %v314, 1.0
  %v347 = vadd.f32 %v315, 1.0
  %v348 = vadd.f32 %v316, 1.0
  %v349 = vadd.f32 %v317, 1.0
  %v350 = vadd.f32 %v318, 1.0
  %v351 = vadd.f32 %v319, 1.0
  %v352 = vadd.f32 %v320, 1.0
  %v353 = vadd.f32 %v321, 1.0
  %v354 = vadd.f32 %v322, 1.0
  %v355 = vadd.f32 %v323, 1.0
  %v356 = vadd.f32 %v324, 1.0
  %v357 = vmul.f32 %v229, %v325
  %v358 = vmul.f32 %v230, %v326
  %v359 = vmul.f32 %v231, %v327
  %v360 = vmul.f32 %v232, %v328
  %v361 = vmul.f32 %v233, %v329
  %v362 = vmul.f32 %v234, %v330
  %v363 = vmul.f32 %v235, %v331
  %v364 = vmul.f32 %v236, %v332
  %v365 = vmul.f32 %v237, %v333
  %v366 = vmul.f32 %v238, %v334
  %v367 = vmul.f32 %v239, %v335
  %v368 = vmul.f32 %v240, %v336
  %v369 = vmul.f32 %v241, %v337
  %v370 = vmul.f32 %v242, %v338
  %v371 = vmul.f32 %v243, %v339
  %v372 = vmul.f32 %v244, %v340
  %v373 = vmul.f32 %v245, %v341
  %v374 = vmul.f32 %v246, %v342
  %v375 = vmul.f32 %v247, %v343
  %v376 = vmul.f32 %v248, %v344
  %v377 = vmul.f32 %v249, %v345
  %v378 = vmul.f32 %v250, %v346
  %v379 = vmul.f32 %v251, %v347
  %v380 = vmul.f32 %v252, %v348
  %v381 = vmul.f32 %v253, %v349
  %v382 = vmul.f32 %v254, %v350
  %v383 = vmul.f32 %v255, %v351
  %v384 = vmul.f32 %v256, %v352
  %v385 = vmul.f32 %v257, %v353
  %v386 = vmul.f32 %v258, %v354
  %v387 = vmul.f32 %v259, %v355
  %v388 = vmul.f32 %v260, %v356
  %v389 = vld [vmem:[%s3] sm:$0xff]
  %v390 = vld [vmem:[%s4] sm:$0xff]
  %392 = vset.pattern.permute.xlu0 0
  %393 = vperm.xlu0 %392, %v390
  %v394 = vpop.permute.xlu0 %393
  %vm396 = vcmask 228352
  %v398 = vsel %vm396, %v389, 0
  %vm400 = vcmask 1043456
  %v402 = vsel %vm400, %v381, 0
  %v405 = vsel %vm400, %v382, 0
  %v408 = vsel %vm400, %v383, 0
  %v411 = vsel %vm400, %v384, 0
  %v414 = vsel %vm400, %v385, 0
  %v417 = vsel %vm400, %v386, 0
  %v420 = vsel %vm400, %v387, 0
  %v423 = vsel %vm400, %v388, 0
  %425 = vmatprep.subr.mxu0 %v358
  %426 = vmatpush1.msra.mxu0 %v357
  %427 = vmatprep.subr.mxu0 %v366
  %428 = vmatpush1.msra.mxu0 %v365
  %429 = vmatprep.subr.mxu0 %v374
  %430 = vmatpush1.msra.mxu0 %v373
  %431 = vmatprep.subr.mxu0 %v405
  %432 = vmatpush1.msra.mxu0 %v402
  %433 = vmatprep.subr.mxu0 0.0
  %434 = vmatpush1.msra.mxu0 0.0
  %435 = vmatprep.subr.mxu0 0.0
  %436 = vmatpush1.msra.mxu0 0.0
  %437 = vmatprep.subr.mxu0 0.0
  %438 = vmatpush1.msra.mxu0 0.0
  %439 = vmatprep.subr.mxu0 0.0
  %440 = vmatpush1.msra.mxu0 0.0
  %441 = vmatprep.subr.mxu0 0.0
  %442 = vmatpush1.msra.mxu0 0.0
  %443 = vmatprep.subr.mxu0 0.0
  %444 = vmatpush1.msra.mxu0 0.0
  %445 = vmatprep.subr.mxu0 0.0
  %446 = vmatpush1.msra.mxu0 0.0
  %447 = vmatprep.subr.mxu0 0.0
  %448 = vmatpush1.msra.mxu0 0.0
  %449 = vmatprep.subr.mxu0 0.0
  %450 = vmatpush1.msra.mxu0 0.0
  %451 = vmatprep.subr.mxu0 0.0
  %452 = vmatpush1.msra.mxu0 0.0
  %453 = vmatprep.subr.mxu0 0.0
  %454 = vmatpush1.msra.mxu0 0.0
  %455 = vmatprep.subr.mxu0 0.0
  %456 = vmatpush1.msra.mxu0 0.0
  %457 = vmatprep.subr.mxu0 0.0
  %458 = vmatpush1.msra.mxu0 0.0
  %459 = vmatprep.subr.mxu0 0.0
  %460 = vmatpush1.msra.mxu0 0.0
  %461 = vmatprep.subr.mxu0 0.0
  %462 = vmatpush1.msra.mxu0 0.0
  %463 = vmatprep.subr.mxu0 0.0
  %464 = vmatpush1.msra.mxu0 0.0
  %465 = vmatprep.subr.mxu0 0.0
  %466 = vmatpush1.msra.mxu0 0.0
  %467 = vmatprep.subr.mxu0 0.0
  %468 = vmatpush1.msra.mxu0 0.0
  %469 = vmatprep.subr.mxu0 0.0
  %470 = vmatpush1.msra.mxu0 0.0
  %471 = vmatprep.subr.mxu0 0.0
  %472 = vmatpush1.msra.mxu0 0.0
  %473 = vmatprep.subr.mxu0 0.0
  %474 = vmatpush1.msra.mxu0 0.0
  %475 = vmatprep.subr.mxu0 0.0
  %476 = vmatpush1.msra.mxu0 0.0
  %477 = vmatprep.subr.mxu0 0.0
  %478 = vmatpush1.msra.mxu0 0.0
  %479 = vmatprep.subr.mxu0 0.0
  %480 = vmatpush1.msra.mxu0 0.0
  %481 = vmatprep.subr.mxu0 0.0
  %482 = vmatpush1.msra.mxu0 0.0
  %483 = vmatprep.subr.mxu0 0.0
  %484 = vmatpush1.msra.mxu0 0.0
  %485 = vmatprep.subr.mxu0 0.0
  %486 = vmatpush1.msra.mxu0 0.0
  %487 = vmatprep.subr.mxu0 0.0
  %488 = vmatpush1.msra.mxu0 0.0
  %489 = vmatprep.mubr.f32.mxu0 0.0
  %490 = vmatmul.mubr.f32.gmra.mrb[0].mxu0 %v398
  %v491 = vpop.f32.mrb[0].mxu0
  %v492 = vadd.f32 %v394, %v491
  %v493 = vpop.f32.mrb[0].mxu0
  %v494 = vadd.f32 %v394, %v493
  %495 = vdwg.mxu0
  %496 = vmatprep.subr.mxu0 %v360
  %497 = vmatpush1.msra.mxu0 %v359
  %498 = vmatprep.subr.mxu0 %v368
  %499 = vmatpush1.msra.mxu0 %v367
  %500 = vmatprep.subr.mxu0 %v376
  %501 = vmatpush1.msra.mxu0 %v375
  %502 = vmatprep.subr.mxu0 %v411
  %503 = vmatpush1.msra.mxu0 %v408
  %504 = vmatprep.subr.mxu0 0.0
  %505 = vmatpush1.msra.mxu0 0.0
  %506 = vmatprep.subr.mxu0 0.0
  %507 = vmatpush1.msra.mxu0 0.0
  %508 = vmatprep.subr.mxu0 0.0
  %509 = vmatpush1.msra.mxu0 0.0
  %510 = vmatprep.subr.mxu0 0.0
  %511 = vmatpush1.msra.mxu0 0.0
  %512 = vmatprep.subr.mxu0 0.0
  %513 = vmatpush1.msra.mxu0 0.0
  %514 = vmatprep.subr.mxu0 0.0
  %515 = vmatpush1.msra.mxu0 0.0
  %516 = vmatprep.subr.mxu0 0.0
  %517 = vmatpush1.msra.mxu0 0.0
  %518 = vmatprep.subr.mxu0 0.0
  %519 = vmatpush1.msra.mxu0 0.0
  %520 = vmatprep.subr.mxu0 0.0
  %521 = vmatpush1.msra.mxu0 0.0
  %522 = vmatprep.subr.mxu0 0.0
  %523 = vmatpush1.msra.mxu0 0.0
  %524 = vmatprep.subr.mxu0 0.0
  %525 = vmatpush1.msra.mxu0 0.0
  %526 = vmatprep.subr.mxu0 0.0
  %527 = vmatpush1.msra.mxu0 0.0
  %528 = vmatprep.subr.mxu0 0.0
  %529 = vmatpush1.msra.mxu0 0.0
  %530 = vmatprep.subr.mxu0 0.0
  %531 = vmatpush1.msra.mxu0 0.0
  %532 = vmatprep.subr.mxu0 0.0
  %533 = vmatpush1.msra.mxu0 0.0
  %534 = vmatprep.subr.mxu0 0.0
  %535 = vmatpush1.msra.mxu0 0.0
  %536 = vmatprep.subr.mxu0 0.0
  %537 = vmatpush1.msra.mxu0 0.0
  %538 = vmatprep.subr.mxu0 0.0
  %539 = vmatpush1.msra.mxu0 0.0
  %540 = vmatprep.subr.mxu0 0.0
  %541 = vmatpush1.msra.mxu0 0.0
  %542 = vmatprep.subr.mxu0 0.0
  %543 = vmatpush1.msra.mxu0 0.0
  %544 = vmatprep.subr.mxu0 0.0
  %545 = vmatpush1.msra.mxu0 0.0
  %546 = vmatprep.subr.mxu0 0.0
  %547 = vmatpush1.msra.mxu0 0.0
  %548 = vmatprep.subr.mxu0 0.0
  %549 = vmatpush1.msra.mxu0 0.0
  %550 = vmatprep.subr.mxu0 0.0
  %551 = vmatpush1.msra.mxu0 0.0
  %552 = vmatprep.subr.mxu0 0.0
  %553 = vmatpush1.msra.mxu0 0.0
  %554 = vmatprep.subr.mxu0 0.0
  %555 = vmatpush1.msra.mxu0 0.0
  %556 = vmatprep.subr.mxu0 0.0
  %557 = vmatpush1.msra.mxu0 0.0
  %558 = vmatprep.subr.mxu0 0.0
  %559 = vmatpush1.msra.mxu0 0.0
  %560 = vmatprep.mubr.f32.mxu0 0.0
  %561 = vmatmul.mubr.f32.gmra.mrb[0].mxu0 %v398
  %v562 = vpop.f32.mrb[0].mxu0
  %v563 = vadd.f32 %v394, %v562
  %v564 = vpop.f32.mrb[0].mxu0
  %v565 = vadd.f32 %v394, %v564
  %566 = vdwg.mxu0
  %567 = vmatprep.subr.mxu0 %v362
  %568 = vmatpush1.msra.mxu0 %v361
  %569 = vmatprep.subr.mxu0 %v370
  %570 = vmatpush1.msra.mxu0 %v369
  %571 = vmatprep.subr.mxu0 %v378
  %572 = vmatpush1.msra.mxu0 %v377
  %573 = vmatprep.subr.mxu0 %v417
  %574 = vmatpush1.msra.mxu0 %v414
  %575 = vmatprep.subr.mxu0 0.0
  %576 = vmatpush1.msra.mxu0 0.0
  %577 = vmatprep.subr.mxu0 0.0
  %578 = vmatpush1.msra.mxu0 0.0
  %579 = vmatprep.subr.mxu0 0.0
  %580 = vmatpush1.msra.mxu0 0.0
  %581 = vmatprep.subr.mxu0 0.0
  %582 = vmatpush1.msra.mxu0 0.0
  %583 = vmatprep.subr.mxu0 0.0
  %584 = vmatpush1.msra.mxu0 0.0
  %585 = vmatprep.subr.mxu0 0.0
  %586 = vmatpush1.msra.mxu0 0.0
  %587 = vmatprep.subr.mxu0 0.0
  %588 = vmatpush1.msra.mxu0 0.0
  %589 = vmatprep.subr.mxu0 0.0
  %590 = vmatpush1.msra.mxu0 0.0
  %591 = vmatprep.subr.mxu0 0.0
  %592 = vmatpush1.msra.mxu0 0.0
  %593 = vmatprep.subr.mxu0 0.0
  %594 = vmatpush1.msra.mxu0 0.0
  %595 = vmatprep.subr.mxu0 0.0
  %596 = vmatpush1.msra.mxu0 0.0
  %597 = vmatprep.subr.mxu0 0.0
  %598 = vmatpush1.msra.mxu0 0.0
  %599 = vmatprep.subr.mxu0 0.0
  %600 = vmatpush1.msra.mxu0 0.0
  %601 = vmatprep.subr.mxu0 0.0
  %602 = vmatpush1.msra.mxu0 0.0
  %603 = vmatprep.subr.mxu0 0.0
  %604 = vmatpush1.msra.mxu0 0.0
  %605 = vmatprep.subr.mxu0 0.0
  %606 = vmatpush1.msra.mxu0 0.0
  %607 = vmatprep.subr.mxu0 0.0
  %608 = vmatpush1.msra.mxu0 0.0
  %609 = vmatprep.subr.mxu0 0.0
  %610 = vmatpush1.msra.mxu0 0.0
  %611 = vmatprep.subr.mxu0 0.0
  %612 = vmatpush1.msra.mxu0 0.0
  %613 = vmatprep.subr.mxu0 0.0
  %614 = vmatpush1.msra.mxu0 0.0
  %615 = vmatprep.subr.mxu0 0.0
  %616 = vmatpush1.msra.mxu0 0.0
  %617 = vmatprep.subr.mxu0 0.0
  %618 = vmatpush1.msra.mxu0 0.0
  %619 = vmatprep.subr.mxu0 0.0
  %620 = vmatpush1.msra.mxu0 0.0
  %621 = vmatprep.subr.mxu0 0.0
  %622 = vmatpush1.msra.mxu0 0.0
  %623 = vmatprep.subr.mxu0 0.0
  %624 = vmatpush1.msra.mxu0 0.0
  %625 = vmatprep.subr.mxu0 0.0
  %626 = vmatpush1.msra.mxu0 0.0
  %627 = vmatprep.subr.mxu0 0.0
  %628 = vmatpush1.msra.mxu0 0.0
  %629 = vmatprep.subr.mxu0 0.0
  %630 = vmatpush1.msra.mxu0 0.0
  %631 = vmatprep.mubr.f32.mxu0 0.0
  %632 = vmatmul.mubr.f32.gmra.mrb[0].mxu0 %v398
  %v633 = vpop.f32.mrb[0].mxu0
  %v634 = vadd.f32 %v394, %v633
  %v635 = vpop.f32.mrb[0].mxu0
  %v636 = vadd.f32 %v394, %v635
  %637 = vdwg.mxu0
  %638 = vmatprep.subr.mxu0 %v364
  %639 = vmatpush1.msra.mxu0 %v363
  %640 = vmatprep.subr.mxu0 %v372
  %641 = vmatpush1.msra.mxu0 %v371
  %642 = vmatprep.subr.mxu0 %v380
  %643 = vmatpush1.msra.mxu0 %v379
  %644 = vmatprep.subr.mxu0 %v423
  %645 = vmatpush1.msra.mxu0 %v420
  %646 = vmatprep.subr.mxu0 0.0
  %647 = vmatpush1.msra.mxu0 0.0
  %648 = vmatprep.subr.mxu0 0.0
  %649 = vmatpush1.msra.mxu0 0.0
  %650 = vmatprep.subr.mxu0 0.0
  %651 = vmatpush1.msra.mxu0 0.0
  %652 = vmatprep.subr.mxu0 0.0
  %653 = vmatpush1.msra.mxu0 0.0
  %654 = vmatprep.subr.mxu0 0.0
  %655 = vmatpush1.msra.mxu0 0.0
  %656 = vmatprep.subr.mxu0 0.0
  %657 = vmatpush1.msra.mxu0 0.0
  %658 = vmatprep.subr.mxu0 0.0
  %659 = vmatpush1.msra.mxu0 0.0
  %660 = vmatprep.subr.mxu0 0.0
  %661 = vmatpush1.msra.mxu0 0.0
  %662 = vmatprep.subr.mxu0 0.0
  %663 = vmatpush1.msra.mxu0 0.0
  %664 = vmatprep.subr.mxu0 0.0
  %665 = vmatpush1.msra.mxu0 0.0
  %666 = vmatprep.subr.mxu0 0.0
  %667 = vmatpush1.msra.mxu0 0.0
  %668 = vmatprep.subr.mxu0 0.0
  %669 = vmatpush1.msra.mxu0 0.0
  %670 = vmatprep.subr.mxu0 0.0
  %671 = vmatpush1.msra.mxu0 0.0
  %672 = vmatprep.subr.mxu0 0.0
  %673 = vmatpush1.msra.mxu0 0.0
  %674 = vmatprep.subr.mxu0 0.0
  %675 = vmatpush1.msra.mxu0 0.0
  %676 = vmatprep.subr.mxu0 0.0
  %677 = vmatpush1.msra.mxu0 0.0
  %678 = vmatprep.subr.mxu0 0.0
  %679 = vmatpush1.msra.mxu0 0.0
  %680 = vmatprep.subr.mxu0 0.0
  %681 = vmatpush1.msra.mxu0 0.0
  %682 = vmatprep.subr.mxu0 0.0
  %683 = vmatpush1.msra.mxu0 0.0
  %684 = vmatprep.subr.mxu0 0.0
  %685 = vmatpush1.msra.mxu0 0.0
  %686 = vmatprep.subr.mxu0 0.0
  %687 = vmatpush1.msra.mxu0 0.0
  %688 = vmatprep.subr.mxu0 0.0
  %689 = vmatpush1.msra.mxu0 0.0
  %690 = vmatprep.subr.mxu0 0.0
  %691 = vmatpush1.msra.mxu0 0.0
  %692 = vmatprep.subr.mxu0 0.0
  %693 = vmatpush1.msra.mxu0 0.0
  %694 = vmatprep.subr.mxu0 0.0
  %695 = vmatpush1.msra.mxu0 0.0
  %696 = vmatprep.subr.mxu0 0.0
  %697 = vmatpush1.msra.mxu0 0.0
  %698 = vmatprep.subr.mxu0 0.0
  %699 = vmatpush1.msra.mxu0 0.0
  %700 = vmatprep.subr.mxu0 0.0
  %701 = vmatpush1.msra.mxu0 0.0
  %702 = vmatprep.mubr.f32.mxu0 0.0
  %703 = vmatmul.mubr.f32.gmra.mrb[0].mxu0 %v398
  %v704 = vpop.f32.mrb[0].mxu0
  %v705 = vadd.f32 %v394, %v704
  %v706 = vpop.f32.mrb[0].mxu0
  %v707 = vadd.f32 %v394, %v706
  %708 = vdwg.mxu0
  %v709 = vmul.f32 %v492, 0.5
  %v710 = vmul.f32 %v494, 0.5
  %v711 = vmul.f32 %v563, 0.5
  %v712 = vmul.f32 %v565, 0.5
  %v713 = vmul.f32 %v634, 0.5
  %v714 = vmul.f32 %v636, 0.5
  %v715 = vmul.f32 %v705, 0.5
  %v716 = vmul.f32 %v707, 0.5
  %v717 = vmul.f32 %v492, 0.70710677
  %v718 = vmul.f32 %v494, 0.70710677
  %v719 = vmul.f32 %v563, 0.70710677
  %v720 = vmul.f32 %v565, 0.70710677
  %v721 = vmul.f32 %v634, 0.70710677
  %v722 = vmul.f32 %v636, 0.70710677
  %v723 = vmul.f32 %v705, 0.70710677
  %v724 = vmul.f32 %v707, 0.70710677
  %v725 = verf.f32.pop %v717
  %v726 = verf.f32.pop %v718
  %v727 = verf.f32.pop %v719
  %v728 = verf.f32.pop %v720
  %v729 = verf.f32.pop %v721
  %v730 = verf.f32.pop %v722
  %v731 = verf.f32.pop %v723
  %v732 = verf.f32.pop %v724
  %v733 = vadd.f32 %v725, 1.0
  %v734 = vadd.f32 %v726, 1.0
  %v735 = vadd.f32 %v727, 1.0
  %v736 = vadd.f32 %v728, 1.0
  %v737 = vadd.f32 %v729, 1.0
  %v738 = vadd.f32 %v730, 1.0
  %v739 = vadd.f32 %v731, 1.0
  %v740 = vadd.f32 %v732, 1.0
  %v741 = vmul.f32 %v709, %v733
  %v742 = vmul.f32 %v710, %v734
  %v743 = vmul.f32 %v711, %v735
  %v744 = vmul.f32 %v712, %v736
  %v745 = vmul.f32 %v713, %v737
  %v746 = vmul.f32 %v714, %v738
  %v747 = vmul.f32 %v715, %v739
  %v748 = vmul.f32 %v716, %v740
  %749 = vst [vmem:[#allocation2] sm:$0xff] %v741
  %750 = vst [vmem:[#allocation2 + $0x8] sm:$0xff] %v742
  %751 = vst [vmem:[#allocation2 + $0x10] sm:$0xff] %v743
  %752 = vst [vmem:[#allocation2 + $0x18] sm:$0xff] %v744
  %753 = vst [vmem:[#allocation2 + $0x20] sm:$0xff] %v745
  %754 = vst [vmem:[#allocation2 + $0x28] sm:$0xff] %v746
  %755 = vst [vmem:[#allocation2 + $0x30] sm:$0xff] %v747
  %756 = vst [vmem:[#allocation2 + $0x38] sm:$0xff] %v748
  %v757 = vld [vmem:[#allocation2] sm:$0xff]
  %v758 = vld [vmem:[#allocation2 + $0x8] sm:$0xff]
  %v759 = vld [vmem:[#allocation2 + $0x10] sm:$0xff]
  %v760 = vld [vmem:[#allocation2 + $0x18] sm:$0xff]
  %v761 = vld [vmem:[#allocation2 + $0x20] sm:$0xff]
  %v762 = vld [vmem:[#allocation2 + $0x28] sm:$0xff]
  %v763 = vld [vmem:[#allocation2 + $0x30] sm:$0xff]
  %v764 = vld [vmem:[#allocation2 + $0x38] sm:$0xff]
  %v765 = vld [vmem:[#allocation2] sm:$0xff]
  %v766 = vld [vmem:[#allocation2 + $0x8] sm:$0xff]
  %v767 = vld [vmem:[#allocation2 + $0x10] sm:$0xff]
  %v768 = vld [vmem:[#allocation2 + $0x18] sm:$0xff]
  %v769 = vld [vmem:[#allocation2 + $0x20] sm:$0xff]
  %v770 = vld [vmem:[#allocation2 + $0x28] sm:$0xff]
  %v771 = vld [vmem:[#allocation2 + $0x30] sm:$0xff]
  %v772 = vld [vmem:[#allocation2 + $0x38] sm:$0xff]
  %v773 = vld [vmem:[#allocation2 + $0x40] sm:$0xff]
  %783 = vrot.lane.b32.xlu0 %v765, 127
  %v784 = vpop.permute.xlu0 %783
  %785 = vrot.lane.b32.xlu0 %v766, 127
  %v786 = vpop.permute.xlu0 %785
  %787 = vrot.lane.b32.xlu0 %v767, 127
  %v788 = vpop.permute.xlu0 %787
  %789 = vrot.lane.b32.xlu0 %v768, 127
  %v790 = vpop.permute.xlu0 %789
  %791 = vrot.lane.b32.xlu0 %v769, 127
  %v792 = vpop.permute.xlu0 %791
  %793 = vrot.lane.b32.xlu0 %v770, 127
  %v794 = vpop.permute.xlu0 %793
  %795 = vrot.lane.b32.xlu0 %v771, 127
  %v796 = vpop.permute.xlu0 %795
  %797 = vrot.lane.b32.xlu0 %v772, 127
  %v798 = vpop.permute.xlu0 %797
  %799 = vrot.lane.b32.xlu0 %v773, 127
  %v800 = vpop.permute.xlu0 %799
  %vm801 = vcmask 1039360
  %v802 = vsel %vm801, %v784, %v786
  %v803 = vsel %vm801, %v786, %v788
  %v804 = vsel %vm801, %v788, %v790
  %v805 = vsel %vm801, %v790, %v792
  %v806 = vsel %vm801, %v792, %v794
  %v807 = vsel %vm801, %v794, %v796
  %v808 = vsel %vm801, %v796, %v798
  %v809 = vsel %vm801, %v798, %v800
  %818 = vrot.lane.b32.xlu0 %v765, 96
  %v819 = vpop.permute.xlu0 %818
  %820 = vrot.lane.b32.xlu0 %v766, 96
  %v821 = vpop.permute.xlu0 %820
  %822 = vrot.lane.b32.xlu0 %v767, 96
  %v823 = vpop.permute.xlu0 %822
  %824 = vrot.lane.b32.xlu0 %v768, 96
  %v825 = vpop.permute.xlu0 %824
  %826 = vrot.lane.b32.xlu0 %v769, 96
  %v827 = vpop.permute.xlu0 %826
  %828 = vrot.lane.b32.xlu0 %v770, 96
  %v829 = vpop.permute.xlu0 %828
  %830 = vrot.lane.b32.xlu0 %v771, 96
  %v831 = vpop.permute.xlu0 %830
  %832 = vrot.lane.b32.xlu0 %v772, 96
  %v833 = vpop.permute.xlu0 %832
  %834 = vrot.lane.b32.xlu0 %v773, 96
  %v835 = vpop.permute.xlu0 %834
  %vm836 = vcmask 785408
  %v837 = vsel %vm836, %v819, %v821
  %v838 = vsel %vm836, %v821, %v823
  %v839 = vsel %vm836, %v823, %v825
  %v840 = vsel %vm836, %v825, %v827
  %v841 = vsel %vm836, %v827, %v829
  %v842 = vsel %vm836, %v829, %v831
  %v843 = vsel %vm836, %v831, %v833
  %v844 = vsel %vm836, %v833, %v835
  %853 = vrot.lane.b32.xlu0 %v765, 95
  %v854 = vpop.permute.xlu0 %853
  %855 = vrot.lane.b32.xlu0 %v766, 95
  %v856 = vpop.permute.xlu0 %855
  %857 = vrot.lane.b32.xlu0 %v767, 95
  %v858 = vpop.permute.xlu0 %857
  %859 = vrot.lane.b32.xlu0 %v768, 95
  %v860 = vpop.permute.xlu0 %859
  %861 = vrot.lane.b32.xlu0 %v769, 95
  %v862 = vpop.permute.xlu0 %861
  %863 = vrot.lane.b32.xlu0 %v770, 95
  %v864 = vpop.permute.xlu0 %863
  %865 = vrot.lane.b32.xlu0 %v771, 95
  %v866 = vpop.permute.xlu0 %865
  %867 = vrot.lane.b32.xlu0 %v772, 95
  %v868 = vpop.permute.xlu0 %867
  %869 = vrot.lane.b32.xlu0 %v773, 95
  %v870 = vpop.permute.xlu0 %869
  %vm871 = vcmask 777216
  %v872 = vsel %vm871, %v854, %v856
  %v873 = vsel %vm871, %v856, %v858
  %v874 = vsel %vm871, %v858, %v860
  %v875 = vsel %vm871, %v860, %v862
  %v876 = vsel %vm871, %v862, %v864
  %v877 = vsel %vm871, %v864, %v866
  %v878 = vsel %vm871, %v866, %v868
  %v879 = vsel %vm871, %v868, %v870
  %v888 = vld [vmem:[%s5] sm:$0x3]
  %v889 = vld [vmem:[%s6] sm:$0x3]
  %891 = vset.pattern.permute.xlu0 0
  %892 = vperm.xlu0 %891, %v889
  %v893 = vpop.permute.xlu0 %892
  %vm895 = vcmask 261120
  %v897 = vsel %vm895, %v888, 0
  %899 = vmatprep.subr.mxu0 %v758
  %900 = vmatpush1.msra.mxu0 %v757
  %901 = vmatprep.subr.mxu0 %v803
  %902 = vmatpush1.msra.mxu0 %v802
  %903 = vmatprep.subr.mxu0 %v838
  %904 = vmatpush1.msra.mxu0 %v837
  %905 = vmatprep.subr.mxu0 %v873
  %906 = vmatpush1.msra.mxu0 %v872
  %907 = vmatprep.subr.mxu0 0.0
  %908 = vmatpush1.msra.mxu0 0.0
  %909 = vmatprep.subr.mxu0 0.0
  %910 = vmatpush1.msra.mxu0 0.0
  %911 = vmatprep.subr.mxu0 0.0
  %912 = vmatpush1.msra.mxu0 0.0
  %913 = vmatprep.subr.mxu0 0.0
  %914 = vmatpush1.msra.mxu0 0.0
  %915 = vmatprep.subr.mxu0 0.0
  %916 = vmatpush1.msra.mxu0 0.0
  %917 = vmatprep.subr.mxu0 0.0
  %918 = vmatpush1.msra.mxu0 0.0
  %919 = vmatprep.subr.mxu0 0.0
  %920 = vmatpush1.msra.mxu0 0.0
  %921 = vmatprep.subr.mxu0 0.0
  %922 = vmatpush1.msra.mxu0 0.0
  %923 = vmatprep.subr.mxu0 0.0
  %924 = vmatpush1.msra.mxu0 0.0
  %925 = vmatprep.subr.mxu0 0.0
  %926 = vmatpush1.msra.mxu0 0.0
  %927 = vmatprep.subr.mxu0 0.0
  %928 = vmatpush1.msra.mxu0 0.0
  %929 = vmatprep.subr.mxu0 0.0
  %930 = vmatpush1.msra.mxu0 0.0
  %931 = vmatprep.subr.mxu0 0.0
  %932 = vmatpush1.msra.mxu0 0.0
  %933 = vmatprep.subr.mxu0 0.0
  %934 = vmatpush1.msra.mxu0 0.0
  %935 = vmatprep.subr.mxu0 0.0
  %936 = vmatpush1.msra.mxu0 0.0
  %937 = vmatprep.subr.mxu0 0.0
  %938 = vmatpush1.msra.mxu0 0.0
  %939 = vmatprep.subr.mxu0 0.0
  %940 = vmatpush1.msra.mxu0 0.0
  %941 = vmatprep.subr.mxu0 0.0
  %942 = vmatpush1.msra.mxu0 0.0
  %943 = vmatprep.subr.mxu0 0.0
  %944 = vmatpush1.msra.mxu0 0.0
  %945 = vmatprep.subr.mxu0 0.0
  %946 = vmatpush1.msra.mxu0 0.0
  %947 = vmatprep.subr.mxu0 0.0
  %948 = vmatpush1.msra.mxu0 0.0
  %949 = vmatprep.subr.mxu0 0.0
  %950 = vmatpush1.msra.mxu0 0.0
  %951 = vmatprep.subr.mxu0 0.0
  %952 = vmatpush1.msra.mxu0 0.0
  %953 = vmatprep.subr.mxu0 0.0
  %954 = vmatpush1.msra.mxu0 0.0
  %955 = vmatprep.subr.mxu0 0.0
  %956 = vmatpush1.msra.mxu0 0.0
  %957 = vmatprep.subr.mxu0 0.0
  %958 = vmatpush1.msra.mxu0 0.0
  %959 = vmatprep.subr.mxu0 0.0
  %960 = vmatpush1.msra.mxu0 0.0
  %961 = vmatprep.subr.mxu0 0.0
  %962 = vmatpush1.msra.mxu0 0.0
  %963 = vmatprep.mubr.f32.mxu0 0.0
  %964 = vmatmul.mubr.f32.gmra.mrb[0].mxu0 %v897
  %v965 = vpop.f32.mrb[0].mxu0
  %v966 = vadd.f32 %v893, %v965
  %v967 = vpop.f32.mrb[0].mxu0
  %v968 = vadd.f32 %v893, %v967
  %969 = vdwg.mxu0
  %970 = vmatprep.subr.mxu0 %v760
  %971 = vmatpush1.msra.mxu0 %v759
  %972 = vmatprep.subr.mxu0 %v805
  %973 = vmatpush1.msra.mxu0 %v804
  %974 = vmatprep.subr.mxu0 %v840
  %975 = vmatpush1.msra.mxu0 %v839
  %976 = vmatprep.subr.mxu0 %v875
  %977 = vmatpush1.msra.mxu0 %v874
  %978 = vmatprep.subr.mxu0 0.0
  %979 = vmatpush1.msra.mxu0 0.0
  %980 = vmatprep.subr.mxu0 0.0
  %981 = vmatpush1.msra.mxu0 0.0
  %982 = vmatprep.subr.mxu0 0.0
  %983 = vmatpush1.msra.mxu0 0.0
  %984 = vmatprep.subr.mxu0 0.0
  %985 = vmatpush1.msra.mxu0 0.0
  %986 = vmatprep.subr.mxu0 0.0
  %987 = vmatpush1.msra.mxu0 0.0
  %988 = vmatprep.subr.mxu0 0.0
  %989 = vmatpush1.msra.mxu0 0.0
  %990 = vmatprep.subr.mxu0 0.0
  %991 = vmatpush1.msra.mxu0 0.0
  %992 = vmatprep.subr.mxu0 0.0
  %993 = vmatpush1.msra.mxu0 0.0
  %994 = vmatprep.subr.mxu0 0.0
  %995 = vmatpush1.msra.mxu0 0.0
  %996 = vmatprep.subr.mxu0 0.0
  %997 = vmatpush1.msra.mxu0 0.0
  %998 = vmatprep.subr.mxu0 0.0
  %999 = vmatpush1.msra.mxu0 0.0
  %1000 = vmatprep.subr.mxu0 0.0
  %1001 = vmatpush1.msra.mxu0 0.0
  %1002 = vmatprep.subr.mxu0 0.0
  %1003 = vmatpush1.msra.mxu0 0.0
  %1004 = vmatprep.subr.mxu0 0.0
  %1005 = vmatpush1.msra.mxu0 0.0
  %1006 = vmatprep.subr.mxu0 0.0
  %1007 = vmatpush1.msra.mxu0 0.0
  %1008 = vmatprep.subr.mxu0 0.0
  %1009 = vmatpush1.msra.mxu0 0.0
  %1010 = vmatprep.subr.mxu0 0.0
  %1011 = vmatpush1.msra.mxu0 0.0
  %1012 = vmatprep.subr.mxu0 0.0
  %1013 = vmatpush1.msra.mxu0 0.0
  %1014 = vmatprep.subr.mxu0 0.0
  %1015 = vmatpush1.msra.mxu0 0.0
  %1016 = vmatprep.subr.mxu0 0.0
  %1017 = vmatpush1.msra.mxu0 0.0
  %1018 = vmatprep.subr.mxu0 0.0
  %1019 = vmatpush1.msra.mxu0 0.0
  %1020 = vmatprep.subr.mxu0 0.0
  %1021 = vmatpush1.msra.mxu0 0.0
  %1022 = vmatprep.subr.mxu0 0.0
  %1023 = vmatpush1.msra.mxu0 0.0
  %1024 = vmatprep.subr.mxu0 0.0
  %1025 = vmatpush1.msra.mxu0 0.0
  %1026 = vmatprep.subr.mxu0 0.0
  %1027 = vmatpush1.msra.mxu0 0.0
  %1028 = vmatprep.subr.mxu0 0.0
  %1029 = vmatpush1.msra.mxu0 0.0
  %1030 = vmatprep.subr.mxu0 0.0
  %1031 = vmatpush1.msra.mxu0 0.0
  %1032 = vmatprep.subr.mxu0 0.0
  %1033 = vmatpush1.msra.mxu0 0.0
  %1034 = vmatprep.mubr.f32.mxu0 0.0
  %1035 = vmatmul.mubr.f32.gmra.mrb[0].mxu0 %v897
  %v1036 = vpop.f32.mrb[0].mxu0
  %v1037 = vadd.f32 %v893, %v1036
  %v1038 = vpop.f32.mrb[0].mxu0
  %v1039 = vadd.f32 %v893, %v1038
  %1040 = vdwg.mxu0
  %1041 = vmatprep.subr.mxu0 %v762
  %1042 = vmatpush1.msra.mxu0 %v761
  %1043 = vmatprep.subr.mxu0 %v807
  %1044 = vmatpush1.msra.mxu0 %v806
  %1045 = vmatprep.subr.mxu0 %v842
  %1046 = vmatpush1.msra.mxu0 %v841
  %1047 = vmatprep.subr.mxu0 %v877
  %1048 = vmatpush1.msra.mxu0 %v876
  %1049 = vmatprep.subr.mxu0 0.0
  %1050 = vmatpush1.msra.mxu0 0.0
  %1051 = vmatprep.subr.mxu0 0.0
  %1052 = vmatpush1.msra.mxu0 0.0
  %1053 = vmatprep.subr.mxu0 0.0
  %1054 = vmatpush1.msra.mxu0 0.0
  %1055 = vmatprep.subr.mxu0 0.0
  %1056 = vmatpush1.msra.mxu0 0.0
  %1057 = vmatprep.subr.mxu0 0.0
  %1058 = vmatpush1.msra.mxu0 0.0
  %1059 = vmatprep.subr.mxu0 0.0
  %1060 = vmatpush1.msra.mxu0 0.0
  %1061 = vmatprep.subr.mxu0 0.0
  %1062 = vmatpush1.msra.mxu0 0.0
  %1063 = vmatprep.subr.mxu0 0.0
  %1064 = vmatpush1.msra.mxu0 0.0
  %1065 = vmatprep.subr.mxu0 0.0
  %1066 = vmatpush1.msra.mxu0 0.0
  %1067 = vmatprep.subr.mxu0 0.0
  %1068 = vmatpush1.msra.mxu0 0.0
  %1069 = vmatprep.subr.mxu0 0.0
  %1070 = vmatpush1.msra.mxu0 0.0
  %1071 = vmatprep.subr.mxu0 0.0
  %1072 = vmatpush1.msra.mxu0 0.0
  %1073 = vmatprep.subr.mxu0 0.0
  %1074 = vmatpush1.msra.mxu0 0.0
  %1075 = vmatprep.subr.mxu0 0.0
  %1076 = vmatpush1.msra.mxu0 0.0
  %1077 = vmatprep.subr.mxu0 0.0
  %1078 = vmatpush1.msra.mxu0 0.0
  %1079 = vmatprep.subr.mxu0 0.0
  %1080 = vmatpush1.msra.mxu0 0.0
  %1081 = vmatprep.subr.mxu0 0.0
  %1082 = vmatpush1.msra.mxu0 0.0
  %1083 = vmatprep.subr.mxu0 0.0
  %1084 = vmatpush1.msra.mxu0 0.0
  %1085 = vmatprep.subr.mxu0 0.0
  %1086 = vmatpush1.msra.mxu0 0.0
  %1087 = vmatprep.subr.mxu0 0.0
  %1088 = vmatpush1.msra.mxu0 0.0
  %1089 = vmatprep.subr.mxu0 0.0
  %1090 = vmatpush1.msra.mxu0 0.0
  %1091 = vmatprep.subr.mxu0 0.0
  %1092 = vmatpush1.msra.mxu0 0.0
  %1093 = vmatprep.subr.mxu0 0.0
  %1094 = vmatpush1.msra.mxu0 0.0
  %1095 = vmatprep.subr.mxu0 0.0
  %1096 = vmatpush1.msra.mxu0 0.0
  %1097 = vmatprep.subr.mxu0 0.0
  %1098 = vmatpush1.msra.mxu0 0.0
  %1099 = vmatprep.subr.mxu0 0.0
  %1100 = vmatpush1.msra.mxu0 0.0
  %1101 = vmatprep.subr.mxu0 0.0
  %1102 = vmatpush1.msra.mxu0 0.0
  %1103 = vmatprep.subr.mxu0 0.0
  %1104 = vmatpush1.msra.mxu0 0.0
  %1105 = vmatprep.mubr.f32.mxu0 0.0
  %1106 = vmatmul.mubr.f32.gmra.mrb[0].mxu0 %v897
  %v1107 = vpop.f32.mrb[0].mxu0
  %v1108 = vadd.f32 %v893, %v1107
  %v1109 = vpop.f32.mrb[0].mxu0
  %v1110 = vadd.f32 %v893, %v1109
  %1111 = vdwg.mxu0
  %1112 = vmatprep.subr.mxu0 %v764
  %1113 = vmatpush1.msra.mxu0 %v763
  %1114 = vmatprep.subr.mxu0 %v809
  %1115 = vmatpush1.msra.mxu0 %v808
  %1116 = vmatprep.subr.mxu0 %v844
  %1117 = vmatpush1.msra.mxu0 %v843
  %1118 = vmatprep.subr.mxu0 %v879
  %1119 = vmatpush1.msra.mxu0 %v878
  %1120 = vmatprep.subr.mxu0 0.0
  %1121 = vmatpush1.msra.mxu0 0.0
  %1122 = vmatprep.subr.mxu0 0.0
  %1123 = vmatpush1.msra.mxu0 0.0
  %1124 = vmatprep.subr.mxu0 0.0
  %1125 = vmatpush1.msra.mxu0 0.0
  %1126 = vmatprep.subr.mxu0 0.0
  %1127 = vmatpush1.msra.mxu0 0.0
  %1128 = vmatprep.subr.mxu0 0.0
  %1129 = vmatpush1.msra.mxu0 0.0
  %1130 = vmatprep.subr.mxu0 0.0
  %1131 = vmatpush1.msra.mxu0 0.0
  %1132 = vmatprep.subr.mxu0 0.0
  %1133 = vmatpush1.msra.mxu0 0.0
  %1134 = vmatprep.subr.mxu0 0.0
  %1135 = vmatpush1.msra.mxu0 0.0
  %1136 = vmatprep.subr.mxu0 0.0
  %1137 = vmatpush1.msra.mxu0 0.0
  %1138 = vmatprep.subr.mxu0 0.0
  %1139 = vmatpush1.msra.mxu0 0.0
  %1140 = vmatprep.subr.mxu0 0.0
  %1141 = vmatpush1.msra.mxu0 0.0
  %1142 = vmatprep.subr.mxu0 0.0
  %1143 = vmatpush1.msra.mxu0 0.0
  %1144 = vmatprep.subr.mxu0 0.0
  %1145 = vmatpush1.msra.mxu0 0.0
  %1146 = vmatprep.subr.mxu0 0.0
  %1147 = vmatpush1.msra.mxu0 0.0
  %1148 = vmatprep.subr.mxu0 0.0
  %1149 = vmatpush1.msra.mxu0 0.0
  %1150 = vmatprep.subr.mxu0 0.0
  %1151 = vmatpush1.msra.mxu0 0.0
  %1152 = vmatprep.subr.mxu0 0.0
  %1153 = vmatpush1.msra.mxu0 0.0
  %1154 = vmatprep.subr.mxu0 0.0
  %1155 = vmatpush1.msra.mxu0 0.0
  %1156 = vmatprep.subr.mxu0 0.0
  %1157 = vmatpush1.msra.mxu0 0.0
  %1158 = vmatprep.subr.mxu0 0.0
  %1159 = vmatpush1.msra.mxu0 0.0
  %1160 = vmatprep.subr.mxu0 0.0
  %1161 = vmatpush1.msra.mxu0 0.0
  %1162 = vmatprep.subr.mxu0 0.0
  %1163 = vmatpush1.msra.mxu0 0.0
  %1164 = vmatprep.subr.mxu0 0.0
  %1165 = vmatpush1.msra.mxu0 0.0
  %1166 = vmatprep.subr.mxu0 0.0
  %1167 = vmatpush1.msra.mxu0 0.0
  %1168 = vmatprep.subr.mxu0 0.0
  %1169 = vmatpush1.msra.mxu0 0.0
  %1170 = vmatprep.subr.mxu0 0.0
  %1171 = vmatpush1.msra.mxu0 0.0
  %1172 = vmatprep.subr.mxu0 0.0
  %1173 = vmatpush1.msra.mxu0 0.0
  %1174 = vmatprep.subr.mxu0 0.0
  %1175 = vmatpush1.msra.mxu0 0.0
  %1176 = vmatprep.mubr.f32.mxu0 0.0
  %1177 = vmatmul.mubr.f32.gmra.mrb[0].mxu0 %v897
  %v1178 = vpop.f32.mrb[0].mxu0
  %v1179 = vadd.f32 %v893, %v1178
  %v1180 = vpop.f32.mrb[0].mxu0
  %v1181 = vadd.f32 %v893, %v1180
  %1182 = vdwg.mxu0
  %v1183 = vmul.f32 %v966, 0.5
  %v1184 = vmul.f32 %v968, 0.5
  %v1185 = vmul.f32 %v1037, 0.5
  %v1186 = vmul.f32 %v1039, 0.5
  %v1187 = vmul.f32 %v1108, 0.5
  %v1188 = vmul.f32 %v1110, 0.5
  %v1189 = vmul.f32 %v1179, 0.5
  %v1190 = vmul.f32 %v1181, 0.5
  %v1191 = vmul.f32 %v966, 0.70710677
  %v1192 = vmul.f32 %v968, 0.70710677
  %v1193 = vmul.f32 %v1037, 0.70710677
  %v1194 = vmul.f32 %v1039, 0.70710677
  %v1195 = vmul.f32 %v1108, 0.70710677
  %v1196 = vmul.f32 %v1110, 0.70710677
  %v1197 = vmul.f32 %v1179, 0.70710677
  %v1198 = vmul.f32 %v1181, 0.70710677
  %v1199 = verf.f32.pop %v1191
  %v1200 = verf.f32.pop %v1192
  %v1201 = verf.f32.pop %v1193
  %v1202 = verf.f32.pop %v1194
  %v1203 = verf.f32.pop %v1195
  %v1204 = verf.f32.pop %v1196
  %v1205 = verf.f32.pop %v1197
  %v1206 = verf.f32.pop %v1198
  %v1207 = vadd.f32 %v1199, 1.0
  %v1208 = vadd.f32 %v1200, 1.0
  %v1209 = vadd.f32 %v1201, 1.0
  %v1210 = vadd.f32 %v1202, 1.0
  %v1211 = vadd.f32 %v1203, 1.0
  %v1212 = vadd.f32 %v1204, 1.0
  %v1213 = vadd.f32 %v1205, 1.0
  %v1214 = vadd.f32 %v1206, 1.0
  %v1215 = vmul.f32 %v1183, %v1207
  %v1216 = vmul.f32 %v1184, %v1208
  %v1217 = vmul.f32 %v1185, %v1209
  %v1218 = vmul.f32 %v1186, %v1210
  %v1219 = vmul.f32 %v1187, %v1211
  %v1220 = vmul.f32 %v1188, %v1212
  %v1221 = vmul.f32 %v1189, %v1213
  %v1222 = vmul.f32 %v1190, %v1214
  %1223 = vst [vmem:[#allocation3] sm:$0x3] %v1215
  %1224 = vst [vmem:[#allocation3 + $0x8] sm:$0x3] %v1216
  %1225 = vst [vmem:[#allocation3 + $0x10] sm:$0x3] %v1217
  %1226 = vst [vmem:[#allocation3 + $0x18] sm:$0x3] %v1218
  %1227 = vst [vmem:[#allocation3 + $0x20] sm:$0x3] %v1219
  %1228 = vst [vmem:[#allocation3 + $0x28] sm:$0x3] %v1220
  %1229 = vst [vmem:[#allocation3 + $0x30] sm:$0x3] %v1221
  %1230 = vst [vmem:[#allocation3 + $0x38] sm:$0x3] %v1222
  %v1231 = vld [vmem:[#allocation3] sm:$0xff]
  %v1232 = vld [vmem:[#allocation3 + $0x8] sm:$0xff]
  %v1233 = vld [vmem:[#allocation3 + $0x10] sm:$0xff]
  %v1234 = vld [vmem:[#allocation3 + $0x18] sm:$0xff]
  %v1235 = vld [vmem:[#allocation3 + $0x20] sm:$0xff]
  %v1236 = vld [vmem:[#allocation3 + $0x28] sm:$0xff]
  %v1237 = vld [vmem:[#allocation3 + $0x30] sm:$0xff]
  %v1238 = vld [vmem:[#allocation3 + $0x38] sm:$0xff]
  %v1239 = vld [vmem:[#allocation3] sm:$0xff]
  %v1240 = vld [vmem:[#allocation3 + $0x8] sm:$0xff]
  %v1241 = vld [vmem:[#allocation3 + $0x10] sm:$0xff]
  %v1242 = vld [vmem:[#allocation3 + $0x18] sm:$0xff]
  %v1243 = vld [vmem:[#allocation3 + $0x20] sm:$0xff]
  %v1244 = vld [vmem:[#allocation3 + $0x28] sm:$0xff]
  %v1245 = vld [vmem:[#allocation3 + $0x30] sm:$0xff]
  %v1246 = vld [vmem:[#allocation3 + $0x38] sm:$0xff]
  %v1247 = vld [vmem:[#allocation3 + $0x40] sm:$0xff]
  %1257 = vrot.lane.b32.xlu0 %v1239, 127
  %v1258 = vpop.permute.xlu0 %1257
  %1259 = vrot.lane.b32.xlu0 %v1240, 127
  %v1260 = vpop.permute.xlu0 %1259
  %1261 = vrot.lane.b32.xlu0 %v1241, 127
  %v1262 = vpop.permute.xlu0 %1261
  %1263 = vrot.lane.b32.xlu0 %v1242, 127
  %v1264 = vpop.permute.xlu0 %1263
  %1265 = vrot.lane.b32.xlu0 %v1243, 127
  %v1266 = vpop.permute.xlu0 %1265
  %1267 = vrot.lane.b32.xlu0 %v1244, 127
  %v1268 = vpop.permute.xlu0 %1267
  %1269 = vrot.lane.b32.xlu0 %v1245, 127
  %v1270 = vpop.permute.xlu0 %1269
  %1271 = vrot.lane.b32.xlu0 %v1246, 127
  %v1272 = vpop.permute.xlu0 %1271
  %1273 = vrot.lane.b32.xlu0 %v1247, 127
  %v1274 = vpop.permute.xlu0 %1273
  %v1275 = vsel %vm801, %v1258, %v1260
  %v1276 = vsel %vm801, %v1260, %v1262
  %v1277 = vsel %vm801, %v1262, %v1264
  %v1278 = vsel %vm801, %v1264, %v1266
  %v1279 = vsel %vm801, %v1266, %v1268
  %v1280 = vsel %vm801, %v1268, %v1270
  %v1281 = vsel %vm801, %v1270, %v1272
  %v1282 = vsel %vm801, %v1272, %v1274
  %1291 = vrot.lane.b32.xlu0 %v1239, 96
  %v1292 = vpop.permute.xlu0 %1291
  %1293 = vrot.lane.b32.xlu0 %v1240, 96
  %v1294 = vpop.permute.xlu0 %1293
  %1295 = vrot.lane.b32.xlu0 %v1241, 96
  %v1296 = vpop.permute.xlu0 %1295
  %1297 = vrot.lane.b32.xlu0 %v1242, 96
  %v1298 = vpop.permute.xlu0 %1297
  %1299 = vrot.lane.b32.xlu0 %v1243, 96
  %v1300 = vpop.permute.xlu0 %1299
  %1301 = vrot.lane.b32.xlu0 %v1244, 96
  %v1302 = vpop.permute.xlu0 %1301
  %1303 = vrot.lane.b32.xlu0 %v1245, 96
  %v1304 = vpop.permute.xlu0 %1303
  %1305 = vrot.lane.b32.xlu0 %v1246, 96
  %v1306 = vpop.permute.xlu0 %1305
  %1307 = vrot.lane.b32.xlu0 %v1247, 96
  %v1308 = vpop.permute.xlu0 %1307
  %v1309 = vsel %vm836, %v1292, %v1294
  %v1310 = vsel %vm836, %v1294, %v1296
  %v1311 = vsel %vm836, %v1296, %v1298
  %v1312 = vsel %vm836, %v1298, %v1300
  %v1313 = vsel %vm836, %v1300, %v1302
  %v1314 = vsel %vm836, %v1302, %v1304
  %v1315 = vsel %vm836, %v1304, %v1306
  %v1316 = vsel %vm836, %v1306, %v1308
  %1325 = vrot.lane.b32.xlu0 %v1239, 95
  %v1326 = vpop.permute.xlu0 %1325
  %1327 = vrot.lane.b32.xlu0 %v1240, 95
  %v1328 = vpop.permute.xlu0 %1327
  %1329 = vrot.lane.b32.xlu0 %v1241, 95
  %v1330 = vpop.permute.xlu0 %1329
  %1331 = vrot.lane.b32.xlu0 %v1242, 95
  %v1332 = vpop.permute.xlu0 %1331
  %1333 = vrot.lane.b32.xlu0 %v1243, 95
  %v1334 = vpop.permute.xlu0 %1333
  %1335 = vrot.lane.b32.xlu0 %v1244, 95
  %v1336 = vpop.permute.xlu0 %1335
  %1337 = vrot.lane.b32.xlu0 %v1245, 95
  %v1338 = vpop.permute.xlu0 %1337
  %1339 = vrot.lane.b32.xlu0 %v1246, 95
  %v1340 = vpop.permute.xlu0 %1339
  %1341 = vrot.lane.b32.xlu0 %v1247, 95
  %v1342 = vpop.permute.xlu0 %1341
  %v1343 = vsel %vm871, %v1326, %v1328
  %v1344 = vsel %vm871, %v1328, %v1330
  %v1345 = vsel %vm871, %v1330, %v1332
  %v1346 = vsel %vm871, %v1332, %v1334
  %v1347 = vsel %vm871, %v1334, %v1336
  %v1348 = vsel %vm871, %v1336, %v1338
  %v1349 = vsel %vm871, %v1338, %v1340
  %v1350 = vsel %vm871, %v1340, %v1342
  %v1359 = vld [vmem:[%s7] sm:$0xff]
  %v1360 = vld [vmem:[%s7 + $0x8] sm:$0x7f]
  %v1361 = vld [vmem:[%s8] sm:$0xff]
  %v1362 = vld [vmem:[%s8 + $0x8] sm:$0x7f]
  %1364 = vset.pattern.permute.xlu0 0
  %1365 = vperm.xlu0 %1364, %v1361
  %v1366 = vpop.permute.xlu0 %1365
  %1369 = vset.pattern.permute.xlu0 0
  %1370 = vperm.xlu0 %1369, %v1362
  %v1371 = vpop.permute.xlu0 %1370
  %v1374 = vsel %vm895, %v1359, 0
  %v1377 = vsel %vm895, %v1360, 0
  %1379 = vmatprep.subr.mxu0 %v1232
  %1380 = vmatpush1.msra.mxu0 %v1231
  %1381 = vmatprep.subr.mxu0 %v1276
  %1382 = vmatpush1.msra.mxu0 %v1275
  %1383 = vmatprep.subr.mxu0 %v1310
  %1384 = vmatpush1.msra.mxu0 %v1309
  %1385 = vmatprep.subr.mxu0 %v1344
  %1386 = vmatpush1.msra.mxu0 %v1343
  %1387 = vmatprep.subr.mxu0 0.0
  %1388 = vmatpush1.msra.mxu0 0.0
  %1389 = vmatprep.subr.mxu0 0.0
  %1390 = vmatpush1.msra.mxu0 0.0
  %1391 = vmatprep.subr.mxu0 0.0
  %1392 = vmatpush1.msra.mxu0 0.0
  %1393 = vmatprep.subr.mxu0 0.0
  %1394 = vmatpush1.msra.mxu0 0.0
  %1395 = vmatprep.subr.mxu0 0.0
  %1396 = vmatpush1.msra.mxu0 0.0
  %1397 = vmatprep.subr.mxu0 0.0
  %1398 = vmatpush1.msra.mxu0 0.0
  %1399 = vmatprep.subr.mxu0 0.0
  %1400 = vmatpush1.msra.mxu0 0.0
  %1401 = vmatprep.subr.mxu0 0.0
  %1402 = vmatpush1.msra.mxu0 0.0
  %1403 = vmatprep.subr.mxu0 0.0
  %1404 = vmatpush1.msra.mxu0 0.0
  %1405 = vmatprep.subr.mxu0 0.0
  %1406 = vmatpush1.msra.mxu0 0.0
  %1407 = vmatprep.subr.mxu0 0.0
  %1408 = vmatpush1.msra.mxu0 0.0
  %1409 = vmatprep.subr.mxu0 0.0
  %1410 = vmatpush1.msra.mxu0 0.0
  %1411 = vmatprep.subr.mxu0 0.0
  %1412 = vmatpush1.msra.mxu0 0.0
  %1413 = vmatprep.subr.mxu0 0.0
  %1414 = vmatpush1.msra.mxu0 0.0
  %1415 = vmatprep.subr.mxu0 0.0
  %1416 = vmatpush1.msra.mxu0 0.0
  %1417 = vmatprep.subr.mxu0 0.0
  %1418 = vmatpush1.msra.mxu0 0.0
  %1419 = vmatprep.subr.mxu0 0.0
  %1420 = vmatpush1.msra.mxu0 0.0
  %1421 = vmatprep.subr.mxu0 0.0
  %1422 = vmatpush1.msra.mxu0 0.0
  %1423 = vmatprep.subr.mxu0 0.0
  %1424 = vmatpush1.msra.mxu0 0.0
  %1425 = vmatprep.subr.mxu0 0.0
  %1426 = vmatpush1.msra.mxu0 0.0
  %1427 = vmatprep.subr.mxu0 0.0
  %1428 = vmatpush1.msra.mxu0 0.0
  %1429 = vmatprep.subr.mxu0 0.0
  %1430 = vmatpush1.msra.mxu0 0.0
  %1431 = vmatprep.subr.mxu0 0.0
  %1432 = vmatpush1.msra.mxu0 0.0
  %1433 = vmatprep.subr.mxu0 0.0
  %1434 = vmatpush1.msra.mxu0 0.0
  %1435 = vmatprep.subr.mxu0 0.0
  %1436 = vmatpush1.msra.mxu0 0.0
  %1437 = vmatprep.subr.mxu0 0.0
  %1438 = vmatpush1.msra.mxu0 0.0
  %1439 = vmatprep.subr.mxu0 0.0
  %1440 = vmatpush1.msra.mxu0 0.0
  %1441 = vmatprep.subr.mxu0 0.0
  %1442 = vmatpush1.msra.mxu0 0.0
  %1443 = vmatprep.mubr.f32.mxu0 0.0
  %1444 = vmatmul.mubr.f32.gmra.mrb[0].mxu0 %v1374
  %v1445 = vpop.f32.mrb[0].mxu0
  %v1446 = vadd.f32 %v1366, %v1445
  %v1447 = vpop.f32.mrb[0].mxu0
  %v1448 = vadd.f32 %v1366, %v1447
  %1449 = vmatprep.mubr.f32.mxu0 0.0
  %1450 = vmatmul.mubr.f32.gmra.mrb[0].mxu0 %v1377
  %v1451 = vpop.f32.mrb[0].mxu0
  %v1452 = vadd.f32 %v1371, %v1451
  %v1453 = vpop.f32.mrb[0].mxu0
  %v1454 = vadd.f32 %v1371, %v1453
  %1455 = vdwg.mxu0
  %1456 = vmatprep.subr.mxu0 %v1234
  %1457 = vmatpush1.msra.mxu0 %v1233
  %1458 = vmatprep.subr.mxu0 %v1278
  %1459 = vmatpush1.msra.mxu0 %v1277
  %1460 = vmatprep.subr.mxu0 %v1312
  %1461 = vmatpush1.msra.mxu0 %v1311
  %1462 = vmatprep.subr.mxu0 %v1346
  %1463 = vmatpush1.msra.mxu0 %v1345
  %1464 = vmatprep.subr.mxu0 0.0
  %1465 = vmatpush1.msra.mxu0 0.0
  %1466 = vmatprep.subr.mxu0 0.0
  %1467 = vmatpush1.msra.mxu0 0.0
  %1468 = vmatprep.subr.mxu0 0.0
  %1469 = vmatpush1.msra.mxu0 0.0
  %1470 = vmatprep.subr.mxu0 0.0
  %1471 = vmatpush1.msra.mxu0 0.0
  %1472 = vmatprep.subr.mxu0 0.0
  %1473 = vmatpush1.msra.mxu0 0.0
  %1474 = vmatprep.subr.mxu0 0.0
  %1475 = vmatpush1.msra.mxu0 0.0
  %1476 = vmatprep.subr.mxu0 0.0
  %1477 = vmatpush1.msra.mxu0 0.0
  %1478 = vmatprep.subr.mxu0 0.0
  %1479 = vmatpush1.msra.mxu0 0.0
  %1480 = vmatprep.subr.mxu0 0.0
  %1481 = vmatpush1.msra.mxu0 0.0
  %1482 = vmatprep.subr.mxu0 0.0
  %1483 = vmatpush1.msra.mxu0 0.0
  %1484 = vmatprep.subr.mxu0 0.0
  %1485 = vmatpush1.msra.mxu0 0.0
  %1486 = vmatprep.subr.mxu0 0.0
  %1487 = vmatpush1.msra.mxu0 0.0
  %1488 = vmatprep.subr.mxu0 0.0
  %1489 = vmatpush1.msra.mxu0 0.0
  %1490 = vmatprep.subr.mxu0 0.0
  %1491 = vmatpush1.msra.mxu0 0.0
  %1492 = vmatprep.subr.mxu0 0.0
  %1493 = vmatpush1.msra.mxu0 0.0
  %1494 = vmatprep.subr.mxu0 0.0
  %1495 = vmatpush1.msra.mxu0 0.0
  %1496 = vmatprep.subr.mxu0 0.0
  %1497 = vmatpush1.msra.mxu0 0.0
  %1498 = vmatprep.subr.mxu0 0.0
  %1499 = vmatpush1.msra.mxu0 0.0
  %1500 = vmatprep.subr.mxu0 0.0
  %1501 = vmatpush1.msra.mxu0 0.0
  %1502 = vmatprep.subr.mxu0 0.0
  %1503 = vmatpush1.msra.mxu0 0.0
  %1504 = vmatprep.subr.mxu0 0.0
  %1505 = vmatpush1.msra.mxu0 0.0
  %1506 = vmatprep.subr.mxu0 0.0
  %1507 = vmatpush1.msra.mxu0 0.0
  %1508 = vmatprep.subr.mxu0 0.0
  %1509 = vmatpush1.msra.mxu0 0.0
  %1510 = vmatprep.subr.mxu0 0.0
  %1511 = vmatpush1.msra.mxu0 0.0
  %1512 = vmatprep.subr.mxu0 0.0
  %1513 = vmatpush1.msra.mxu0 0.0
  %1514 = vmatprep.subr.mxu0 0.0
  %1515 = vmatpush1.msra.mxu0 0.0
  %1516 = vmatprep.subr.mxu0 0.0
  %1517 = vmatpush1.msra.mxu0 0.0
  %1518 = vmatprep.subr.mxu0 0.0
  %1519 = vmatpush1.msra.mxu0 0.0
  %1520 = vmatprep.mubr.f32.mxu0 0.0
  %1521 = vmatmul.mubr.f32.gmra.mrb[0].mxu0 %v1374
  %v1522 = vpop.f32.mrb[0].mxu0
  %v1523 = vadd.f32 %v1366, %v1522
  %v1524 = vpop.f32.mrb[0].mxu0
  %v1525 = vadd.f32 %v1366, %v1524
  %1526 = vmatprep.mubr.f32.mxu0 0.0
  %1527 = vmatmul.mubr.f32.gmra.mrb[0].mxu0 %v1377
  %v1528 = vpop.f32.mrb[0].mxu0
  %v1529 = vadd.f32 %v1371, %v1528
  %v1530 = vpop.f32.mrb[0].mxu0
  %v1531 = vadd.f32 %v1371, %v1530
  %1532 = vdwg.mxu0
  %1533 = vmatprep.subr.mxu0 %v1236
  %1534 = vmatpush1.msra.mxu0 %v1235
  %1535 = vmatprep.subr.mxu0 %v1280
  %1536 = vmatpush1.msra.mxu0 %v1279
  %1537 = vmatprep.subr.mxu0 %v1314
  %1538 = vmatpush1.msra.mxu0 %v1313
  %1539 = vmatprep.subr.mxu0 %v1348
  %1540 = vmatpush1.msra.mxu0 %v1347
  %1541 = vmatprep.subr.mxu0 0.0
  %1542 = vmatpush1.msra.mxu0 0.0
  %1543 = vmatprep.subr.mxu0 0.0
  %1544 = vmatpush1.msra.mxu0 0.0
  %1545 = vmatprep.subr.mxu0 0.0
  %1546 = vmatpush1.msra.mxu0 0.0
  %1547 = vmatprep.subr.mxu0 0.0
  %1548 = vmatpush1.msra.mxu0 0.0
  %1549 = vmatprep.subr.mxu0 0.0
  %1550 = vmatpush1.msra.mxu0 0.0
  %1551 = vmatprep.subr.mxu0 0.0
  %1552 = vmatpush1.msra.mxu0 0.0
  %1553 = vmatprep.subr.mxu0 0.0
  %1554 = vmatpush1.msra.mxu0 0.0
  %1555 = vmatprep.subr.mxu0 0.0
  %1556 = vmatpush1.msra.mxu0 0.0
  %1557 = vmatprep.subr.mxu0 0.0
  %1558 = vmatpush1.msra.mxu0 0.0
  %1559 = vmatprep.subr.mxu0 0.0
  %1560 = vmatpush1.msra.mxu0 0.0
  %1561 = vmatprep.subr.mxu0 0.0
  %1562 = vmatpush1.msra.mxu0 0.0
  %1563 = vmatprep.subr.mxu0 0.0
  %1564 = vmatpush1.msra.mxu0 0.0
  %1565 = vmatprep.subr.mxu0 0.0
  %1566 = vmatpush1.msra.mxu0 0.0
  %1567 = vmatprep.subr.mxu0 0.0
  %1568 = vmatpush1.msra.mxu0 0.0
  %1569 = vmatprep.subr.mxu0 0.0
  %1570 = vmatpush1.msra.mxu0 0.0
  %1571 = vmatprep.subr.mxu0 0.0
  %1572 = vmatpush1.msra.mxu0 0.0
  %1573 = vmatprep.subr.mxu0 0.0
  %1574 = vmatpush1.msra.mxu0 0.0
  %1575 = vmatprep.subr.mxu0 0.0
  %1576 = vmatpush1.msra.mxu0 0.0
  %1577 = vmatprep.subr.mxu0 0.0
  %1578 = vmatpush1.msra.mxu0 0.0
  %1579 = vmatprep.subr.mxu0 0.0
  %1580 = vmatpush1.msra.mxu0 0.0
  %1581 = vmatprep.subr.mxu0 0.0
  %1582 = vmatpush1.msra.mxu0 0.0
  %1583 = vmatprep.subr.mxu0 0.0
  %1584 = vmatpush1.msra.mxu0 0.0
  %1585 = vmatprep.subr.mxu0 0.0
  %1586 = vmatpush1.msra.mxu0 0.0
  %1587 = vmatprep.subr.mxu0 0.0
  %1588 = vmatpush1.msra.mxu0 0.0
  %1589 = vmatprep.subr.mxu0 0.0
  %1590 = vmatpush1.msra.mxu0 0.0
  %1591 = vmatprep.subr.mxu0 0.0
  %1592 = vmatpush1.msra.mxu0 0.0
  %1593 = vmatprep.subr.mxu0 0.0
  %1594 = vmatpush1.msra.mxu0 0.0
  %1595 = vmatprep.subr.mxu0 0.0
  %1596 = vmatpush1.msra.mxu0 0.0
  %1597 = vmatprep.mubr.f32.mxu0 0.0
  %1598 = vmatmul.mubr.f32.gmra.mrb[0].mxu0 %v1374
  %v1599 = vpop.f32.mrb[0].mxu0
  %v1600 = vadd.f32 %v1366, %v1599
  %v1601 = vpop.f32.mrb[0].mxu0
  %v1602 = vadd.f32 %v1366, %v1601
  %1603 = vmatprep.mubr.f32.mxu0 0.0
  %1604 = vmatmul.mubr.f32.gmra.mrb[0].mxu0 %v1377
  %v1605 = vpop.f32.mrb[0].mxu0
  %v1606 = vadd.f32 %v1371, %v1605
  %v1607 = vpop.f32.mrb[0].mxu0
  %v1608 = vadd.f32 %v1371, %v1607
  %1609 = vdwg.mxu0
  %1610 = vmatprep.subr.mxu0 %v1238
  %1611 = vmatpush1.msra.mxu0 %v1237
  %1612 = vmatprep.subr.mxu0 %v1282
  %1613 = vmatpush1.msra.mxu0 %v1281
  %1614 = vmatprep.subr.mxu0 %v1316
  %1615 = vmatpush1.msra.mxu0 %v1315
  %1616 = vmatprep.subr.mxu0 %v1350
  %1617 = vmatpush1.msra.mxu0 %v1349
  %1618 = vmatprep.subr.mxu0 0.0
  %1619 = vmatpush1.msra.mxu0 0.0
  %1620 = vmatprep.subr.mxu0 0.0
  %1621 = vmatpush1.msra.mxu0 0.0
  %1622 = vmatprep.subr.mxu0 0.0
  %1623 = vmatpush1.msra.mxu0 0.0
  %1624 = vmatprep.subr.mxu0 0.0
  %1625 = vmatpush1.msra.mxu0 0.0
  %1626 = vmatprep.subr.mxu0 0.0
  %1627 = vmatpush1.msra.mxu0 0.0
  %1628 = vmatprep.subr.mxu0 0.0
  %1629 = vmatpush1.msra.mxu0 0.0
  %1630 = vmatprep.subr.mxu0 0.0
  %1631 = vmatpush1.msra.mxu0 0.0
  %1632 = vmatprep.subr.mxu0 0.0
  %1633 = vmatpush1.msra.mxu0 0.0
  %1634 = vmatprep.subr.mxu0 0.0
  %1635 = vmatpush1.msra.mxu0 0.0
  %1636 = vmatprep.subr.mxu0 0.0
  %1637 = vmatpush1.msra.mxu0 0.0
  %1638 = vmatprep.subr.mxu0 0.0
  %1639 = vmatpush1.msra.mxu0 0.0
  %1640 = vmatprep.subr.mxu0 0.0
  %1641 = vmatpush1.msra.mxu0 0.0
  %1642 = vmatprep.subr.mxu0 0.0
  %1643 = vmatpush1.msra.mxu0 0.0
  %1644 = vmatprep.subr.mxu0 0.0
  %1645 = vmatpush1.msra.mxu0 0.0
  %1646 = vmatprep.subr.mxu0 0.0
  %1647 = vmatpush1.msra.mxu0 0.0
  %1648 = vmatprep.subr.mxu0 0.0
  %1649 = vmatpush1.msra.mxu0 0.0
  %1650 = vmatprep.subr.mxu0 0.0
  %1651 = vmatpush1.msra.mxu0 0.0
  %1652 = vmatprep.subr.mxu0 0.0
  %1653 = vmatpush1.msra.mxu0 0.0
  %1654 = vmatprep.subr.mxu0 0.0
  %1655 = vmatpush1.msra.mxu0 0.0
  %1656 = vmatprep.subr.mxu0 0.0
  %1657 = vmatpush1.msra.mxu0 0.0
  %1658 = vmatprep.subr.mxu0 0.0
  %1659 = vmatpush1.msra.mxu0 0.0
  %1660 = vmatprep.subr.mxu0 0.0
  %1661 = vmatpush1.msra.mxu0 0.0
  %1662 = vmatprep.subr.mxu0 0.0
  %1663 = vmatpush1.msra.mxu0 0.0
  %1664 = vmatprep.subr.mxu0 0.0
  %1665 = vmatpush1.msra.mxu0 0.0
  %1666 = vmatprep.subr.mxu0 0.0
  %1667 = vmatpush1.msra.mxu0 0.0
  %1668 = vmatprep.subr.mxu0 0.0
  %1669 = vmatpush1.msra.mxu0 0.0
  %1670 = vmatprep.subr.mxu0 0.0
  %1671 = vmatpush1.msra.mxu0 0.0
  %1672 = vmatprep.subr.mxu0 0.0
  %1673 = vmatpush1.msra.mxu0 0.0
  %1674 = vmatprep.mubr.f32.mxu0 0.0
  %1675 = vmatmul.mubr.f32.gmra.mrb[0].mxu0 %v1374
  %v1676 = vpop.f32.mrb[0].mxu0
  %v1677 = vadd.f32 %v1366, %v1676
  %v1678 = vpop.f32.mrb[0].mxu0
  %v1679 = vadd.f32 %v1366, %v1678
  %1680 = vmatprep.mubr.f32.mxu0 0.0
  %1681 = vmatmul.mubr.f32.gmra.mrb[0].mxu0 %v1377
  %v1682 = vpop.f32.mrb[0].mxu0
  %v1683 = vadd.f32 %v1371, %v1682
  %v1684 = vpop.f32.mrb[0].mxu0
  %v1685 = vadd.f32 %v1371, %v1684
  %1686 = vdwg.mxu0
  %v1687 = vmul.f32 %v1446, 0.5
  %v1688 = vmul.f32 %v1448, 0.5
  %v1689 = vmul.f32 %v1523, 0.5
  %v1690 = vmul.f32 %v1525, 0.5
  %v1691 = vmul.f32 %v1600, 0.5
  %v1692 = vmul.f32 %v1602, 0.5
  %v1693 = vmul.f32 %v1677, 0.5
  %v1694 = vmul.f32 %v1679, 0.5
  %v1695 = vmul.f32 %v1452, 0.5
  %v1696 = vmul.f32 %v1454, 0.5
  %v1697 = vmul.f32 %v1529, 0.5
  %v1698 = vmul.f32 %v1531, 0.5
  %v1699 = vmul.f32 %v1606, 0.5
  %v1700 = vmul.f32 %v1608, 0.5
  %v1701 = vmul.f32 %v1683, 0.5
  %v1702 = vmul.f32 %v1685, 0.5
  %v1703 = vmul.f32 %v1446, 0.70710677
  %v1704 = vmul.f32 %v1448, 0.70710677
  %v1705 = vmul.f32 %v1523, 0.70710677
  %v1706 = vmul.f32 %v1525, 0.70710677
  %v1707 = vmul.f32 %v1600, 0.70710677
  %v1708 = vmul.f32 %v1602, 0.70710677
  %v1709 = vmul.f32 %v1677, 0.70710677
  %v1710 = vmul.f32 %v1679, 0.70710677
  %v1711 = vmul.f32 %v1452, 0.70710677
  %v1712 = vmul.f32 %v1454, 0.70710677
  %v1713 = vmul.f32 %v1529, 0.70710677
  %v1714 = vmul.f32 %v1531, 0.70710677
  %v1715 = vmul.f32 %v1606, 0.70710677
  %v1716 = vmul.f32 %v1608, 0.70710677
  %v1717 = vmul.f32 %v1683, 0.70710677
  %v1718 = vmul.f32 %v1685, 0.70710677
  %v1719 = verf.f32.pop %v1703
  %v1720 = verf.f32.pop %v1704
  %v1721 = verf.f32.pop %v1705
  %v1722 = verf.f32.pop %v1706
  %v1723 = verf.f32.pop %v1707
  %v1724 = verf.f32.pop %v1708
  %v1725 = verf.f32.pop %v1709
  %v1726 = verf.f32.pop %v1710
  %v1727 = verf.f32.pop %v1711
  %v1728 = verf.f32.pop %v1712
  %v1729 = verf.f32.pop %v1713
  %v1730 = verf.f32.pop %v1714
  %v1731 = verf.f32.pop %v1715
  %v1732 = verf.f32.pop %v1716
  %v1733 = verf.f32.pop %v1717
  %v1734 = verf.f32.pop %v1718
  %v1735 = vadd.f32 %v1719, 1.0
  %v1736 = vadd.f32 %v1720, 1.0
  %v1737 = vadd.f32 %v1721, 1.0
  %v1738 = vadd.f32 %v1722, 1.0
  %v1739 = vadd.f32 %v1723, 1.0
  %v1740 = vadd.f32 %v1724, 1.0
  %v1741 = vadd.f32 %v1725, 1.0
  %v1742 = vadd.f32 %v1726, 1.0
  %v1743 = vadd.f32 %v1727, 1.0
  %v1744 = vadd.f32 %v1728, 1.0
  %v1745 = vadd.f32 %v1729, 1.0
  %v1746 = vadd.f32 %v1730, 1.0
  %v1747 = vadd.f32 %v1731, 1.0
  %v1748 = vadd.f32 %v1732, 1.0
  %v1749 = vadd.f32 %v1733, 1.0
  %v1750 = vadd.f32 %v1734, 1.0
  %v1751 = vmul.f32 %v1687, %v1735
  %v1752 = vmul.f32 %v1688, %v1736
  %v1753 = vmul.f32 %v1689, %v1737
  %v1754 = vmul.f32 %v1690, %v1738
  %v1755 = vmul.f32 %v1691, %v1739
  %v1756 = vmul.f32 %v1692, %v1740
  %v1757 = vmul.f32 %v1693, %v1741
  %v1758 = vmul.f32 %v1694, %v1742
  %v1759 = vmul.f32 %v1695, %v1743
  %v1760 = vmul.f32 %v1696, %v1744
  %v1761 = vmul.f32 %v1697, %v1745
  %v1762 = vmul.f32 %v1698, %v1746
  %v1763 = vmul.f32 %v1699, %v1747
  %v1764 = vmul.f32 %v1700, %v1748
  %v1765 = vmul.f32 %v1701, %v1749
  %v1766 = vmul.f32 %v1702, %v1750
  %1767 = vst [vmem:[#allocation4] sm:$0xff] %v1751
  %1768 = vst [vmem:[#allocation4 + $0x8] sm:$0xff] %v1752
  %1769 = vst [vmem:[#allocation4 + $0x10] sm:$0xff] %v1753
  %1770 = vst [vmem:[#allocation4 + $0x18] sm:$0xff] %v1754
  %1771 = vst [vmem:[#allocation4 + $0x20] sm:$0xff] %v1755
  %1772 = vst [vmem:[#allocation4 + $0x28] sm:$0xff] %v1756
  %1773 = vst [vmem:[#allocation4 + $0x30] sm:$0xff] %v1757
  %1774 = vst [vmem:[#allocation4 + $0x38] sm:$0xff] %v1758
  %1775 = vst [vmem:[#allocation4 + $0x48] sm:$0x7f] %v1759
  %1776 = vst [vmem:[#allocation4 + $0x50] sm:$0x7f] %v1760
  %1777 = vst [vmem:[#allocation4 + $0x58] sm:$0x7f] %v1761
  %1778 = vst [vmem:[#allocation4 + $0x60] sm:$0x7f] %v1762
  %1779 = vst [vmem:[#allocation4 + $0x68] sm:$0x7f] %v1763
  %1780 = vst [vmem:[#allocation4 + $0x70] sm:$0x7f] %v1764
  %1781 = vst [vmem:[#allocation4 + $0x78] sm:$0x7f] %v1765
  %1782 = vst [vmem:[#allocation4 + $0x80] sm:$0x7f] %v1766
  %v1783 = vld [vmem:[#allocation4] sm:$0xff]
  %v1784 = vld [vmem:[#allocation4 + $0x8] sm:$0xff]
  %v1785 = vld [vmem:[#allocation4 + $0x10] sm:$0xff]
  %v1786 = vld [vmem:[#allocation4 + $0x18] sm:$0xff]
  %v1787 = vld [vmem:[#allocation4 + $0x20] sm:$0xff]
  %v1788 = vld [vmem:[#allocation4 + $0x28] sm:$0xff]
  %v1789 = vld [vmem:[#allocation4 + $0x30] sm:$0xff]
  %v1790 = vld [vmem:[#allocation4 + $0x38] sm:$0xff]
  %v1791 = vld [vmem:[#allocation4 + $0x48] sm:$0xff]
  %v1792 = vld [vmem:[#allocation4 + $0x50] sm:$0xff]
  %v1793 = vld [vmem:[#allocation4 + $0x58] sm:$0xff]
  %v1794 = vld [vmem:[#allocation4 + $0x60] sm:$0xff]
  %v1795 = vld [vmem:[#allocation4 + $0x68] sm:$0xff]
  %v1796 = vld [vmem:[#allocation4 + $0x70] sm:$0xff]
  %v1797 = vld [vmem:[#allocation4 + $0x78] sm:$0xff]
  %v1798 = vld [vmem:[#allocation4 + $0x80] sm:$0xff]
  %v1799 = vld [vmem:[#allocation4] sm:$0xff]
  %v1800 = vld [vmem:[#allocation4 + $0x8] sm:$0xff]
  %v1801 = vld [vmem:[#allocation4 + $0x10] sm:$0xff]
  %v1802 = vld [vmem:[#allocation4 + $0x18] sm:$0xff]
  %v1803 = vld [vmem:[#allocation4 + $0x20] sm:$0xff]
  %v1804 = vld [vmem:[#allocation4 + $0x28] sm:$0xff]
  %v1805 = vld [vmem:[#allocation4 + $0x30] sm:$0xff]
  %v1806 = vld [vmem:[#allocation4 + $0x38] sm:$0xff]
  %v1807 = vld [vmem:[#allocation4 + $0x40] sm:$0xff]
  %v1808 = vld [vmem:[#allocation4 + $0x48] sm:$0xff]
  %v1809 = vld [vmem:[#allocation4 + $0x50] sm:$0xff]
  %v1810 = vld [vmem:[#allocation4 + $0x58] sm:$0xff]
  %v1811 = vld [vmem:[#allocation4 + $0x60] sm:$0xff]
  %v1812 = vld [vmem:[#allocation4 + $0x68] sm:$0xff]
  %v1813 = vld [vmem:[#allocation4 + $0x70] sm:$0xff]
  %v1814 = vld [vmem:[#allocation4 + $0x78] sm:$0xff]
  %v1815 = vld [vmem:[#allocation4 + $0x80] sm:$0xff]
  %v1816 = vld [vmem:[#allocation4 + $0x88] sm:$0xff]
  %1835 = vrot.lane.b32.xlu0 %v1799, 127
  %v1836 = vpop.permute.xlu0 %1835
  %1837 = vrot.lane.b32.xlu0 %v1800, 127
  %v1838 = vpop.permute.xlu0 %1837
  %1839 = vrot.lane.b32.xlu0 %v1801, 127
  %v1840 = vpop.permute.xlu0 %1839
  %1841 = vrot.lane.b32.xlu0 %v1802, 127
  %v1842 = vpop.permute.xlu0 %1841
  %1843 = vrot.lane.b32.xlu0 %v1803, 127
  %v1844 = vpop.permute.xlu0 %1843
  %1845 = vrot.lane.b32.xlu0 %v1804, 127
  %v1846 = vpop.permute.xlu0 %1845
  %1847 = vrot.lane.b32.xlu0 %v1805, 127
  %v1848 = vpop.permute.xlu0 %1847
  %1849 = vrot.lane.b32.xlu0 %v1806, 127
  %v1850 = vpop.permute.xlu0 %1849
  %1851 = vrot.lane.b32.xlu0 %v1807, 127
  %v1852 = vpop.permute.xlu0 %1851
  %1853 = vrot.lane.b32.xlu0 %v1808, 127
  %v1854 = vpop.permute.xlu0 %1853
  %1855 = vrot.lane.b32.xlu0 %v1809, 127
  %v1856 = vpop.permute.xlu0 %1855
  %1857 = vrot.lane.b32.xlu0 %v1810, 127
  %v1858 = vpop.permute.xlu0 %1857
  %1859 = vrot.lane.b32.xlu0 %v1811, 127
  %v1860 = vpop.permute.xlu0 %1859
  %1861 = vrot.lane.b32.xlu0 %v1812, 127
  %v1862 = vpop.permute.xlu0 %1861
  %1863 = vrot.lane.b32.xlu0 %v1813, 127
  %v1864 = vpop.permute.xlu0 %1863
  %1865 = vrot.lane.b32.xlu0 %v1814, 127
  %v1866 = vpop.permute.xlu0 %1865
  %1867 = vrot.lane.b32.xlu0 %v1815, 127
  %v1868 = vpop.permute.xlu0 %1867
  %1869 = vrot.lane.b32.xlu0 %v1816, 127
  %v1870 = vpop.permute.xlu0 %1869
  %v1871 = vsel %vm801, %v1836, %v1838
  %v1872 = vsel %vm801, %v1838, %v1840
  %v1873 = vsel %vm801, %v1840, %v1842
  %v1874 = vsel %vm801, %v1842, %v1844
  %v1875 = vsel %vm801, %v1844, %v1846
  %v1876 = vsel %vm801, %v1846, %v1848
  %v1877 = vsel %vm801, %v1848, %v1850
  %v1878 = vsel %vm801, %v1850, %v1852
  %v1879 = vsel %vm801, %v1854, %v1856
  %v1880 = vsel %vm801, %v1856, %v1858
  %v1881 = vsel %vm801, %v1858, %v1860
  %v1882 = vsel %vm801, %v1860, %v1862
  %v1883 = vsel %vm801, %v1862, %v1864
  %v1884 = vsel %vm801, %v1864, %v1866
  %v1885 = vsel %vm801, %v1866, %v1868
  %v1886 = vsel %vm801, %v1868, %v1870
  %1903 = vrot.lane.b32.xlu0 %v1799, 96
  %v1904 = vpop.permute.xlu0 %1903
  %1905 = vrot.lane.b32.xlu0 %v1800, 96
  %v1906 = vpop.permute.xlu0 %1905
  %1907 = vrot.lane.b32.xlu0 %v1801, 96
  %v1908 = vpop.permute.xlu0 %1907
  %1909 = vrot.lane.b32.xlu0 %v1802, 96
  %v1910 = vpop.permute.xlu0 %1909
  %1911 = vrot.lane.b32.xlu0 %v1803, 96
  %v1912 = vpop.permute.xlu0 %1911
  %1913 = vrot.lane.b32.xlu0 %v1804, 96
  %v1914 = vpop.permute.xlu0 %1913
  %1915 = vrot.lane.b32.xlu0 %v1805, 96
  %v1916 = vpop.permute.xlu0 %1915
  %1917 = vrot.lane.b32.xlu0 %v1806, 96
  %v1918 = vpop.permute.xlu0 %1917
  %1919 = vrot.lane.b32.xlu0 %v1807, 96
  %v1920 = vpop.permute.xlu0 %1919
  %1921 = vrot.lane.b32.xlu0 %v1808, 96
  %v1922 = vpop.permute.xlu0 %1921
  %1923 = vrot.lane.b32.xlu0 %v1809, 96
  %v1924 = vpop.permute.xlu0 %1923
  %1925 = vrot.lane.b32.xlu0 %v1810, 96
  %v1926 = vpop.permute.xlu0 %1925
  %1927 = vrot.lane.b32.xlu0 %v1811, 96
  %v1928 = vpop.permute.xlu0 %1927
  %1929 = vrot.lane.b32.xlu0 %v1812, 96
  %v1930 = vpop.permute.xlu0 %1929
  %1931 = vrot.lane.b32.xlu0 %v1813, 96
  %v1932 = vpop.permute.xlu0 %1931
  %1933 = vrot.lane.b32.xlu0 %v1814, 96
  %v1934 = vpop.permute.xlu0 %1933
  %1935 = vrot.lane.b32.xlu0 %v1815, 96
  %v1936 = vpop.permute.xlu0 %1935
  %1937 = vrot.lane.b32.xlu0 %v1816, 96
  %v1938 = vpop.permute.xlu0 %1937
  %v1939 = vsel %vm836, %v1904, %v1906
  %v1940 = vsel %vm836, %v1906, %v1908
  %v1941 = vsel %vm836, %v1908, %v1910
  %v1942 = vsel %vm836, %v1910, %v1912
  %v1943 = vsel %vm836, %v1912, %v1914
  %v1944 = vsel %vm836, %v1914, %v1916
  %v1945 = vsel %vm836, %v1916, %v1918
  %v1946 = vsel %vm836, %v1918, %v1920
  %v1947 = vsel %vm836, %v1922, %v1924
  %v1948 = vsel %vm836, %v1924, %v1926
  %v1949 = vsel %vm836, %v1926, %v1928
  %v1950 = vsel %vm836, %v1928, %v1930
  %v1951 = vsel %vm836, %v1930, %v1932
  %v1952 = vsel %vm836, %v1932, %v1934
  %v1953 = vsel %vm836, %v1934, %v1936
  %v1954 = vsel %vm836, %v1936, %v1938
  %1971 = vrot.lane.b32.xlu0 %v1799, 95
  %v1972 = vpop.permute.xlu0 %1971
  %1973 = vrot.lane.b32.xlu0 %v1800, 95
  %v1974 = vpop.permute.xlu0 %1973
  %1975 = vrot.lane.b32.xlu0 %v1801, 95
  %v1976 = vpop.permute.xlu0 %1975
  %1977 = vrot.lane.b32.xlu0 %v1802, 95
  %v1978 = vpop.permute.xlu0 %1977
  %1979 = vrot.lane.b32.xlu0 %v1803, 95
  %v1980 = vpop.permute.xlu0 %1979
  %1981 = vrot.lane.b32.xlu0 %v1804, 95
  %v1982 = vpop.permute.xlu0 %1981
  %1983 = vrot.lane.b32.xlu0 %v1805, 95
  %v1984 = vpop.permute.xlu0 %1983
  %1985 = vrot.lane.b32.xlu0 %v1806, 95
  %v1986 = vpop.permute.xlu0 %1985
  %1987 = vrot.lane.b32.xlu0 %v1807, 95
  %v1988 = vpop.permute.xlu0 %1987
  %1989 = vrot.lane.b32.xlu0 %v1808, 95
  %v1990 = vpop.permute.xlu0 %1989
  %1991 = vrot.lane.b32.xlu0 %v1809, 95
  %v1992 = vpop.permute.xlu0 %1991
  %1993 = vrot.lane.b32.xlu0 %v1810, 95
  %v1994 = vpop.permute.xlu0 %1993
  %1995 = vrot.lane.b32.xlu0 %v1811, 95
  %v1996 = vpop.permute.xlu0 %1995
  %1997 = vrot.lane.b32.xlu0 %v1812, 95
  %v1998 = vpop.permute.xlu0 %1997
  %1999 = vrot.lane.b32.xlu0 %v1813, 95
  %v2000 = vpop.permute.xlu0 %1999
  %2001 = vrot.lane.b32.xlu0 %v1814, 95
  %v2002 = vpop.permute.xlu0 %2001
  %2003 = vrot.lane.b32.xlu0 %v1815, 95
  %v2004 = vpop.permute.xlu0 %2003
  %2005 = vrot.lane.b32.xlu0 %v1816, 95
  %v2006 = vpop.permute.xlu0 %2005
  %v2007 = vsel %vm871, %v1972, %v1974
  %v2008 = vsel %vm871, %v1974, %v1976
  %v2009 = vsel %vm871, %v1976, %v1978
  %v2010 = vsel %vm871, %v1978, %v1980
  %v2011 = vsel %vm871, %v1980, %v1982
  %v2012 = vsel %vm871, %v1982, %v1984
  %v2013 = vsel %vm871, %v1984, %v1986
  %v2014 = vsel %vm871, %v1986, %v1988
  %v2015 = vsel %vm871, %v1990, %v1992
  %v2016 = vsel %vm871, %v1992, %v1994
  %v2017 = vsel %vm871, %v1994, %v1996
  %v2018 = vsel %vm871, %v1996, %v1998
  %v2019 = vsel %vm871, %v1998, %v2000
  %v2020 = vsel %vm871, %v2000, %v2002
  %v2021 = vsel %vm871, %v2002, %v2004
  %v2022 = vsel %vm871, %v2004, %v2006
  %v2039 = vld [vmem:[%s9] sm:$0xff]
  %v2040 = vld [vmem:[%s9 + $0x8] sm:$0x7f]
  %v2041 = vld [vmem:[%s10] sm:$0xff]
  %v2042 = vld [vmem:[%s10 + $0x8] sm:$0x7f]
  %2044 = vset.pattern.permute.xlu0 0
  %2045 = vperm.xlu0 %2044, %v2041
  %v2046 = vpop.permute.xlu0 %2045
  %2049 = vset.pattern.permute.xlu0 0
  %2050 = vperm.xlu0 %2049, %v2042
  %v2051 = vpop.permute.xlu0 %2050
  %vm2053 = vcmask 523264
  %v2055 = vsel %vm2053, %v2039, 0
  %v2058 = vsel %vm2053, %v2040, 0
  %2060 = vmatprep.subr.mxu0 %v1784
  %2061 = vmatpush1.msra.mxu0 %v1783
  %2062 = vmatprep.subr.mxu0 %v1792
  %2063 = vmatpush1.msra.mxu0 %v1791
  %2064 = vmatprep.subr.mxu0 %v1872
  %2065 = vmatpush1.msra.mxu0 %v1871
  %2066 = vmatprep.subr.mxu0 %v1880
  %2067 = vmatpush1.msra.mxu0 %v1879
  %2068 = vmatprep.subr.mxu0 %v1940
  %2069 = vmatpush1.msra.mxu0 %v1939
  %2070 = vmatprep.subr.mxu0 %v1948
  %2071 = vmatpush1.msra.mxu0 %v1947
  %2072 = vmatprep.subr.mxu0 %v2008
  %2073 = vmatpush1.msra.mxu0 %v2007
  %2074 = vmatprep.subr.mxu0 %v2016
  %2075 = vmatpush1.msra.mxu0 %v2015
  %2076 = vmatprep.subr.mxu0 0.0
  %2077 = vmatpush1.msra.mxu0 0.0
  %2078 = vmatprep.subr.mxu0 0.0
  %2079 = vmatpush1.msra.mxu0 0.0
  %2080 = vmatprep.subr.mxu0 0.0
  %2081 = vmatpush1.msra.mxu0 0.0
  %2082 = vmatprep.subr.mxu0 0.0
  %2083 = vmatpush1.msra.mxu0 0.0
  %2084 = vmatprep.subr.mxu0 0.0
  %2085 = vmatpush1.msra.mxu0 0.0
  %2086 = vmatprep.subr.mxu0 0.0
  %2087 = vmatpush1.msra.mxu0 0.0
  %2088 = vmatprep.subr.mxu0 0.0
  %2089 = vmatpush1.msra.mxu0 0.0
  %2090 = vmatprep.subr.mxu0 0.0
  %2091 = vmatpush1.msra.mxu0 0.0
  %2092 = vmatprep.subr.mxu0 0.0
  %2093 = vmatpush1.msra.mxu0 0.0
  %2094 = vmatprep.subr.mxu0 0.0
  %2095 = vmatpush1.msra.mxu0 0.0
  %2096 = vmatprep.subr.mxu0 0.0
  %2097 = vmatpush1.msra.mxu0 0.0
  %2098 = vmatprep.subr.mxu0 0.0
  %2099 = vmatpush1.msra.mxu0 0.0
  %2100 = vmatprep.subr.mxu0 0.0
  %2101 = vmatpush1.msra.mxu0 0.0
  %2102 = vmatprep.subr.mxu0 0.0
  %2103 = vmatpush1.msra.mxu0 0.0
  %2104 = vmatprep.subr.mxu0 0.0
  %2105 = vmatpush1.msra.mxu0 0.0
  %2106 = vmatprep.subr.mxu0 0.0
  %2107 = vmatpush1.msra.mxu0 0.0
  %2108 = vmatprep.subr.mxu0 0.0
  %2109 = vmatpush1.msra.mxu0 0.0
  %2110 = vmatprep.subr.mxu0 0.0
  %2111 = vmatpush1.msra.mxu0 0.0
  %2112 = vmatprep.subr.mxu0 0.0
  %2113 = vmatpush1.msra.mxu0 0.0
  %2114 = vmatprep.subr.mxu0 0.0
  %2115 = vmatpush1.msra.mxu0 0.0
  %2116 = vmatprep.subr.mxu0 0.0
  %2117 = vmatpush1.msra.mxu0 0.0
  %2118 = vmatprep.subr.mxu0 0.0
  %2119 = vmatpush1.msra.mxu0 0.0
  %2120 = vmatprep.subr.mxu0 0.0
  %2121 = vmatpush1.msra.mxu0 0.0
  %2122 = vmatprep.subr.mxu0 0.0
  %2123 = vmatpush1.msra.mxu0 0.0
  %2124 = vmatprep.mubr.f32.mxu0 0.0
  %2125 = vmatmul.mubr.f32.gmra.mrb[0].mxu0 %v2055
  %v2126 = vpop.f32.mrb[0].mxu0
  %v2127 = vadd.f32 %v2046, %v2126
  %v2128 = vpop.f32.mrb[0].mxu0
  %v2129 = vadd.f32 %v2046, %v2128
  %2130 = vmatprep.mubr.f32.mxu0 0.0
  %2131 = vmatmul.mubr.f32.gmra.mrb[0].mxu0 %v2058
  %v2132 = vpop.f32.mrb[0].mxu0
  %v2133 = vadd.f32 %v2051, %v2132
  %v2134 = vpop.f32.mrb[0].mxu0
  %v2135 = vadd.f32 %v2051, %v2134
  %2136 = vdwg.mxu0
  %2137 = vmatprep.subr.mxu0 %v1786
  %2138 = vmatpush1.msra.mxu0 %v1785
  %2139 = vmatprep.subr.mxu0 %v1794
  %2140 = vmatpush1.msra.mxu0 %v1793
  %2141 = vmatprep.subr.mxu0 %v1874
  %2142 = vmatpush1.msra.mxu0 %v1873
  %2143 = vmatprep.subr.mxu0 %v1882
  %2144 = vmatpush1.msra.mxu0 %v1881
  %2145 = vmatprep.subr.mxu0 %v1942
  %2146 = vmatpush1.msra.mxu0 %v1941
  %2147 = vmatprep.subr.mxu0 %v1950
  %2148 = vmatpush1.msra.mxu0 %v1949
  %2149 = vmatprep.subr.mxu0 %v2010
  %2150 = vmatpush1.msra.mxu0 %v2009
  %2151 = vmatprep.subr.mxu0 %v2018
  %2152 = vmatpush1.msra.mxu0 %v2017
  %2153 = vmatprep.subr.mxu0 0.0
  %2154 = vmatpush1.msra.mxu0 0.0
  %2155 = vmatprep.subr.mxu0 0.0
  %2156 = vmatpush1.msra.mxu0 0.0
  %2157 = vmatprep.subr.mxu0 0.0
  %2158 = vmatpush1.msra.mxu0 0.0
  %2159 = vmatprep.subr.mxu0 0.0
  %2160 = vmatpush1.msra.mxu0 0.0
  %2161 = vmatprep.subr.mxu0 0.0
  %2162 = vmatpush1.msra.mxu0 0.0
  %2163 = vmatprep.subr.mxu0 0.0
  %2164 = vmatpush1.msra.mxu0 0.0
  %2165 = vmatprep.subr.mxu0 0.0
  %2166 = vmatpush1.msra.mxu0 0.0
  %2167 = vmatprep.subr.mxu0 0.0
  %2168 = vmatpush1.msra.mxu0 0.0
  %2169 = vmatprep.subr.mxu0 0.0
  %2170 = vmatpush1.msra.mxu0 0.0
  %2171 = vmatprep.subr.mxu0 0.0
  %2172 = vmatpush1.msra.mxu0 0.0
  %2173 = vmatprep.subr.mxu0 0.0
  %2174 = vmatpush1.msra.mxu0 0.0
  %2175 = vmatprep.subr.mxu0 0.0
  %2176 = vmatpush1.msra.mxu0 0.0
  %2177 = vmatprep.subr.mxu0 0.0
  %2178 = vmatpush1.msra.mxu0 0.0
  %2179 = vmatprep.subr.mxu0 0.0
  %2180 = vmatpush1.msra.mxu0 0.0
  %2181 = vmatprep.subr.mxu0 0.0
  %2182 = vmatpush1.msra.mxu0 0.0
  %2183 = vmatprep.subr.mxu0 0.0
  %2184 = vmatpush1.msra.mxu0 0.0
  %2185 = vmatprep.subr.mxu0 0.0
  %2186 = vmatpush1.msra.mxu0 0.0
  %2187 = vmatprep.subr.mxu0 0.0
  %2188 = vmatpush1.msra.mxu0 0.0
  %2189 = vmatprep.subr.mxu0 0.0
  %2190 = vmatpush1.msra.mxu0 0.0
  %2191 = vmatprep.subr.mxu0 0.0
  %2192 = vmatpush1.msra.mxu0 0.0
  %2193 = vmatprep.subr.mxu0 0.0
  %2194 = vmatpush1.msra.mxu0 0.0
  %2195 = vmatprep.subr.mxu0 0.0
  %2196 = vmatpush1.msra.mxu0 0.0
  %2197 = vmatprep.subr.mxu0 0.0
  %2198 = vmatpush1.msra.mxu0 0.0
  %2199 = vmatprep.subr.mxu0 0.0
  %2200 = vmatpush1.msra.mxu0 0.0
  %2201 = vmatprep.mubr.f32.mxu0 0.0
  %2202 = vmatmul.mubr.f32.gmra.mrb[0].mxu0 %v2055
  %v2203 = vpop.f32.mrb[0].mxu0
  %v2204 = vadd.f32 %v2046, %v2203
  %v2205 = vpop.f32.mrb[0].mxu0
  %v2206 = vadd.f32 %v2046, %v2205
  %2207 = vmatprep.mubr.f32.mxu0 0.0
  %2208 = vmatmul.mubr.f32.gmra.mrb[0].mxu0 %v2058
  %v2209 = vpop.f32.mrb[0].mxu0
  %v2210 = vadd.f32 %v2051, %v2209
  %v2211 = vpop.f32.mrb[0].mxu0
  %v2212 = vadd.f32 %v2051, %v2211
  %2213 = vdwg.mxu0
  %2214 = vmatprep.subr.mxu0 %v1788
  %2215 = vmatpush1.msra.mxu0 %v1787
  %2216 = vmatprep.subr.mxu0 %v1796
  %2217 = vmatpush1.msra.mxu0 %v1795
  %2218 = vmatprep.subr.mxu0 %v1876
  %2219 = vmatpush1.msra.mxu0 %v1875
  %2220 = vmatprep.subr.mxu0 %v1884
  %2221 = vmatpush1.msra.mxu0 %v1883
  %2222 = vmatprep.subr.mxu0 %v1944
  %2223 = vmatpush1.msra.mxu0 %v1943
  %2224 = vmatprep.subr.mxu0 %v1952
  %2225 = vmatpush1.msra.mxu0 %v1951
  %2226 = vmatprep.subr.mxu0 %v2012
  %2227 = vmatpush1.msra.mxu0 %v2011
  %2228 = vmatprep.subr.mxu0 %v2020
  %2229 = vmatpush1.msra.mxu0 %v2019
  %2230 = vmatprep.subr.mxu0 0.0
  %2231 = vmatpush1.msra.mxu0 0.0
  %2232 = vmatprep.subr.mxu0 0.0
  %2233 = vmatpush1.msra.mxu0 0.0
  %2234 = vmatprep.subr.mxu0 0.0
  %2235 = vmatpush1.msra.mxu0 0.0
  %2236 = vmatprep.subr.mxu0 0.0
  %2237 = vmatpush1.msra.mxu0 0.0
  %2238 = vmatprep.subr.mxu0 0.0
  %2239 = vmatpush1.msra.mxu0 0.0
  %2240 = vmatprep.subr.mxu0 0.0
  %2241 = vmatpush1.msra.mxu0 0.0
  %2242 = vmatprep.subr.mxu0 0.0
  %2243 = vmatpush1.msra.mxu0 0.0
  %2244 = vmatprep.subr.mxu0 0.0
  %2245 = vmatpush1.msra.mxu0 0.0
  %2246 = vmatprep.subr.mxu0 0.0
  %2247 = vmatpush1.msra.mxu0 0.0
  %2248 = vmatprep.subr.mxu0 0.0
  %2249 = vmatpush1.msra.mxu0 0.0
  %2250 = vmatprep.subr.mxu0 0.0
  %2251 = vmatpush1.msra.mxu0 0.0
  %2252 = vmatprep.subr.mxu0 0.0
  %2253 = vmatpush1.msra.mxu0 0.0
  %2254 = vmatprep.subr.mxu0 0.0
  %2255 = vmatpush1.msra.mxu0 0.0
  %2256 = vmatprep.subr.mxu0 0.0
  %2257 = vmatpush1.msra.mxu0 0.0
  %2258 = vmatprep.subr.mxu0 0.0
  %2259 = vmatpush1.msra.mxu0 0.0
  %2260 = vmatprep.subr.mxu0 0.0
  %2261 = vmatpush1.msra.mxu0 0.0
  %2262 = vmatprep.subr.mxu0 0.0
  %2263 = vmatpush1.msra.mxu0 0.0
  %2264 = vmatprep.subr.mxu0 0.0
  %2265 = vmatpush1.msra.mxu0 0.0
  %2266 = vmatprep.subr.mxu0 0.0
  %2267 = vmatpush1.msra.mxu0 0.0
  %2268 = vmatprep.subr.mxu0 0.0
  %2269 = vmatpush1.msra.mxu0 0.0
  %2270 = vmatprep.subr.mxu0 0.0
  %2271 = vmatpush1.msra.mxu0 0.0
  %2272 = vmatprep.subr.mxu0 0.0
  %2273 = vmatpush1.msra.mxu0 0.0
  %2274 = vmatprep.subr.mxu0 0.0
  %2275 = vmatpush1.msra.mxu0 0.0
  %2276 = vmatprep.subr.mxu0 0.0
  %2277 = vmatpush1.msra.mxu0 0.0
  %2278 = vmatprep.mubr.f32.mxu0 0.0
  %2279 = vmatmul.mubr.f32.gmra.mrb[0].mxu0 %v2055
  %v2280 = vpop.f32.mrb[0].mxu0
  %v2281 = vadd.f32 %v2046, %v2280
  %v2282 = vpop.f32.mrb[0].mxu0
  %v2283 = vadd.f32 %v2046, %v2282
  %2284 = vmatprep.mubr.f32.mxu0 0.0
  %2285 = vmatmul.mubr.f32.gmra.mrb[0].mxu0 %v2058
  %v2286 = vpop.f32.mrb[0].mxu0
  %v2287 = vadd.f32 %v2051, %v2286
  %v2288 = vpop.f32.mrb[0].mxu0
  %v2289 = vadd.f32 %v2051, %v2288
  %2290 = vdwg.mxu0
  %2291 = vmatprep.subr.mxu0 %v1790
  %2292 = vmatpush1.msra.mxu0 %v1789
  %2293 = vmatprep.subr.mxu0 %v1798
  %2294 = vmatpush1.msra.mxu0 %v1797
  %2295 = vmatprep.subr.mxu0 %v1878
  %2296 = vmatpush1.msra.mxu0 %v1877
  %2297 = vmatprep.subr.mxu0 %v1886
  %2298 = vmatpush1.msra.mxu0 %v1885
  %2299 = vmatprep.subr.mxu0 %v1946
  %2300 = vmatpush1.msra.mxu0 %v1945
  %2301 = vmatprep.subr.mxu0 %v1954
  %2302 = vmatpush1.msra.mxu0 %v1953
  %2303 = vmatprep.subr.mxu0 %v2014
  %2304 = vmatpush1.msra.mxu0 %v2013
  %2305 = vmatprep.subr.mxu0 %v2022
  %2306 = vmatpush1.msra.mxu0 %v2021
  %2307 = vmatprep.subr.mxu0 0.0
  %2308 = vmatpush1.msra.mxu0 0.0
  %2309 = vmatprep.subr.mxu0 0.0
  %2310 = vmatpush1.msra.mxu0 0.0
  %2311 = vmatprep.subr.mxu0 0.0
  %2312 = vmatpush1.msra.mxu0 0.0
  %2313 = vmatprep.subr.mxu0 0.0
  %2314 = vmatpush1.msra.mxu0 0.0
  %2315 = vmatprep.subr.mxu0 0.0
  %2316 = vmatpush1.msra.mxu0 0.0
  %2317 = vmatprep.subr.mxu0 0.0
  %2318 = vmatpush1.msra.mxu0 0.0
  %2319 = vmatprep.subr.mxu0 0.0
  %2320 = vmatpush1.msra.mxu0 0.0
  %2321 = vmatprep.subr.mxu0 0.0
  %2322 = vmatpush1.msra.mxu0 0.0
  %2323 = vmatprep.subr.mxu0 0.0
  %2324 = vmatpush1.msra.mxu0 0.0
  %2325 = vmatprep.subr.mxu0 0.0
  %2326 = vmatpush1.msra.mxu0 0.0
  %2327 = vmatprep.subr.mxu0 0.0
  %2328 = vmatpush1.msra.mxu0 0.0
  %2329 = vmatprep.subr.mxu0 0.0
  %2330 = vmatpush1.msra.mxu0 0.0
  %2331 = vmatprep.subr.mxu0 0.0
  %2332 = vmatpush1.msra.mxu0 0.0
  %2333 = vmatprep.subr.mxu0 0.0
  %2334 = vmatpush1.msra.mxu0 0.0
  %2335 = vmatprep.subr.mxu0 0.0
  %2336 = vmatpush1.msra.mxu0 0.0
  %2337 = vmatprep.subr.mxu0 0.0
  %2338 = vmatpush1.msra.mxu0 0.0
  %2339 = vmatprep.subr.mxu0 0.0
  %2340 = vmatpush1.msra.mxu0 0.0
  %2341 = vmatprep.subr.mxu0 0.0
  %2342 = vmatpush1.msra.mxu0 0.0
  %2343 = vmatprep.subr.mxu0 0.0
  %2344 = vmatpush1.msra.mxu0 0.0
  %2345 = vmatprep.subr.mxu0 0.0
  %2346 = vmatpush1.msra.mxu0 0.0
  %2347 = vmatprep.subr.mxu0 0.0
  %2348 = vmatpush1.msra.mxu0 0.0
  %2349 = vmatprep.subr.mxu0 0.0
  %2350 = vmatpush1.msra.mxu0 0.0
  %2351 = vmatprep.subr.mxu0 0.0
  %2352 = vmatpush1.msra.mxu0 0.0
  %2353 = vmatprep.subr.mxu0 0.0
  %2354 = vmatpush1.msra.mxu0 0.0
  %2355 = vmatprep.mubr.f32.mxu0 0.0
  %2356 = vmatmul.mubr.f32.gmra.mrb[0].mxu0 %v2055
  %v2357 = vpop.f32.mrb[0].mxu0
  %v2358 = vadd.f32 %v2046, %v2357
  %v2359 = vpop.f32.mrb[0].mxu0
  %v2360 = vadd.f32 %v2046, %v2359
  %2361 = vmatprep.mubr.f32.mxu0 0.0
  %2362 = vmatmul.mubr.f32.gmra.mrb[0].mxu0 %v2058
  %v2363 = vpop.f32.mrb[0].mxu0
  %v2364 = vadd.f32 %v2051, %v2363
  %v2365 = vpop.f32.mrb[0].mxu0
  %v2366 = vadd.f32 %v2051, %v2365
  %2367 = vdwg.mxu0
  %v2368 = vmul.f32 %v2127, 0.5
  %v2369 = vmul.f32 %v2129, 0.5
  %v2370 = vmul.f32 %v2204, 0.5
  %v2371 = vmul.f32 %v2206, 0.5
  %v2372 = vmul.f32 %v2281, 0.5
  %v2373 = vmul.f32 %v2283, 0.5
  %v2374 = vmul.f32 %v2358, 0.5
  %v2375 = vmul.f32 %v2360, 0.5
  %v2376 = vmul.f32 %v2133, 0.5
  %v2377 = vmul.f32 %v2135, 0.5
  %v2378 = vmul.f32 %v2210, 0.5
  %v2379 = vmul.f32 %v2212, 0.5
  %v2380 = vmul.f32 %v2287, 0.5
  %v2381 = vmul.f32 %v2289, 0.5
  %v2382 = vmul.f32 %v2364, 0.5
  %v2383 = vmul.f32 %v2366, 0.5
  %v2384 = vmul.f32 %v2127, 0.70710677
  %v2385 = vmul.f32 %v2129, 0.70710677
  %v2386 = vmul.f32 %v2204, 0.70710677
  %v2387 = vmul.f32 %v2206, 0.70710677
  %v2388 = vmul.f32 %v2281, 0.70710677
  %v2389 = vmul.f32 %v2283, 0.70710677
  %v2390 = vmul.f32 %v2358, 0.70710677
  %v2391 = vmul.f32 %v2360, 0.70710677
  %v2392 = vmul.f32 %v2133, 0.70710677
  %v2393 = vmul.f32 %v2135, 0.70710677
  %v2394 = vmul.f32 %v2210, 0.70710677
  %v2395 = vmul.f32 %v2212, 0.70710677
  %v2396 = vmul.f32 %v2287, 0.70710677
  %v2397 = vmul.f32 %v2289, 0.70710677
  %v2398 = vmul.f32 %v2364, 0.70710677
  %v2399 = vmul.f32 %v2366, 0.70710677
  %v2400 = verf.f32.pop %v2384
  %v2401 = verf.f32.pop %v2385
  %v2402 = verf.f32.pop %v2386
  %v2403 = verf.f32.pop %v2387
  %v2404 = verf.f32.pop %v2388
  %v2405 = verf.f32.pop %v2389
  %v2406 = verf.f32.pop %v2390
  %v2407 = verf.f32.pop %v2391
  %v2408 = verf.f32.pop %v2392
  %v2409 = verf.f32.pop %v2393
  %v2410 = verf.f32.pop %v2394
  %v2411 = verf.f32.pop %v2395
  %v2412 = verf.f32.pop %v2396
  %v2413 = verf.f32.pop %v2397
  %v2414 = verf.f32.pop %v2398
  %v2415 = verf.f32.pop %v2399
  %v2416 = vadd.f32 %v2400, 1.0
  %v2417 = vadd.f32 %v2401, 1.0
  %v2418 = vadd.f32 %v2402, 1.0
  %v2419 = vadd.f32 %v2403, 1.0
  %v2420 = vadd.f32 %v2404, 1.0
  %v2421 = vadd.f32 %v2405, 1.0
  %v2422 = vadd.f32 %v2406, 1.0
  %v2423 = vadd.f32 %v2407, 1.0
  %v2424 = vadd.f32 %v2408, 1.0
  %v2425 = vadd.f32 %v2409, 1.0
  %v2426 = vadd.f32 %v2410, 1.0
  %v2427 = vadd.f32 %v2411, 1.0
  %v2428 = vadd.f32 %v2412, 1.0
  %v2429 = vadd.f32 %v2413, 1.0
  %v2430 = vadd.f32 %v2414, 1.0
  %v2431 = vadd.f32 %v2415, 1.0
  %v2432 = vmul.f32 %v2368, %v2416
  %v2433 = vmul.f32 %v2369, %v2417
  %v2434 = vmul.f32 %v2370, %v2418
  %v2435 = vmul.f32 %v2371, %v2419
  %v2436 = vmul.f32 %v2372, %v2420
  %v2437 = vmul.f32 %v2373, %v2421
  %v2438 = vmul.f32 %v2374, %v2422
  %v2439 = vmul.f32 %v2375, %v2423
  %v2440 = vmul.f32 %v2376, %v2424
  %v2441 = vmul.f32 %v2377, %v2425
  %v2442 = vmul.f32 %v2378, %v2426
  %v2443 = vmul.f32 %v2379, %v2427
  %v2444 = vmul.f32 %v2380, %v2428
  %v2445 = vmul.f32 %v2381, %v2429
  %v2446 = vmul.f32 %v2382, %v2430
  %v2447 = vmul.f32 %v2383, %v2431
  %2448 = vst [vmem:[#allocation5] sm:$0xff] %v2432
  %2449 = vst [vmem:[#allocation5 + $0x8] sm:$0xff] %v2433
  %2450 = vst [vmem:[#allocation5 + $0x10] sm:$0xff] %v2434
  %2451 = vst [vmem:[#allocation5 + $0x18] sm:$0xff] %v2435
  %2452 = vst [vmem:[#allocation5 + $0x20] sm:$0xff] %v2436
  %2453 = vst [vmem:[#allocation5 + $0x28] sm:$0xff] %v2437
  %2454 = vst [vmem:[#allocation5 + $0x30] sm:$0xff] %v2438
  %2455 = vst [vmem:[#allocation5 + $0x38] sm:$0xff] %v2439
  %2456 = vst [vmem:[#allocation5 + $0x48] sm:$0x7f] %v2440
  %2457 = vst [vmem:[#allocation5 + $0x50] sm:$0x7f] %v2441
  %2458 = vst [vmem:[#allocation5 + $0x58] sm:$0x7f] %v2442
  %2459 = vst [vmem:[#allocation5 + $0x60] sm:$0x7f] %v2443
  %2460 = vst [vmem:[#allocation5 + $0x68] sm:$0x7f] %v2444
  %2461 = vst [vmem:[#allocation5 + $0x70] sm:$0x7f] %v2445
  %2462 = vst [vmem:[#allocation5 + $0x78] sm:$0x7f] %v2446
  %2463 = vst [vmem:[#allocation5 + $0x80] sm:$0x7f] %v2447
  %v2464 = vld [vmem:[#allocation5] sm:$0xff]
  %v2465 = vld [vmem:[#allocation5 + $0x8] sm:$0xff]
  %v2466 = vld [vmem:[#allocation5 + $0x10] sm:$0xff]
  %v2467 = vld [vmem:[#allocation5 + $0x18] sm:$0xff]
  %v2468 = vld [vmem:[#allocation5 + $0x20] sm:$0xff]
  %v2469 = vld [vmem:[#allocation5 + $0x28] sm:$0xff]
  %v2470 = vld [vmem:[#allocation5 + $0x30] sm:$0xff]
  %v2471 = vld [vmem:[#allocation5 + $0x38] sm:$0xff]
  %v2472 = vld [vmem:[#allocation5 + $0x48] sm:$0xff]
  %v2473 = vld [vmem:[#allocation5 + $0x50] sm:$0xff]
  %v2474 = vld [vmem:[#allocation5 + $0x58] sm:$0xff]
  %v2475 = vld [vmem:[#allocation5 + $0x60] sm:$0xff]
  %v2476 = vld [vmem:[#allocation5 + $0x68] sm:$0xff]
  %v2477 = vld [vmem:[#allocation5 + $0x70] sm:$0xff]
  %v2478 = vld [vmem:[#allocation5 + $0x78] sm:$0xff]
  %v2479 = vld [vmem:[#allocation5 + $0x80] sm:$0xff]
  %v2480 = vld [vmem:[#allocation5] sm:$0xff]
  %v2481 = vld [vmem:[#allocation5 + $0x8] sm:$0xff]
  %v2482 = vld [vmem:[#allocation5 + $0x10] sm:$0xff]
  %v2483 = vld [vmem:[#allocation5 + $0x18] sm:$0xff]
  %v2484 = vld [vmem:[#allocation5 + $0x20] sm:$0xff]
  %v2485 = vld [vmem:[#allocation5 + $0x28] sm:$0xff]
  %v2486 = vld [vmem:[#allocation5 + $0x30] sm:$0xff]
  %v2487 = vld [vmem:[#allocation5 + $0x38] sm:$0xff]
  %v2488 = vld [vmem:[#allocation5 + $0x40] sm:$0xff]
  %v2489 = vld [vmem:[#allocation5 + $0x48] sm:$0xff]
  %v2490 = vld [vmem:[#allocation5 + $0x50] sm:$0xff]
  %v2491 = vld [vmem:[#allocation5 + $0x58] sm:$0xff]
  %v2492 = vld [vmem:[#allocation5 + $0x60] sm:$0xff]
  %v2493 = vld [vmem:[#allocation5 + $0x68] sm:$0xff]
  %v2494 = vld [vmem:[#allocation5 + $0x70] sm:$0xff]
  %v2495 = vld [vmem:[#allocation5 + $0x78] sm:$0xff]
  %v2496 = vld [vmem:[#allocation5 + $0x80] sm:$0xff]
  %v2497 = vld [vmem:[#allocation5 + $0x88] sm:$0xff]
  %2516 = vrot.lane.b32.xlu0 %v2480, 127
  %v2517 = vpop.permute.xlu0 %2516
  %2518 = vrot.lane.b32.xlu0 %v2481, 127
  %v2519 = vpop.permute.xlu0 %2518
  %2520 = vrot.lane.b32.xlu0 %v2482, 127
  %v2521 = vpop.permute.xlu0 %2520
  %2522 = vrot.lane.b32.xlu0 %v2483, 127
  %v2523 = vpop.permute.xlu0 %2522
  %2524 = vrot.lane.b32.xlu0 %v2484, 127
  %v2525 = vpop.permute.xlu0 %2524
  %2526 = vrot.lane.b32.xlu0 %v2485, 127
  %v2527 = vpop.permute.xlu0 %2526
  %2528 = vrot.lane.b32.xlu0 %v2486, 127
  %v2529 = vpop.permute.xlu0 %2528
  %2530 = vrot.lane.b32.xlu0 %v2487, 127
  %v2531 = vpop.permute.xlu0 %2530
  %2532 = vrot.lane.b32.xlu0 %v2488, 127
  %v2533 = vpop.permute.xlu0 %2532
  %2534 = vrot.lane.b32.xlu0 %v2489, 127
  %v2535 = vpop.permute.xlu0 %2534
  %2536 = vrot.lane.b32.xlu0 %v2490, 127
  %v2537 = vpop.permute.xlu0 %2536
  %2538 = vrot.lane.b32.xlu0 %v2491, 127
  %v2539 = vpop.permute.xlu0 %2538
  %2540 = vrot.lane.b32.xlu0 %v2492, 127
  %v2541 = vpop.permute.xlu0 %2540
  %2542 = vrot.lane.b32.xlu0 %v2493, 127
  %v2543 = vpop.permute.xlu0 %2542
  %2544 = vrot.lane.b32.xlu0 %v2494, 127
  %v2545 = vpop.permute.xlu0 %2544
  %2546 = vrot.lane.b32.xlu0 %v2495, 127
  %v2547 = vpop.permute.xlu0 %2546
  %2548 = vrot.lane.b32.xlu0 %v2496, 127
  %v2549 = vpop.permute.xlu0 %2548
  %2550 = vrot.lane.b32.xlu0 %v2497, 127
  %v2551 = vpop.permute.xlu0 %2550
  %v2552 = vsel %vm801, %v2517, %v2519
  %v2553 = vsel %vm801, %v2519, %v2521
  %v2554 = vsel %vm801, %v2521, %v2523
  %v2555 = vsel %vm801, %v2523, %v2525
  %v2556 = vsel %vm801, %v2525, %v2527
  %v2557 = vsel %vm801, %v2527, %v2529
  %v2558 = vsel %vm801, %v2529, %v2531
  %v2559 = vsel %vm801, %v2531, %v2533
  %v2560 = vsel %vm801, %v2535, %v2537
  %v2561 = vsel %vm801, %v2537, %v2539
  %v2562 = vsel %vm801, %v2539, %v2541
  %v2563 = vsel %vm801, %v2541, %v2543
  %v2564 = vsel %vm801, %v2543, %v2545
  %v2565 = vsel %vm801, %v2545, %v2547
  %v2566 = vsel %vm801, %v2547, %v2549
  %v2567 = vsel %vm801, %v2549, %v2551
  %2584 = vrot.lane.b32.xlu0 %v2480, 96
  %v2585 = vpop.permute.xlu0 %2584
  %2586 = vrot.lane.b32.xlu0 %v2481, 96
  %v2587 = vpop.permute.xlu0 %2586
  %2588 = vrot.lane.b32.xlu0 %v2482, 96
  %v2589 = vpop.permute.xlu0 %2588
  %2590 = vrot.lane.b32.xlu0 %v2483, 96
  %v2591 = vpop.permute.xlu0 %2590
  %2592 = vrot.lane.b32.xlu0 %v2484, 96
  %v2593 = vpop.permute.xlu0 %2592
  %2594 = vrot.lane.b32.xlu0 %v2485, 96
  %v2595 = vpop.permute.xlu0 %2594
  %2596 = vrot.lane.b32.xlu0 %v2486, 96
  %v2597 = vpop.permute.xlu0 %2596
  %2598 = vrot.lane.b32.xlu0 %v2487, 96
  %v2599 = vpop.permute.xlu0 %2598
  %2600 = vrot.lane.b32.xlu0 %v2488, 96
  %v2601 = vpop.permute.xlu0 %2600
  %2602 = vrot.lane.b32.xlu0 %v2489, 96
  %v2603 = vpop.permute.xlu0 %2602
  %2604 = vrot.lane.b32.xlu0 %v2490, 96
  %v2605 = vpop.permute.xlu0 %2604
  %2606 = vrot.lane.b32.xlu0 %v2491, 96
  %v2607 = vpop.permute.xlu0 %2606
  %2608 = vrot.lane.b32.xlu0 %v2492, 96
  %v2609 = vpop.permute.xlu0 %2608
  %2610 = vrot.lane.b32.xlu0 %v2493, 96
  %v2611 = vpop.permute.xlu0 %2610
  %2612 = vrot.lane.b32.xlu0 %v2494, 96
  %v2613 = vpop.permute.xlu0 %2612
  %2614 = vrot.lane.b32.xlu0 %v2495, 96
  %v2615 = vpop.permute.xlu0 %2614
  %2616 = vrot.lane.b32.xlu0 %v2496, 96
  %v2617 = vpop.permute.xlu0 %2616
  %2618 = vrot.lane.b32.xlu0 %v2497, 96
  %v2619 = vpop.permute.xlu0 %2618
  %v2620 = vsel %vm836, %v2585, %v2587
  %v2621 = vsel %vm836, %v2587, %v2589
  %v2622 = vsel %vm836, %v2589, %v2591
  %v2623 = vsel %vm836, %v2591, %v2593
  %v2624 = vsel %vm836, %v2593, %v2595
  %v2625 = vsel %vm836, %v2595, %v2597
  %v2626 = vsel %vm836, %v2597, %v2599
  %v2627 = vsel %vm836, %v2599, %v2601
  %v2628 = vsel %vm836, %v2603, %v2605
  %v2629 = vsel %vm836, %v2605, %v2607
  %v2630 = vsel %vm836, %v2607, %v2609
  %v2631 = vsel %vm836, %v2609, %v2611
  %v2632 = vsel %vm836, %v2611, %v2613
  %v2633 = vsel %vm836, %v2613, %v2615
  %v2634 = vsel %vm836, %v2615, %v2617
  %v2635 = vsel %vm836, %v2617, %v2619
  %2652 = vrot.lane.b32.xlu0 %v2480, 95
  %v2653 = vpop.permute.xlu0 %2652
  %2654 = vrot.lane.b32.xlu0 %v2481, 95
  %v2655 = vpop.permute.xlu0 %2654
  %2656 = vrot.lane.b32.xlu0 %v2482, 95
  %v2657 = vpop.permute.xlu0 %2656
  %2658 = vrot.lane.b32.xlu0 %v2483, 95
  %v2659 = vpop.permute.xlu0 %2658
  %2660 = vrot.lane.b32.xlu0 %v2484, 95
  %v2661 = vpop.permute.xlu0 %2660
  %2662 = vrot.lane.b32.xlu0 %v2485, 95
  %v2663 = vpop.permute.xlu0 %2662
  %2664 = vrot.lane.b32.xlu0 %v2486, 95
  %v2665 = vpop.permute.xlu0 %2664
  %2666 = vrot.lane.b32.xlu0 %v2487, 95
  %v2667 = vpop.permute.xlu0 %2666
  %2668 = vrot.lane.b32.xlu0 %v2488, 95
  %v2669 = vpop.permute.xlu0 %2668
  %2670 = vrot.lane.b32.xlu0 %v2489, 95
  %v2671 = vpop.permute.xlu0 %2670
  %2672 = vrot.lane.b32.xlu0 %v2490, 95
  %v2673 = vpop.permute.xlu0 %2672
  %2674 = vrot.lane.b32.xlu0 %v2491, 95
  %v2675 = vpop.permute.xlu0 %2674
  %2676 = vrot.lane.b32.xlu0 %v2492, 95
  %v2677 = vpop.permute.xlu0 %2676
  %2678 = vrot.lane.b32.xlu0 %v2493, 95
  %v2679 = vpop.permute.xlu0 %2678
  %2680 = vrot.lane.b32.xlu0 %v2494, 95
  %v2681 = vpop.permute.xlu0 %2680
  %2682 = vrot.lane.b32.xlu0 %v2495, 95
  %v2683 = vpop.permute.xlu0 %2682
  %2684 = vrot.lane.b32.xlu0 %v2496, 95
  %v2685 = vpop.permute.xlu0 %2684
  %2686 = vrot.lane.b32.xlu0 %v2497, 95
  %v2687 = vpop.permute.xlu0 %2686
  %v2688 = vsel %vm871, %v2653, %v2655
  %v2689 = vsel %vm871, %v2655, %v2657
  %v2690 = vsel %vm871, %v2657, %v2659
  %v2691 = vsel %vm871, %v2659, %v2661
  %v2692 = vsel %vm871, %v2661, %v2663
  %v2693 = vsel %vm871, %v2663, %v2665
  %v2694 = vsel %vm871, %v2665, %v2667
  %v2695 = vsel %vm871, %v2667, %v2669
  %v2696 = vsel %vm871, %v2671, %v2673
  %v2697 = vsel %vm871, %v2673, %v2675
  %v2698 = vsel %vm871, %v2675, %v2677
  %v2699 = vsel %vm871, %v2677, %v2679
  %v2700 = vsel %vm871, %v2679, %v2681
  %v2701 = vsel %vm871, %v2681, %v2683
  %v2702 = vsel %vm871, %v2683, %v2685
  %v2703 = vsel %vm871, %v2685, %v2687
  %v2720 = vld [vmem:[%s11] sm:$0x3]
  %v2721 = vld [vmem:[%s12] sm:$0x3]
  %2723 = vset.pattern.permute.xlu0 0
  %2724 = vperm.xlu0 %2723, %v2721
  %v2725 = vpop.permute.xlu0 %2724
  %v2728 = vsel %vm2053, %v2720, 0
  %2730 = vmatprep.subr.mxu0 %v2465
  %2731 = vmatpush1.msra.mxu0 %v2464
  %2732 = vmatprep.subr.mxu0 %v2473
  %2733 = vmatpush1.msra.mxu0 %v2472
  %2734 = vmatprep.subr.mxu0 %v2553
  %2735 = vmatpush1.msra.mxu0 %v2552
  %2736 = vmatprep.subr.mxu0 %v2561
  %2737 = vmatpush1.msra.mxu0 %v2560
  %2738 = vmatprep.subr.mxu0 %v2621
  %2739 = vmatpush1.msra.mxu0 %v2620
  %2740 = vmatprep.subr.mxu0 %v2629
  %2741 = vmatpush1.msra.mxu0 %v2628
  %2742 = vmatprep.subr.mxu0 %v2689
  %2743 = vmatpush1.msra.mxu0 %v2688
  %2744 = vmatprep.subr.mxu0 %v2697
  %2745 = vmatpush1.msra.mxu0 %v2696
  %2746 = vmatprep.subr.mxu0 0.0
  %2747 = vmatpush1.msra.mxu0 0.0
  %2748 = vmatprep.subr.mxu0 0.0
  %2749 = vmatpush1.msra.mxu0 0.0
  %2750 = vmatprep.subr.mxu0 0.0
  %2751 = vmatpush1.msra.mxu0 0.0
  %2752 = vmatprep.subr.mxu0 0.0
  %2753 = vmatpush1.msra.mxu0 0.0
  %2754 = vmatprep.subr.mxu0 0.0
  %2755 = vmatpush1.msra.mxu0 0.0
  %2756 = vmatprep.subr.mxu0 0.0
  %2757 = vmatpush1.msra.mxu0 0.0
  %2758 = vmatprep.subr.mxu0 0.0
  %2759 = vmatpush1.msra.mxu0 0.0
  %2760 = vmatprep.subr.mxu0 0.0
  %2761 = vmatpush1.msra.mxu0 0.0
  %2762 = vmatprep.subr.mxu0 0.0
  %2763 = vmatpush1.msra.mxu0 0.0
  %2764 = vmatprep.subr.mxu0 0.0
  %2765 = vmatpush1.msra.mxu0 0.0
  %2766 = vmatprep.subr.mxu0 0.0
  %2767 = vmatpush1.msra.mxu0 0.0
  %2768 = vmatprep.subr.mxu0 0.0
  %2769 = vmatpush1.msra.mxu0 0.0
  %2770 = vmatprep.subr.mxu0 0.0
  %2771 = vmatpush1.msra.mxu0 0.0
  %2772 = vmatprep.subr.mxu0 0.0
  %2773 = vmatpush1.msra.mxu0 0.0
  %2774 = vmatprep.subr.mxu0 0.0
  %2775 = vmatpush1.msra.mxu0 0.0
  %2776 = vmatprep.subr.mxu0 0.0
  %2777 = vmatpush1.msra.mxu0 0.0
  %2778 = vmatprep.subr.mxu0 0.0
  %2779 = vmatpush1.msra.mxu0 0.0
  %2780 = vmatprep.subr.mxu0 0.0
  %2781 = vmatpush1.msra.mxu0 0.0
  %2782 = vmatprep.subr.mxu0 0.0
  %2783 = vmatpush1.msra.mxu0 0.0
  %2784 = vmatprep.subr.mxu0 0.0
  %2785 = vmatpush1.msra.mxu0 0.0
  %2786 = vmatprep.subr.mxu0 0.0
  %2787 = vmatpush1.msra.mxu0 0.0
  %2788 = vmatprep.subr.mxu0 0.0
  %2789 = vmatpush1.msra.mxu0 0.0
  %2790 = vmatprep.subr.mxu0 0.0
  %2791 = vmatpush1.msra.mxu0 0.0
  %2792 = vmatprep.subr.mxu0 0.0
  %2793 = vmatpush1.msra.mxu0 0.0
  %2794 = vmatprep.mubr.f32.mxu0 0.0
  %2795 = vmatmul.mubr.f32.gmra.mrb[0].mxu0 %v2728
  %v2796 = vpop.f32.mrb[0].mxu0
  %v2797 = vadd.f32 %v2725, %v2796
  %v2798 = vpop.f32.mrb[0].mxu0
  %v2799 = vadd.f32 %v2725, %v2798
  %2800 = vdwg.mxu0
  %2801 = vmatprep.subr.mxu0 %v2467
  %2802 = vmatpush1.msra.mxu0 %v2466
  %2803 = vmatprep.subr.mxu0 %v2475
  %2804 = vmatpush1.msra.mxu0 %v2474
  %2805 = vmatprep.subr.mxu0 %v2555
  %2806 = vmatpush1.msra.mxu0 %v2554
  %2807 = vmatprep.subr.mxu0 %v2563
  %2808 = vmatpush1.msra.mxu0 %v2562
  %2809 = vmatprep.subr.mxu0 %v2623
  %2810 = vmatpush1.msra.mxu0 %v2622
  %2811 = vmatprep.subr.mxu0 %v2631
  %2812 = vmatpush1.msra.mxu0 %v2630
  %2813 = vmatprep.subr.mxu0 %v2691
  %2814 = vmatpush1.msra.mxu0 %v2690
  %2815 = vmatprep.subr.mxu0 %v2699
  %2816 = vmatpush1.msra.mxu0 %v2698
  %2817 = vmatprep.subr.mxu0 0.0
  %2818 = vmatpush1.msra.mxu0 0.0
  %2819 = vmatprep.subr.mxu0 0.0
  %2820 = vmatpush1.msra.mxu0 0.0
  %2821 = vmatprep.subr.mxu0 0.0
  %2822 = vmatpush1.msra.mxu0 0.0
  %2823 = vmatprep.subr.mxu0 0.0
  %2824 = vmatpush1.msra.mxu0 0.0
  %2825 = vmatprep.subr.mxu0 0.0
  %2826 = vmatpush1.msra.mxu0 0.0
  %2827 = vmatprep.subr.mxu0 0.0
  %2828 = vmatpush1.msra.mxu0 0.0
  %2829 = vmatprep.subr.mxu0 0.0
  %2830 = vmatpush1.msra.mxu0 0.0
  %2831 = vmatprep.subr.mxu0 0.0
  %2832 = vmatpush1.msra.mxu0 0.0
  %2833 = vmatprep.subr.mxu0 0.0
  %2834 = vmatpush1.msra.mxu0 0.0
  %2835 = vmatprep.subr.mxu0 0.0
  %2836 = vmatpush1.msra.mxu0 0.0
  %2837 = vmatprep.subr.mxu0 0.0
  %2838 = vmatpush1.msra.mxu0 0.0
  %2839 = vmatprep.subr.mxu0 0.0
  %2840 = vmatpush1.msra.mxu0 0.0
  %2841 = vmatprep.subr.mxu0 0.0
  %2842 = vmatpush1.msra.mxu0 0.0
  %2843 = vmatprep.subr.mxu0 0.0
  %2844 = vmatpush1.msra.mxu0 0.0
  %2845 = vmatprep.subr.mxu0 0.0
  %2846 = vmatpush1.msra.mxu0 0.0
  %2847 = vmatprep.subr.mxu0 0.0
  %2848 = vmatpush1.msra.mxu0 0.0
  %2849 = vmatprep.subr.mxu0 0.0
  %2850 = vmatpush1.msra.mxu0 0.0
  %2851 = vmatprep.subr.mxu0 0.0
  %2852 = vmatpush1.msra.mxu0 0.0
  %2853 = vmatprep.subr.mxu0 0.0
  %2854 = vmatpush1.msra.mxu0 0.0
  %2855 = vmatprep.subr.mxu0 0.0
  %2856 = vmatpush1.msra.mxu0 0.0
  %2857 = vmatprep.subr.mxu0 0.0
  %2858 = vmatpush1.msra.mxu0 0.0
  %2859 = vmatprep.subr.mxu0 0.0
  %2860 = vmatpush1.msra.mxu0 0.0
  %2861 = vmatprep.subr.mxu0 0.0
  %2862 = vmatpush1.msra.mxu0 0.0
  %2863 = vmatprep.subr.mxu0 0.0
  %2864 = vmatpush1.msra.mxu0 0.0
  %2865 = vmatprep.mubr.f32.mxu0 0.0
  %2866 = vmatmul.mubr.f32.gmra.mrb[0].mxu0 %v2728
  %v2867 = vpop.f32.mrb[0].mxu0
  %v2868 = vadd.f32 %v2725, %v2867
  %v2869 = vpop.f32.mrb[0].mxu0
  %v2870 = vadd.f32 %v2725, %v2869
  %2871 = vdwg.mxu0
  %2872 = vmatprep.subr.mxu0 %v2469
  %2873 = vmatpush1.msra.mxu0 %v2468
  %2874 = vmatprep.subr.mxu0 %v2477
  %2875 = vmatpush1.msra.mxu0 %v2476
  %2876 = vmatprep.subr.mxu0 %v2557
  %2877 = vmatpush1.msra.mxu0 %v2556
  %2878 = vmatprep.subr.mxu0 %v2565
  %2879 = vmatpush1.msra.mxu0 %v2564
  %2880 = vmatprep.subr.mxu0 %v2625
  %2881 = vmatpush1.msra.mxu0 %v2624
  %2882 = vmatprep.subr.mxu0 %v2633
  %2883 = vmatpush1.msra.mxu0 %v2632
  %2884 = vmatprep.subr.mxu0 %v2693
  %2885 = vmatpush1.msra.mxu0 %v2692
  %2886 = vmatprep.subr.mxu0 %v2701
  %2887 = vmatpush1.msra.mxu0 %v2700
  %2888 = vmatprep.subr.mxu0 0.0
  %2889 = vmatpush1.msra.mxu0 0.0
  %2890 = vmatprep.subr.mxu0 0.0
  %2891 = vmatpush1.msra.mxu0 0.0
  %2892 = vmatprep.subr.mxu0 0.0
  %2893 = vmatpush1.msra.mxu0 0.0
  %2894 = vmatprep.subr.mxu0 0.0
  %2895 = vmatpush1.msra.mxu0 0.0
  %2896 = vmatprep.subr.mxu0 0.0
  %2897 = vmatpush1.msra.mxu0 0.0
  %2898 = vmatprep.subr.mxu0 0.0
  %2899 = vmatpush1.msra.mxu0 0.0
  %2900 = vmatprep.subr.mxu0 0.0
  %2901 = vmatpush1.msra.mxu0 0.0
  %2902 = vmatprep.subr.mxu0 0.0
  %2903 = vmatpush1.msra.mxu0 0.0
  %2904 = vmatprep.subr.mxu0 0.0
  %2905 = vmatpush1.msra.mxu0 0.0
  %2906 = vmatprep.subr.mxu0 0.0
  %2907 = vmatpush1.msra.mxu0 0.0
  %2908 = vmatprep.subr.mxu0 0.0
  %2909 = vmatpush1.msra.mxu0 0.0
  %2910 = vmatprep.subr.mxu0 0.0
  %2911 = vmatpush1.msra.mxu0 0.0
  %2912 = vmatprep.subr.mxu0 0.0
  %2913 = vmatpush1.msra.mxu0 0.0
  %2914 = vmatprep.subr.mxu0 0.0
  %2915 = vmatpush1.msra.mxu0 0.0
  %2916 = vmatprep.subr.mxu0 0.0
  %2917 = vmatpush1.msra.mxu0 0.0
  %2918 = vmatprep.subr.mxu0 0.0
  %2919 = vmatpush1.msra.mxu0 0.0
  %2920 = vmatprep.subr.mxu0 0.0
  %2921 = vmatpush1.msra.mxu0 0.0
  %2922 = vmatprep.subr.mxu0 0.0
  %2923 = vmatpush1.msra.mxu0 0.0
  %2924 = vmatprep.subr.mxu0 0.0
  %2925 = vmatpush1.msra.mxu0 0.0
  %2926 = vmatprep.subr.mxu0 0.0
  %2927 = vmatpush1.msra.mxu0 0.0
  %2928 = vmatprep.subr.mxu0 0.0
  %2929 = vmatpush1.msra.mxu0 0.0
  %2930 = vmatprep.subr.mxu0 0.0
  %2931 = vmatpush1.msra.mxu0 0.0
  %2932 = vmatprep.subr.mxu0 0.0
  %2933 = vmatpush1.msra.mxu0 0.0
  %2934 = vmatprep.subr.mxu0 0.0
  %2935 = vmatpush1.msra.mxu0 0.0
  %2936 = vmatprep.mubr.f32.mxu0 0.0
  %2937 = vmatmul.mubr.f32.gmra.mrb[0].mxu0 %v2728
  %v2938 = vpop.f32.mrb[0].mxu0
  %v2939 = vadd.f32 %v2725, %v2938
  %v2940 = vpop.f32.mrb[0].mxu0
  %v2941 = vadd.f32 %v2725, %v2940
  %2942 = vdwg.mxu0
  %2943 = vmatprep.subr.mxu0 %v2471
  %2944 = vmatpush1.msra.mxu0 %v2470
  %2945 = vmatprep.subr.mxu0 %v2479
  %2946 = vmatpush1.msra.mxu0 %v2478
  %2947 = vmatprep.subr.mxu0 %v2559
  %2948 = vmatpush1.msra.mxu0 %v2558
  %2949 = vmatprep.subr.mxu0 %v2567
  %2950 = vmatpush1.msra.mxu0 %v2566
  %2951 = vmatprep.subr.mxu0 %v2627
  %2952 = vmatpush1.msra.mxu0 %v2626
  %2953 = vmatprep.subr.mxu0 %v2635
  %2954 = vmatpush1.msra.mxu0 %v2634
  %2955 = vmatprep.subr.mxu0 %v2695
  %2956 = vmatpush1.msra.mxu0 %v2694
  %2957 = vmatprep.subr.mxu0 %v2703
  %2958 = vmatpush1.msra.mxu0 %v2702
  %2959 = vmatprep.subr.mxu0 0.0
  %2960 = vmatpush1.msra.mxu0 0.0
  %2961 = vmatprep.subr.mxu0 0.0
  %2962 = vmatpush1.msra.mxu0 0.0
  %2963 = vmatprep.subr.mxu0 0.0
  %2964 = vmatpush1.msra.mxu0 0.0
  %2965 = vmatprep.subr.mxu0 0.0
  %2966 = vmatpush1.msra.mxu0 0.0
  %2967 = vmatprep.subr.mxu0 0.0
  %2968 = vmatpush1.msra.mxu0 0.0
  %2969 = vmatprep.subr.mxu0 0.0
  %2970 = vmatpush1.msra.mxu0 0.0
  %2971 = vmatprep.subr.mxu0 0.0
  %2972 = vmatpush1.msra.mxu0 0.0
  %2973 = vmatprep.subr.mxu0 0.0
  %2974 = vmatpush1.msra.mxu0 0.0
  %2975 = vmatprep.subr.mxu0 0.0
  %2976 = vmatpush1.msra.mxu0 0.0
  %2977 = vmatprep.subr.mxu0 0.0
  %2978 = vmatpush1.msra.mxu0 0.0
  %2979 = vmatprep.subr.mxu0 0.0
  %2980 = vmatpush1.msra.mxu0 0.0
  %2981 = vmatprep.subr.mxu0 0.0
  %2982 = vmatpush1.msra.mxu0 0.0
  %2983 = vmatprep.subr.mxu0 0.0
  %2984 = vmatpush1.msra.mxu0 0.0
  %2985 = vmatprep.subr.mxu0 0.0
  %2986 = vmatpush1.msra.mxu0 0.0
  %2987 = vmatprep.subr.mxu0 0.0
  %2988 = vmatpush1.msra.mxu0 0.0
  %2989 = vmatprep.subr.mxu0 0.0
  %2990 = vmatpush1.msra.mxu0 0.0
  %2991 = vmatprep.subr.mxu0 0.0
  %2992 = vmatpush1.msra.mxu0 0.0
  %2993 = vmatprep.subr.mxu0 0.0
  %2994 = vmatpush1.msra.mxu0 0.0
  %2995 = vmatprep.subr.mxu0 0.0
  %2996 = vmatpush1.msra.mxu0 0.0
  %2997 = vmatprep.subr.mxu0 0.0
  %2998 = vmatpush1.msra.mxu0 0.0
  %2999 = vmatprep.subr.mxu0 0.0
  %3000 = vmatpush1.msra.mxu0 0.0
  %3001 = vmatprep.subr.mxu0 0.0
  %3002 = vmatpush1.msra.mxu0 0.0
  %3003 = vmatprep.subr.mxu0 0.0
  %3004 = vmatpush1.msra.mxu0 0.0
  %3005 = vmatprep.subr.mxu0 0.0
  %3006 = vmatpush1.msra.mxu0 0.0
  %3007 = vmatprep.mubr.f32.mxu0 0.0
  %3008 = vmatmul.mubr.f32.gmra.mrb[0].mxu0 %v2728
  %v3009 = vpop.f32.mrb[0].mxu0
  %v3010 = vadd.f32 %v2725, %v3009
  %v3011 = vpop.f32.mrb[0].mxu0
  %v3012 = vadd.f32 %v2725, %v3011
  %3013 = vdwg.mxu0
  %v3022 = vcombine.low %v2797, %v2799
  %v3023 = vcombine.low %v2868, %v2870
  %v3025 = vunpack.c.l.s4 1983009808
  %v3026 = vunpack.c.0.s8 %v3025
  %v3027 = vlaneseq
  %v3028 = vshrl.u32 %v3027, 7
  %v3029 = vsub.s32 %v3026, %v3028
  %v3030 = vrot.slane %v3022, %v3029
  %v3032 = vunpack.c.l.s4 1983009808
  %v3033 = vunpack.c.0.s8 %v3032
  %v3034 = vlaneseq
  %v3035 = vshrl.u32 %v3034, 7
  %v3036 = vsub.s32 %v3033, %v3035
  %v3037 = vrot.slane %v3023, %v3036
  %v3038 = vcombine.low %v3030, %v3037
  %v3039 = vcombine.low %v2939, %v2941
  %v3040 = vcombine.low %v3010, %v3012
  %v3042 = vunpack.c.l.s4 1983009808
  %v3043 = vunpack.c.0.s8 %v3042
  %v3044 = vlaneseq
  %v3045 = vshrl.u32 %v3044, 7
  %v3046 = vsub.s32 %v3043, %v3045
  %v3047 = vrot.slane %v3039, %v3046
  %v3049 = vunpack.c.l.s4 1983009808
  %v3050 = vunpack.c.0.s8 %v3049
  %v3051 = vlaneseq
  %v3052 = vshrl.u32 %v3051, 7
  %v3053 = vsub.s32 %v3050, %v3052
  %v3054 = vrot.slane %v3040, %v3053
  %v3055 = vcombine.low %v3047, %v3054
  %3058 = vst [vmem:[%s13] sm:$0xff] %v3038
  %3059 = vst [vmem:[%s13 + $0x8] sm:$0xff] %v3055
  // Predicated region
  $region54: #{model_forward.1} parent=0 // pred_check
    _
  $region55: #{model_forward.1} parent=0 // pred_check_branch
    %3061 = sbr.rel (0) target = $region57
  $region56: #{model_forward.1} parent=0 // pred_region
    _
  $region57: #{model_forward.1} parent=0 // pred_fallthru
    _
  // Predicated region
  $region58: #{model_forward.1} parent=0 // pred_check
    _
  $region59: #{model_forward.1} parent=0 // pred_check_branch
    %3063 = sbr.rel (0) target = $region61
  $region60: #{model_forward.1} parent=0 // pred_region
    _
  $region61: #{model_forward.1} parent=0 // pred_fallthru
    _

</llo_original>
